<compile_context>
chip_gen: v7x
topology: tpu7x:2x2x1
jax: 0.10.0
libtpu: 0.0.40
codegen_flags: <defaults>
</compile_context>

<pallas_src>
import functools

import jax
import jax.numpy as jnp
import numpy as np
from jax import lax
from jax.experimental import pallas as pl
from jax.experimental.pallas import tpu as pltpu

EPS = 1e-5
LANE = 128


def _round_up(v, m):
    return (v + m - 1) // m * m


def _pick_h_tile(H, W, cap):
    """Largest divisor of H that is <= cap and keeps h_tile*W a multiple of 8
    (sublane-aligned output blocks); falls back to one whole-image strip."""
    for d in range(max(1, min(cap, H)), 0, -1):
        if H % d == 0 and (d * W) % 8 == 0:
            return d
    return H


def _bottleneck_kernel(x_ref, w1_ref, s1_ref, b1_ref, w2_ref, s2_ref, b2_ref,
                       o_ref, y1_ref, col_ref, *, add, W, h_tile, n_strips):
    """Grid = (N, n_strips); one (batch, row-strip) tile per step.

    x_ref   : (1, 1, (h_tile+2)*W, Cin_p) f32  strip + 1-row halo, rows
                                               flattened (h*W + w), lane-dense C
    w1_ref  : (Cin_p, C_p)            bf16  1x1 conv weight
    w2_ref  : (9*C_p, Cout_p)         bf16  3x3 conv weight, K ordered (kh,kw,ci)
    s*/b*   : (1, C)                  f32   folded (eval-mode) BN scale / bias
    o_ref   : (1, h_tile*W, Cout_p)   f32
    y1_ref  : ((h_tile+2)*W + 2, C_p) f32   CBS1 output + 1 guard row each side
    col_ref : (h_tile*W, 9*C_p)       bf16  im2col buffer for the single 3x3 GEMM
    """
    s = pl.program_id(1)
    cp = w1_ref.shape[1]
    strip_rows = h_tile * W
    halo_rows = (h_tile + 2) * W

    # ---- CBS1: 1x1 conv == channel GEMM (bf16 MXU / f32 acc) + BN + SiLU ---
    xw = x_ref[0, 0]                                        # (halo_rows, Cin_p)
    y1 = jnp.dot(xw.astype(jnp.bfloat16), w1_ref[...],
                 preferred_element_type=jnp.float32)
    y1 = y1 * s1_ref[...] + b1_ref[...]
    y1 = y1 * jax.nn.sigmoid(y1)                            # SiLU (f32 VPU/EUP)

    # conv2's spatial zero padding pads *y1* with zeros (not CBS1 of a zero x
    # row), so the image-edge halo rows must be zeroed.  Branch-free, so it is
    # correct for any grid-step order / megacore split of the strip axis.
    r_idx = lax.broadcasted_iota(jnp.int32, (halo_rows, 1), 0)
    edge = ((r_idx < W) & (s == 0)) | (
        (r_idx >= (h_tile + 1) * W) & (s == n_strips - 1))
    y1 = jnp.where(edge, 0.0, y1)

    # Stage y1 once; guard rows 0 and halo_rows+1 are only ever read at
    # positions the width masks below zero out, keep them zeroed for hygiene.
    y1_ref[pl.ds(0, 1), :] = jnp.zeros((1, cp), jnp.float32)
    y1_ref[pl.ds(halo_rows + 1, 1), :] = jnp.zeros((1, cp), jnp.float32)
    y1_ref[pl.ds(1, halo_rows), :] = y1

    # ---- CBS2: 3x3 conv as ONE im2col GEMM (K = 9*C_p) + BN + SiLU ---------
    # In flattened row-major (h*W + w) coordinates, tap (kh, kw) of output
    # position p reads y1[p + kh*W + kw - 1]; the width wrap-around elements
    # (w==0 for kw==0, w==W-1 for kw==2) are masked to zero.
    c_idx = lax.broadcasted_iota(jnp.int32, (strip_rows, 1), 0) % W
    keep = {0: c_idx > 0, 1: None, 2: c_idx < W - 1}
    for kh in range(3):
        for kw in range(3):
            tap = y1_ref[pl.ds(kh * W + kw, strip_rows), :]
            if keep[kw] is not None:
                tap = jnp.where(keep[kw], tap, 0.0)
            col_ref[:, pl.ds((kh * 3 + kw) * cp, cp)] = tap.astype(jnp.bfloat16)
    # TODO(synk): on v7x (MRB accumulation) 9 accumulated matmuls would avoid
    # the col_ref buffer entirely; single im2col GEMM kept for v5e/v6e.

    y2 = jnp.dot(col_ref[...], w2_ref[...], preferred_element_type=jnp.float32)
    y2 = y2 * s2_ref[...] + b2_ref[...]
    y2 = y2 * jax.nn.sigmoid(y2)

    if add:  # residual shortcut (in_channels == out_channels), f32.
        # Static offset W skips the strip's top halo row.
        y2 = y2 + x_ref[0, 0, pl.ds(W, strip_rows), :]

    o_ref[0] = y2.astype(o_ref.dtype)


def bottleneck_pallas(x_nhwc, folded_params, out_channels, *, add, h_tile=32):
    """x_nhwc: (N, H, W, Cin) float32. Returns (N, H, W, out_channels)."""
    w1, s1, b1, w2, s2, b2 = folded_params
    N, H, W, Cin = x_nhwc.shape
    cin_p, cp = w1.shape
    cout_p = w2.shape[1]

    h_tile = _pick_h_tile(H, W, h_tile)
    n_strips = H // h_tile
    strip_rows = h_tile * W
    halo_rows = (h_tile + 2) * W

    # Lane-dense channels + one zero row of spatial padding top/bottom, then
    # pre-gathered *overlapping* row strips (each strip carries its own 1-row
    # halo).  Each grid step now only holds a strip-sized window of x in VMEM
    # instead of the whole image; the ~2/h_tile extra HBM traffic from the
    # duplicated halo rows is the price (layout-only work done by XLA).
    x_p = jnp.zeros((N, H + 2, W, cin_p), x_nhwc.dtype)
    x_p = x_p.at[:, 1:H + 1, :, :Cin].set(x_nhwc)
    row_idx = (jnp.arange(n_strips)[:, None] * h_tile
               + jnp.arange(h_tile + 2)[None, :])
    x_strips = x_p[:, row_idx].reshape(N, n_strips, halo_rows, cin_p)

    # Explicit VMEM budget (x and out blocks are double-buffered by the
    # pipeline; weights are fetched once but also double-buffered); clamp so
    # we stay inside v7x's 64 MiB physical VMEM with headroom.
    bytes_needed = (
        2 * halo_rows * cin_p * 4                  # x strip blocks
        + 2 * strip_rows * cout_p * 4              # output blocks
        + 2 * (cin_p * cp + 9 * cp * cout_p) * 2   # w1 + w2 (bf16)
        + 4 * 2 * max(cp, cout_p) * 4              # folded BN scale / bias
        + (halo_rows + 2) * cp * 4                 # y1 scratch (f32)
        + strip_rows * 9 * cp * 2)                 # im2col scratch (bf16)
    vmem_limit = int(min(max(bytes_needed + (4 << 20), 32 << 20), 64 << 20))

    kernel = functools.partial(_bottleneck_kernel, add=add, W=W,
                               h_tile=h_tile, n_strips=n_strips)
    out = pl.pallas_call(
        kernel,
        out_shape=jax.ShapeDtypeStruct((N, H * W, cout_p), x_nhwc.dtype),
        grid_spec=pltpu.PrefetchScalarGridSpec(
            num_scalar_prefetch=0,
            grid=(N, n_strips),
            in_specs=[
                # Strip-sized halo window of x (was: whole image).
                pl.BlockSpec((1, 1, halo_rows, cin_p),
                             lambda n, s: (n, s, 0, 0)),
                # Weights / folded BN: constant index maps -> fetched once.
                # TODO(synk): pipeline_mode=pl.Buffered(1) would single-buffer
                # these constants and save their second pipeline buffer.
                pl.BlockSpec((cin_p, cp), lambda n, s: (0, 0)),
                pl.BlockSpec((1, cp), lambda n, s: (0, 0)),
                pl.BlockSpec((1, cp), lambda n, s: (0, 0)),
                pl.BlockSpec((9 * cp, cout_p), lambda n, s: (0, 0)),
                pl.BlockSpec((1, cout_p), lambda n, s: (0, 0)),
                pl.BlockSpec((1, cout_p), lambda n, s: (0, 0)),
            ],
            out_specs=pl.BlockSpec((1, strip_rows, cout_p),
                                   lambda n, s: (n, s, 0)),
            scratch_shapes=[
                pltpu.VMEM((halo_rows + 2, cp), jnp.float32),    # y1 (+guards)
                pltpu.VMEM((strip_rows, 9 * cp), jnp.bfloat16),  # im2col
            ],
        ),
        compiler_params=pltpu.CompilerParams(
            dimension_semantics=("parallel", "parallel"),
            vmem_limit_bytes=vmem_limit),
    )(x_strips, w1, s1, b1, w2, s2, b2)

    return out.reshape(N, H, W, cout_p)[:, :, :, :out_channels]


def make_raw_params(key, in_channels, out_channels):
    """Deterministic synthetic params, PyTorch-shaped."""
    c_ = int(out_channels)
    ks = jax.random.split(key, 10)
    w1_t = 0.1 * jax.random.normal(ks[0], (c_, in_channels, 1, 1), jnp.float32)
    w2_t = 0.1 * jax.random.normal(ks[1], (out_channels, c_, 3, 3), jnp.float32)
    g1 = 1.0 + 0.1 * jax.random.normal(ks[2], (c_,), jnp.float32)
    be1 = 0.1 * jax.random.normal(ks[3], (c_,), jnp.float32)
    m1 = 0.1 * jax.random.normal(ks[4], (c_,), jnp.float32)
    v1 = 0.5 + jnp.abs(jax.random.normal(ks[5], (c_,), jnp.float32))
    g2 = 1.0 + 0.1 * jax.random.normal(ks[6], (out_channels,), jnp.float32)
    be2 = 0.1 * jax.random.normal(ks[7], (out_channels,), jnp.float32)
    m2 = 0.1 * jax.random.normal(ks[8], (out_channels,), jnp.float32)
    v2 = 0.5 + jnp.abs(jax.random.normal(ks[9], (out_channels,), jnp.float32))
    return (w1_t, w2_t, g1, be1, m1, v1, g2, be2, m2, v2)


def fold_params(raw, in_channels, out_channels):
    """Fold BN into scale/bias; repack conv weights lane-dense (pad to 128),
    bf16 for the MXU, with w2 pre-reshaped to the (9*C_p, Cout_p) im2col
    layout (K ordered kh, kw, cin to match the kernel's tap order)."""
    (w1_t, w2_t, g1, be1, m1, v1, g2, be2, m2, v2) = raw
    c_ = w1_t.shape[0]
    cin_p = _round_up(in_channels, LANE)
    cp = _round_up(c_, LANE)
    cout_p = _round_up(out_channels, LANE)

    s1 = g1 / jnp.sqrt(v1 + EPS)
    b1 = be1 - m1 * s1
    s2 = g2 / jnp.sqrt(v2 + EPS)
    b2 = be2 - m2 * s2

    w1 = jnp.zeros((cin_p, cp), jnp.float32)
    w1 = w1.at[:in_channels, :c_].set(jnp.transpose(w1_t[:, :, 0, 0], (1, 0)))

    w2 = jnp.zeros((3, 3, cp, cout_p), jnp.float32)
    w2 = w2.at[:, :, :c_, :out_channels].set(jnp.transpose(w2_t, (2, 3, 1, 0)))
    w2 = w2.reshape(9 * cp, cout_p)

    def padvec(v, n):
        return jnp.zeros((1, n), jnp.float32).at[0, :v.shape[0]].set(v)

    return (w1.astype(jnp.bfloat16), padvec(s1, cp), padvec(b1, cp),
            w2.astype(jnp.bfloat16), padvec(s2, cout_p), padvec(b2, cout_p))


def bottleneck_ref(x_nhwc, raw, *, add):
    """Pure-JAX reference (eval-mode BN), NHWC, full f32 precision."""
    (w1_t, w2_t, g1, be1, m1, v1, g2, be2, m2, v2) = raw
    y = lax.conv_general_dilated(
        x_nhwc, jnp.transpose(w1_t, (2, 3, 1, 0)), (1, 1), 'VALID',
        dimension_numbers=('NHWC', 'HWIO', 'NHWC'),
        precision=lax.Precision.HIGHEST)
    y = (y - m1) / jnp.sqrt(v1 + EPS) * g1 + be1
    y = y * jax.nn.sigmoid(y)
    y = lax.conv_general_dilated(
        y, jnp.transpose(w2_t, (2, 3, 1, 0)), (1, 1), ((1, 1), (1, 1)),
        dimension_numbers=('NHWC', 'HWIO', 'NHWC'),
        precision=lax.Precision.HIGHEST)
    y = (y - m2) / jnp.sqrt(v2 + EPS) * g2 + be2
    y = y * jax.nn.sigmoid(y)
    return x_nhwc + y if add else y


if __name__ == "__main__":
    # Small shapes consistent with the module: BottleNeck(4, 4, shortcut=True)
    N, C, H, W = 2, 4, 16, 16
    in_channels, out_channels, shortcut = C, C, True
    add = bool(shortcut and in_channels == out_channels)

    key = jax.random.PRNGKey(0)
    kx, kp = jax.random.split(key)
    x_nchw = jax.random.normal(kx, (N, C, H, W), jnp.float32)   # PyTorch layout
    x_nhwc = jnp.transpose(x_nchw, (0, 2, 3, 1))                # kernel layout

    raw = make_raw_params(kp, in_channels, out_channels)
    folded = fold_params(raw, in_channels, out_channels)
    ref = jax.block_until_ready(bottleneck_ref(x_nhwc, raw, add=add))

    # h_tile=8 -> two strips (exercises the cross-strip halo path);
    # default 32 -> one whole-image strip at H=16.
    for ht in (8, 32):
        out = bottleneck_pallas(x_nhwc, folded, out_channels, add=add,
                                h_tile=ht)
        out = jax.block_until_ready(out)
        # bf16 MXU operands (f32 accumulation) vs HIGHEST-precision reference.
        np.testing.assert_allclose(np.asarray(out), np.asarray(ref),
                                   rtol=3e-2, atol=3e-2)
    print("KERNEL_OK")
</pallas_src>

<mosaic_0001>
module attributes {stable_mosaic.version = 11 : i64} {
  func.func @_bottleneck_kernel(%arg0: i32, %arg1: i32, %arg2: memref<1x1x160x128xf32, #tpu.memory_space<vmem>>, %arg3: memref<128x128xbf16, #tpu.memory_space<vmem>>, %arg4: memref<1x128xf32, #tpu.memory_space<vmem>>, %arg5: memref<1x128xf32, #tpu.memory_space<vmem>>, %arg6: memref<1152x128xbf16, #tpu.memory_space<vmem>>, %arg7: memref<1x128xf32, #tpu.memory_space<vmem>>, %arg8: memref<1x128xf32, #tpu.memory_space<vmem>>, %arg9: memref<1x128x128xf32, #tpu.memory_space<vmem>>, %arg10: memref<162x128xf32, #tpu.memory_space<vmem>>, %arg11: memref<128x1152xbf16, #tpu.memory_space<vmem>>) attributes {dimension_semantics = [#tpu.dimension_semantics<parallel>, #tpu.dimension_semantics<parallel>], iteration_bounds = array<i64: 2, 2>, scalar_prefetch = 0 : i64, scratch_operands = 2 : i64, tpu.core_type = #tpu.core_type<tc>, window_params = [{transform_indices = @transform_0, window_bounds = array<i64: 1, 1, 160, 128>}, {pipeline_mode = #tpu.pipeline_mode<synchronous>, transform_indices = @transform_1, window_bounds = array<i64: 128, 128>}, {pipeline_mode = #tpu.pipeline_mode<synchronous>, transform_indices = @transform_2, window_bounds = array<i64: 1, 128>}, {pipeline_mode = #tpu.pipeline_mode<synchronous>, transform_indices = @transform_3, window_bounds = array<i64: 1, 128>}, {pipeline_mode = #tpu.pipeline_mode<synchronous>, transform_indices = @transform_4, window_bounds = array<i64: 1152, 128>}, {pipeline_mode = #tpu.pipeline_mode<synchronous>, transform_indices = @transform_5, window_bounds = array<i64: 1, 128>}, {pipeline_mode = #tpu.pipeline_mode<synchronous>, transform_indices = @transform_6, window_bounds = array<i64: 1, 128>}, {transform_indices = @transform_7, window_bounds = array<i64: 1, 128, 128>}]} {
    %c0 = arith.constant 0 : index
    %c0_0 = arith.constant 0 : index
    %c0_1 = arith.constant 0 : index
    %c0_2 = arith.constant 0 : index
    %0 = vector.load %arg2[%c0, %c0_0, %c0_1, %c0_2] : memref<1x1x160x128xf32, #tpu.memory_space<vmem>>, vector<1x1x160x128xf32>
    %1 = vector.shape_cast %0 : vector<1x1x160x128xf32> to vector<160x128xf32>
    %2 = arith.truncf %1 : vector<160x128xf32> to vector<160x128xbf16>
    %c0_3 = arith.constant 0 : index
    %c0_4 = arith.constant 0 : index
    %3 = vector.load %arg3[%c0_3, %c0_4] : memref<128x128xbf16, #tpu.memory_space<vmem>>, vector<128x128xbf16>
    %cst = arith.constant dense<0.000000e+00> : vector<160x128xf32>
    %4 = tpu.matmul %2, %3, %cst {dimension_numbers = #tpu.dot_dimension_numbers<[1], [0], [0], [1], [0, 0, 1, 1], [], []>} : vector<160x128xbf16>, vector<128x128xbf16>, vector<160x128xf32> -> vector<160x128xf32>
    %c0_5 = arith.constant 0 : index
    %c0_6 = arith.constant 0 : index
    %5 = vector.load %arg4[%c0_5, %c0_6] : memref<1x128xf32, #tpu.memory_space<vmem>>, vector<1x128xf32>
    %6 = vector.broadcast %5 : vector<1x128xf32> to vector<160x128xf32>
    %7 = arith.mulf %4, %6 : vector<160x128xf32>
    %c0_7 = arith.constant 0 : index
    %c0_8 = arith.constant 0 : index
    %8 = vector.load %arg5[%c0_7, %c0_8] : memref<1x128xf32, #tpu.memory_space<vmem>>, vector<1x128xf32>
    %9 = vector.broadcast %8 : vector<1x128xf32> to vector<160x128xf32>
    %10 = arith.addf %7, %9 : vector<160x128xf32>
    %11 = arith.negf %10 : vector<160x128xf32>
    %12 = math.exp %11 : vector<160x128xf32>
    %cst_9 = arith.constant 1.000000e+00 : f32
    %13 = vector.broadcast %cst_9 : f32 to vector<160x128xf32>
    %14 = arith.addf %13, %12 : vector<160x128xf32>
    %15 = arith.divf %13, %14 : vector<160x128xf32>
    %16 = arith.mulf %10, %15 : vector<160x128xf32>
    %17 = tpu.iota {dimensions = array<i32: 0>} : vector<160x1xi32>
    %c16_i32 = arith.constant 16 : i32
    %18 = vector.broadcast %c16_i32 : i32 to vector<160x1xi32>
    %19 = arith.cmpi slt, %17, %18 : vector<160x1xi32>
    %c0_i32 = arith.constant 0 : i32
    %20 = arith.cmpi eq, %arg1, %c0_i32 : i32
    %21 = vector.broadcast %20 : i1 to vector<160x1xi1>
    %22 = arith.andi %19, %21 : vector<160x1xi1>
    %c144_i32 = arith.constant 144 : i32
    %23 = vector.broadcast %c144_i32 : i32 to vector<160x1xi32>
    %24 = arith.cmpi sge, %17, %23 : vector<160x1xi32>
    %c1_i32 = arith.constant 1 : i32
    %25 = arith.cmpi eq, %arg1, %c1_i32 : i32
    %26 = vector.broadcast %25 : i1 to vector<160x1xi1>
    %27 = arith.andi %24, %26 : vector<160x1xi1>
    %28 = arith.ori %22, %27 : vector<160x1xi1>
    %cst_10 = arith.constant 0.000000e+00 : f32
    %29 = vector.shape_cast %28 : vector<160x1xi1> to vector<160x1xi1>
    %30 = vector.broadcast %29 : vector<160x1xi1> to vector<160x128xi1>
    %31 = vector.broadcast %cst_10 : f32 to vector<160x128xf32>
    %32 = arith.select %30, %31, %16 : vector<160x128xi1>, vector<160x128xf32>
    %cst_11 = arith.constant 0.000000e+00 : f32
    %33 = vector.broadcast %cst_11 : f32 to vector<1x128xf32>
    %c0_12 = arith.constant 0 : index
    %c0_13 = arith.constant 0 : index
    %34 = vector.load %arg10[%c0_12, %c0_13] : memref<162x128xf32, #tpu.memory_space<vmem>>, vector<1x128xf32>
    tpu.vector_store %arg10[%c0_12, %c0_13], %33 {strides = array<i32>} : memref<162x128xf32, #tpu.memory_space<vmem>>, vector<1x128xf32>,
    %cst_14 = arith.constant 0.000000e+00 : f32
    %35 = vector.broadcast %cst_14 : f32 to vector<1x128xf32>
    %c161 = arith.constant 161 : index
    %c0_15 = arith.constant 0 : index
    %36 = vector.load %arg10[%c161, %c0_15] : memref<162x128xf32, #tpu.memory_space<vmem>>, vector<1x128xf32>
    tpu.vector_store %arg10[%c161, %c0_15], %35 {strides = array<i32>} : memref<162x128xf32, #tpu.memory_space<vmem>>, vector<1x128xf32>,
    %c1 = arith.constant 1 : index
    %c0_16 = arith.constant 0 : index
    %37 = vector.load %arg10[%c1, %c0_16] : memref<162x128xf32, #tpu.memory_space<vmem>>, vector<160x128xf32>
    tpu.vector_store %arg10[%c1, %c0_16], %32 {strides = array<i32>} : memref<162x128xf32, #tpu.memory_space<vmem>>, vector<160x128xf32>,
    %38 = tpu.iota {dimensions = array<i32: 0>} : vector<128x1xi32>
    %c16_i32_17 = arith.constant 16 : i32
    %c0_i32_18 = arith.constant 0 : i32
    %39 = arith.cmpi eq, %c16_i32_17, %c0_i32_18 : i32
    %c1_i32_19 = arith.constant 1 : i32
    %40 = arith.select %39, %c1_i32_19, %c16_i32_17 : i32
    %41 = vector.broadcast %40 : i32 to vector<128x1xi32>
    %42 = arith.remsi %38, %41 : vector<128x1xi32>
    %c0_i32_20 = arith.constant 0 : i32
    %43 = vector.broadcast %c0_i32_20 : i32 to vector<128x1xi32>
    %44 = arith.cmpi ne, %42, %43 : vector<128x1xi32>
    %c0_i32_21 = arith.constant 0 : i32
    %45 = vector.broadcast %c0_i32_21 : i32 to vector<128x1xi32>
    %46 = arith.cmpi slt, %42, %45 : vector<128x1xi32>
    %c0_i32_22 = arith.constant 0 : i32
    %47 = arith.cmpi slt, %40, %c0_i32_22 : i32
    %48 = vector.broadcast %47 : i1 to vector<128x1xi1>
    %49 = vector.broadcast %48 : vector<128x1xi1> to vector<128x1xi1>
    %50 = arith.xori %46, %49 : vector<128x1xi1>
    %51 = arith.andi %50, %44 : vector<128x1xi1>
    %52 = vector.broadcast %40 : i32 to vector<128x1xi32>
    %53 = arith.addi %42, %52 : vector<128x1xi32>
    %54 = arith.select %51, %53, %42 : vector<128x1xi1>, vector<128x1xi32>
    %c0_i32_23 = arith.constant 0 : i32
    %55 = vector.broadcast %c0_i32_23 : i32 to vector<128x1xi32>
    %56 = arith.cmpi sgt, %54, %55 : vector<128x1xi32>
    %c15_i32 = arith.constant 15 : i32
    %57 = vector.broadcast %c15_i32 : i32 to vector<128x1xi32>
    %58 = arith.cmpi slt, %54, %57 : vector<128x1xi32>
    %c0_24 = arith.constant 0 : index
    %c0_25 = arith.constant 0 : index
    %59 = vector.load %arg10[%c0_24, %c0_25] : memref<162x128xf32, #tpu.memory_space<vmem>>, vector<128x128xf32>
    %cst_26 = arith.constant 0.000000e+00 : f32
    %60 = vector.shape_cast %56 : vector<128x1xi1> to vector<128x1xi1>
    %61 = vector.broadcast %60 : vector<128x1xi1> to vector<128x128xi1>
    %62 = vector.broadcast %cst_26 : f32 to vector<128x128xf32>
    %63 = arith.select %61, %59, %62 : vector<128x128xi1>, vector<128x128xf32>
    %64 = arith.truncf %63 : vector<128x128xf32> to vector<128x128xbf16>
    %c0_27 = arith.constant 0 : index
    %c0_28 = arith.constant 0 : index
    %65 = vector.load %arg11[%c0_27, %c0_28] : memref<128x1152xbf16, #tpu.memory_space<vmem>>, vector<128x128xbf16>
    tpu.vector_store %arg11[%c0_27, %c0_28], %64 {strides = array<i32>} : memref<128x1152xbf16, #tpu.memory_space<vmem>>, vector<128x128xbf16>,
    %c1_29 = arith.constant 1 : index
    %c0_30 = arith.constant 0 : index
    %66 = vector.load %arg10[%c1_29, %c0_30] : memref<162x128xf32, #tpu.memory_space<vmem>>, vector<128x128xf32>
    %67 = arith.truncf %66 : vector<128x128xf32> to vector<128x128xbf16>
    %c0_31 = arith.constant 0 : index
    %c128 = arith.constant 128 : index
    %68 = vector.load %arg11[%c0_31, %c128] : memref<128x1152xbf16, #tpu.memory_space<vmem>>, vector<128x128xbf16>
    tpu.vector_store %arg11[%c0_31, %c128], %67 {strides = array<i32>} : memref<128x1152xbf16, #tpu.memory_space<vmem>>, vector<128x128xbf16>,
    %c2 = arith.constant 2 : index
    %c0_32 = arith.constant 0 : index
    %69 = vector.load %arg10[%c2, %c0_32] : memref<162x128xf32, #tpu.memory_space<vmem>>, vector<128x128xf32>
    %cst_33 = arith.constant 0.000000e+00 : f32
    %70 = vector.shape_cast %58 : vector<128x1xi1> to vector<128x1xi1>
    %71 = vector.broadcast %70 : vector<128x1xi1> to vector<128x128xi1>
    %72 = vector.broadcast %cst_33 : f32 to vector<128x128xf32>
    %73 = arith.select %71, %69, %72 : vector<128x128xi1>, vector<128x128xf32>
    %74 = arith.truncf %73 : vector<128x128xf32> to vector<128x128xbf16>
    %c0_34 = arith.constant 0 : index
    %c256 = arith.constant 256 : index
    %75 = vector.load %arg11[%c0_34, %c256] : memref<128x1152xbf16, #tpu.memory_space<vmem>>, vector<128x128xbf16>
    tpu.vector_store %arg11[%c0_34, %c256], %74 {strides = array<i32>} : memref<128x1152xbf16, #tpu.memory_space<vmem>>, vector<128x128xbf16>,
    %c16 = arith.constant 16 : index
    %c0_35 = arith.constant 0 : index
    %76 = vector.load %arg10[%c16, %c0_35] : memref<162x128xf32, #tpu.memory_space<vmem>>, vector<128x128xf32>
    %cst_36 = arith.constant 0.000000e+00 : f32
    %77 = vector.shape_cast %56 : vector<128x1xi1> to vector<128x1xi1>
    %78 = vector.broadcast %77 : vector<128x1xi1> to vector<128x128xi1>
    %79 = vector.broadcast %cst_36 : f32 to vector<128x128xf32>
    %80 = arith.select %78, %76, %79 : vector<128x128xi1>, vector<128x128xf32>
    %81 = arith.truncf %80 : vector<128x128xf32> to vector<128x128xbf16>
    %c0_37 = arith.constant 0 : index
    %c384 = arith.constant 384 : index
    %82 = vector.load %arg11[%c0_37, %c384] : memref<128x1152xbf16, #tpu.memory_space<vmem>>, vector<128x128xbf16>
    tpu.vector_store %arg11[%c0_37, %c384], %81 {strides = array<i32>} : memref<128x1152xbf16, #tpu.memory_space<vmem>>, vector<128x128xbf16>,
    %c17 = arith.constant 17 : index
    %c0_38 = arith.constant 0 : index
    %83 = vector.load %arg10[%c17, %c0_38] : memref<162x128xf32, #tpu.memory_space<vmem>>, vector<128x128xf32>
    %84 = arith.truncf %83 : vector<128x128xf32> to vector<128x128xbf16>
    %c0_39 = arith.constant 0 : index
    %c512 = arith.constant 512 : index
    %85 = vector.load %arg11[%c0_39, %c512] : memref<128x1152xbf16, #tpu.memory_space<vmem>>, vector<128x128xbf16>
    tpu.vector_store %arg11[%c0_39, %c512], %84 {strides = array<i32>} : memref<128x1152xbf16, #tpu.memory_space<vmem>>, vector<128x128xbf16>,
    %c18 = arith.constant 18 : index
    %c0_40 = arith.constant 0 : index
    %86 = vector.load %arg10[%c18, %c0_40] : memref<162x128xf32, #tpu.memory_space<vmem>>, vector<128x128xf32>
    %cst_41 = arith.constant 0.000000e+00 : f32
    %87 = vector.shape_cast %58 : vector<128x1xi1> to vector<128x1xi1>
    %88 = vector.broadcast %87 : vector<128x1xi1> to vector<128x128xi1>
    %89 = vector.broadcast %cst_41 : f32 to vector<128x128xf32>
    %90 = arith.select %88, %86, %89 : vector<128x128xi1>, vector<128x128xf32>
    %91 = arith.truncf %90 : vector<128x128xf32> to vector<128x128xbf16>
    %c0_42 = arith.constant 0 : index
    %c640 = arith.constant 640 : index
    %92 = vector.load %arg11[%c0_42, %c640] : memref<128x1152xbf16, #tpu.memory_space<vmem>>, vector<128x128xbf16>
    tpu.vector_store %arg11[%c0_42, %c640], %91 {strides = array<i32>} : memref<128x1152xbf16, #tpu.memory_space<vmem>>, vector<128x128xbf16>,
    %c32 = arith.constant 32 : index
    %c0_43 = arith.constant 0 : index
    %93 = vector.load %arg10[%c32, %c0_43] : memref<162x128xf32, #tpu.memory_space<vmem>>, vector<128x128xf32>
    %cst_44 = arith.constant 0.000000e+00 : f32
    %94 = vector.shape_cast %56 : vector<128x1xi1> to vector<128x1xi1>
    %95 = vector.broadcast %94 : vector<128x1xi1> to vector<128x128xi1>
    %96 = vector.broadcast %cst_44 : f32 to vector<128x128xf32>
    %97 = arith.select %95, %93, %96 : vector<128x128xi1>, vector<128x128xf32>
    %98 = arith.truncf %97 : vector<128x128xf32> to vector<128x128xbf16>
    %c0_45 = arith.constant 0 : index
    %c768 = arith.constant 768 : index
    %99 = vector.load %arg11[%c0_45, %c768] : memref<128x1152xbf16, #tpu.memory_space<vmem>>, vector<128x128xbf16>
    tpu.vector_store %arg11[%c0_45, %c768], %98 {strides = array<i32>} : memref<128x1152xbf16, #tpu.memory_space<vmem>>, vector<128x128xbf16>,
    %c33 = arith.constant 33 : index
    %c0_46 = arith.constant 0 : index
    %100 = vector.load %arg10[%c33, %c0_46] : memref<162x128xf32, #tpu.memory_space<vmem>>, vector<128x128xf32>
    %101 = arith.truncf %100 : vector<128x128xf32> to vector<128x128xbf16>
    %c0_47 = arith.constant 0 : index
    %c896 = arith.constant 896 : index
    %102 = vector.load %arg11[%c0_47, %c896] : memref<128x1152xbf16, #tpu.memory_space<vmem>>, vector<128x128xbf16>
    tpu.vector_store %arg11[%c0_47, %c896], %101 {strides = array<i32>} : memref<128x1152xbf16, #tpu.memory_space<vmem>>, vector<128x128xbf16>,
    %c34 = arith.constant 34 : index
    %c0_48 = arith.constant 0 : index
    %103 = vector.load %arg10[%c34, %c0_48] : memref<162x128xf32, #tpu.memory_space<vmem>>, vector<128x128xf32>
    %cst_49 = arith.constant 0.000000e+00 : f32
    %104 = vector.shape_cast %58 : vector<128x1xi1> to vector<128x1xi1>
    %105 = vector.broadcast %104 : vector<128x1xi1> to vector<128x128xi1>
    %106 = vector.broadcast %cst_49 : f32 to vector<128x128xf32>
    %107 = arith.select %105, %103, %106 : vector<128x128xi1>, vector<128x128xf32>
    %108 = arith.truncf %107 : vector<128x128xf32> to vector<128x128xbf16>
    %c0_50 = arith.constant 0 : index
    %c1024 = arith.constant 1024 : index
    %109 = vector.load %arg11[%c0_50, %c1024] : memref<128x1152xbf16, #tpu.memory_space<vmem>>, vector<128x128xbf16>
    tpu.vector_store %arg11[%c0_50, %c1024], %108 {strides = array<i32>} : memref<128x1152xbf16, #tpu.memory_space<vmem>>, vector<128x128xbf16>,
    %c0_51 = arith.constant 0 : index
    %c0_52 = arith.constant 0 : index
    %110 = vector.load %arg11[%c0_51, %c0_52] : memref<128x1152xbf16, #tpu.memory_space<vmem>>, vector<128x1152xbf16>
    %c0_53 = arith.constant 0 : index
    %c0_54 = arith.constant 0 : index
    %111 = vector.load %arg6[%c0_53, %c0_54] : memref<1152x128xbf16, #tpu.memory_space<vmem>>, vector<1152x128xbf16>
    %cst_55 = arith.constant dense<0.000000e+00> : vector<128x128xf32>
    %112 = tpu.matmul %110, %111, %cst_55 {dimension_numbers = #tpu.dot_dimension_numbers<[1], [0], [0], [1], [0, 0, 1, 1], [], []>} : vector<128x1152xbf16>, vector<1152x128xbf16>, vector<128x128xf32> -> vector<128x128xf32>
    %c0_56 = arith.constant 0 : index
    %c0_57 = arith.constant 0 : index
    %113 = vector.load %arg7[%c0_56, %c0_57] : memref<1x128xf32, #tpu.memory_space<vmem>>, vector<1x128xf32>
    %114 = vector.broadcast %113 : vector<1x128xf32> to vector<128x128xf32>
    %115 = arith.mulf %112, %114 : vector<128x128xf32>
    %c0_58 = arith.constant 0 : index
    %c0_59 = arith.constant 0 : index
    %116 = vector.load %arg8[%c0_58, %c0_59] : memref<1x128xf32, #tpu.memory_space<vmem>>, vector<1x128xf32>
    %117 = vector.broadcast %116 : vector<1x128xf32> to vector<128x128xf32>
    %118 = arith.addf %115, %117 : vector<128x128xf32>
    %119 = arith.negf %118 : vector<128x128xf32>
    %120 = math.exp %119 : vector<128x128xf32>
    %cst_60 = arith.constant 1.000000e+00 : f32
    %121 = vector.broadcast %cst_60 : f32 to vector<128x128xf32>
    %122 = arith.addf %121, %120 : vector<128x128xf32>
    %123 = arith.divf %121, %122 : vector<128x128xf32>
    %124 = arith.mulf %118, %123 : vector<128x128xf32>
    %c0_61 = arith.constant 0 : index
    %c0_62 = arith.constant 0 : index
    %c16_63 = arith.constant 16 : index
    %c0_64 = arith.constant 0 : index
    %125 = vector.load %arg2[%c0_61, %c0_62, %c16_63, %c0_64] : memref<1x1x160x128xf32, #tpu.memory_space<vmem>>, vector<1x1x128x128xf32>
    %126 = vector.shape_cast %125 : vector<1x1x128x128xf32> to vector<128x128xf32>
    %127 = arith.addf %124, %126 : vector<128x128xf32>
    %c0_65 = arith.constant 0 : index
    %c0_66 = arith.constant 0 : index
    %c0_67 = arith.constant 0 : index
    %128 = vector.load %arg9[%c0_65, %c0_66, %c0_67] : memref<1x128x128xf32, #tpu.memory_space<vmem>>, vector<1x128x128xf32>
    %129 = vector.shape_cast %128 : vector<1x128x128xf32> to vector<128x128xf32>
    %130 = vector.shape_cast %127 : vector<128x128xf32> to vector<1x128x128xf32>
    tpu.vector_store %arg9[%c0_65, %c0_66, %c0_67], %130 {strides = array<i32>} : memref<1x128x128xf32, #tpu.memory_space<vmem>>, vector<1x128x128xf32>,
    return
  }
  func.func @transform_0(%arg0: i32, %arg1: i32) -> (i32, i32, i32, i32) {
    %c0_i32 = arith.constant 0 : i32
    %c0_i32_0 = arith.constant 0 : i32
    %c0_i32_1 = arith.constant 0 : i32
    return %arg0, %arg1, %c0_i32, %c0_i32_0 : i32, i32, i32, i32
  }
  func.func @transform_1(%arg0: i32, %arg1: i32) -> (i32, i32) {
    %c0_i32 = arith.constant 0 : i32
    %c0_i32_0 = arith.constant 0 : i32
    %c0_i32_1 = arith.constant 0 : i32
    return %c0_i32, %c0_i32_0 : i32, i32
  }
  func.func @transform_2(%arg0: i32, %arg1: i32) -> (i32, i32) {
    %c0_i32 = arith.constant 0 : i32
    %c0_i32_0 = arith.constant 0 : i32
    %c0_i32_1 = arith.constant 0 : i32
    return %c0_i32, %c0_i32_0 : i32, i32
  }
  func.func @transform_3(%arg0: i32, %arg1: i32) -> (i32, i32) {
    %c0_i32 = arith.constant 0 : i32
    %c0_i32_0 = arith.constant 0 : i32
    %c0_i32_1 = arith.constant 0 : i32
    return %c0_i32, %c0_i32_0 : i32, i32
  }
  func.func @transform_4(%arg0: i32, %arg1: i32) -> (i32, i32) {
    %c0_i32 = arith.constant 0 : i32
    %c0_i32_0 = arith.constant 0 : i32
    %c0_i32_1 = arith.constant 0 : i32
    return %c0_i32, %c0_i32_0 : i32, i32
  }
  func.func @transform_5(%arg0: i32, %arg1: i32) -> (i32, i32) {
    %c0_i32 = arith.constant 0 : i32
    %c0_i32_0 = arith.constant 0 : i32
    %c0_i32_1 = arith.constant 0 : i32
    return %c0_i32, %c0_i32_0 : i32, i32
  }
  func.func @transform_6(%arg0: i32, %arg1: i32) -> (i32, i32) {
    %c0_i32 = arith.constant 0 : i32
    %c0_i32_0 = arith.constant 0 : i32
    %c0_i32_1 = arith.constant 0 : i32
    return %c0_i32, %c0_i32_0 : i32, i32
  }
  func.func @transform_7(%arg0: i32, %arg1: i32) -> (i32, i32, i32) {
    %c0_i32 = arith.constant 0 : i32
    %c0_i32_0 = arith.constant 0 : i32
    return %arg0, %arg1, %c0_i32 : i32, i32, i32
  }
}

</mosaic_0001>

<llo_original>
// kernel: tpu_custom_call.1
$region0: #{tpu_custom_call.1}
  #allocation0 [shape = 'u32[]', space=smem, size = 0x4, offset = 0x4, fixed_abs, tag = 'smem constant byte address 0x4 - core index']
  #allocation1 [shape = 'u32[144,128]{1,0:T(1,128)}', space=vmem, size = 0x12000, scoped, tag = 'internal scratch']
  #allocation2 [shape = 'f32[162,128]{1,0:T(8,128)}', space=vmem, size = 0x15000, scoped, tag = 'scratch operand']
  #allocation3 [shape = 'bf16[128,1152]{1,0:T(16,128)(2,1)}', space=vmem, size = 0x48000, scoped, tag = 'scratch operand']
  %s0 = inlined_call_operand.hbm [shape: f32[2,2,160,128], index: 0, kind: input, shape index: {}]
  %s1 = inlined_call_operand.hbm [shape: bf16[128,128], index: 1, kind: input, shape index: {}]
  %s2 = inlined_call_operand.vmem [shape: f32[1,128], index: 2, kind: input, shape index: {}]
  %s3 = inlined_call_operand.vmem [shape: f32[1,128], index: 3, kind: input, shape index: {}]
  %s4 = inlined_call_operand.hbm [shape: bf16[1152,128], index: 4, kind: input, shape index: {}]
  %s5 = inlined_call_operand.vmem [shape: f32[1,128], index: 5, kind: input, shape index: {}]
  %s6 = inlined_call_operand.vmem [shape: f32[1,128], index: 6, kind: input, shape index: {}]
  %s7 = inlined_call_operand.hbm [shape: f32[2,256,128], index: 7, kind: output, shape index: {}]
  %s8 = sld [smem:[#allocation0]]
  $region73: #{tpu_custom_call.1} parent=0
    _
  %s10 = ssub.s32 1, %s8
  %s11 = scalar_select 0, %s10, %s8
  $region1: #{tpu_custom_call.1} parent=0
    #allocation4 [shape = 'u8[163840]{0}', space=vmem, size = 0x28000, scoped, tag = 'input window, operand 0']
    #allocation5 [shape = 's32[2]{0}', space=sflag, size = 0x8, scoped, tag = 'scoped memory for tpu_custom_call.1']
    #allocation6 [shape = 's32[2]{0}', space=sflag, size = 0x8, scoped, tag = 'scoped memory for tpu_custom_call.1']
    #allocation7 [shape = 'u8[32768]{0}', space=vmem, size = 0x8000, scoped, tag = 'input window, operand 1, single buffered']
    #allocation8 [shape = 's32[1]{0}', space=sflag, size = 0x4, scoped, tag = 'scoped memory for tpu_custom_call.1']
    #allocation9 [shape = 'u8[294912]{0}', space=vmem, size = 0x48000, scoped, tag = 'input window, operand 4, single buffered']
    #allocation10 [shape = 'u8[131072]{0}', space=vmem, size = 0x20000, scoped, tag = 'output window, operand 0']
    %12 = vsyncpa [#allocation5], 0
    %s13 = scalar_lea.sflag [#allocation5], 1
    %14 = vsyncpa %s13, 0
    %15 = vsyncpa [#allocation8], 0
    %16 = vsyncpa [#allocation6], 0
    %s17 = scalar_lea.sflag [#allocation6], 1
    %18 = vsyncpa %s17, 0
    loop: start=0, step=1, limit=6
    $region2: #{tpu_custom_call.1} parent=1 // loop_pre_header
      _
    $region3: #{tpu_custom_call.1} parent=1 // loop_header
      %s20 = sphi 0, %s24
      %p21 = scmp.ge.s32.totalorder %s20, 6
      %s27 = sphi 0, %s39
      %s28 = sphi 0, %s35
      %s29 = sphi 0, %s27
      %s30 = sphi 0, %s28
      %s31 = sphi 0, %s29
      %s32 = sphi 0, %s30
      %s44 = sphi 0, %s46
      %s47 = sphi 0, %s44
      %s48 = sphi 0, %s47
      %s64 = sphi 0, %s48
      %s68 = sphi 0, %s68
      %s70 = sphi 0, %s68
      %s71 = sphi 0, %s70
      %s85 = sphi 0, %s71
      %s89 = sphi 0, %s89
      %s91 = sphi 0, %s89
      %s92 = sphi 0, %s91
      %s106 = sphi 0, %s92
      %s110 = sphi 0, %s110
      %s112 = sphi 0, %s110
      %s113 = sphi 0, %s112
      %s127 = sphi 0, %s113
      %s131 = sphi 0, %s131
      %s133 = sphi 0, %s131
      %s134 = sphi 0, %s133
      %s148 = sphi 0, %s134
      %s152 = sphi 0, %s152
      %s154 = sphi 0, %s152
      %s155 = sphi 0, %s154
      %s169 = sphi 0, %s155
      %s173 = sphi 0, %s173
      %s175 = sphi 0, %s173
      %s176 = sphi 0, %s175
      %s190 = sphi 0, %s176
      %s198 = sphi 0, %s200
      %s201 = sphi 0, %s198
      %s202 = sphi 0, %s201
      %s218 = sphi 0, %s202
    $region4: #{tpu_custom_call.1} parent=1 // loop_header_branch
      %23 = sbr.rel (%p21) target = $region8
    $region5: #{tpu_custom_call.1} parent=1 // loop_body
      %s25 = ssub.s32 %s20, 1
      %s26 = ssub.s32 %s20, 2
      %s33 = sadd.s32 1, %s28
      %p34 = scmp.ge.s32.totalorder %s33, 2
      %s35 = scalar_select %p34, 0, %s33
      %s36 = sadd.s32 1, %s27
      %s37 = scalar_select %p34, %s36, %s27
      %p38 = scmp.ge.s32.totalorder %s37, 2
      %s39 = scalar_select %p38, 0, %s37
      %s40 = ssub.s32 %s27, %s39
      %s41 = ssub.s32 %s28, %s35
      %s42 = sor.u32 %s40, %s41
      %p43 = scmp.eq.s32.totalorder %s42, 0
      %s45 = sadd.s32 %s44, 1
      %s46 = scalar_select %p43, %s44, %s45
      %p49 = pneg %p43
      %p50 = scmp.eq.s32.totalorder %s20, 3
      %p51 = por %p49, %p50
      %p52 = scmp.ne.s32.totalorder %s44, %s47
      %p53 = scmp.eq.s32.totalorder %s20, 0
      %p54 = por %p52, %p53
      %p55 = scmp.ne.s32.totalorder %s44, %s47
      %p56 = scmp.eq.s32.totalorder %s25, 3
      %p57 = por %p55, %p56
      %p58 = scmp.ne.s32.totalorder %s47, %s48
      %p59 = scmp.eq.s32.totalorder %s25, 0
      %p60 = por %p58, %p59
      %p61 = scmp.ne.s32.totalorder %s47, %s48
      %p62 = scmp.eq.s32.totalorder %s26, 3
      %p63 = por %p61, %p62
      %p65 = scmp.ne.s32.totalorder %s48, %s64
      %p66 = scmp.eq.s32.totalorder %s26, 0
      %p67 = por %p65, %p66
      %s69 = sadd.s32 %s68, 1
      %p72 = scmp.eq.s32.totalorder %s20, 3
      %p73 = scmp.ne.s32.totalorder %s68, %s70
      %p74 = scmp.eq.s32.totalorder %s20, 0
      %p75 = por %p73, %p74
      %p76 = scmp.ne.s32.totalorder %s68, %s70
      %p77 = scmp.eq.s32.totalorder %s25, 3
      %p78 = por %p76, %p77
      %p79 = scmp.ne.s32.totalorder %s70, %s71
      %p80 = scmp.eq.s32.totalorder %s25, 0
      %p81 = por %p79, %p80
      %p82 = scmp.ne.s32.totalorder %s70, %s71
      %p83 = scmp.eq.s32.totalorder %s26, 3
      %p84 = por %p82, %p83
      %p86 = scmp.ne.s32.totalorder %s71, %s85
      %p87 = scmp.eq.s32.totalorder %s26, 0
      %p88 = por %p86, %p87
      %s90 = sadd.s32 %s89, 1
      %p93 = scmp.eq.s32.totalorder %s20, 3
      %p94 = scmp.ne.s32.totalorder %s89, %s91
      %p95 = scmp.eq.s32.totalorder %s20, 0
      %p96 = por %p94, %p95
      %p97 = scmp.ne.s32.totalorder %s89, %s91
      %p98 = scmp.eq.s32.totalorder %s25, 3
      %p99 = por %p97, %p98
      %p100 = scmp.ne.s32.totalorder %s91, %s92
      %p101 = scmp.eq.s32.totalorder %s25, 0
      %p102 = por %p100, %p101
      %p103 = scmp.ne.s32.totalorder %s91, %s92
      %p104 = scmp.eq.s32.totalorder %s26, 3
      %p105 = por %p103, %p104
      %p107 = scmp.ne.s32.totalorder %s92, %s106
      %p108 = scmp.eq.s32.totalorder %s26, 0
      %p109 = por %p107, %p108
      %s111 = sadd.s32 %s110, 1
      %p114 = scmp.eq.s32.totalorder %s20, 3
      %p115 = scmp.ne.s32.totalorder %s110, %s112
      %p116 = scmp.eq.s32.totalorder %s20, 0
      %p117 = por %p115, %p116
      %p118 = scmp.ne.s32.totalorder %s110, %s112
      %p119 = scmp.eq.s32.totalorder %s25, 3
      %p120 = por %p118, %p119
      %p121 = scmp.ne.s32.totalorder %s112, %s113
      %p122 = scmp.eq.s32.totalorder %s25, 0
      %p123 = por %p121, %p122
      %p124 = scmp.ne.s32.totalorder %s112, %s113
      %p125 = scmp.eq.s32.totalorder %s26, 3
      %p126 = por %p124, %p125
      %p128 = scmp.ne.s32.totalorder %s113, %s127
      %p129 = scmp.eq.s32.totalorder %s26, 0
      %p130 = por %p128, %p129
      %s132 = sadd.s32 %s131, 1
      %p135 = scmp.eq.s32.totalorder %s20, 3
      %p136 = scmp.ne.s32.totalorder %s131, %s133
      %p137 = scmp.eq.s32.totalorder %s20, 0
      %p138 = por %p136, %p137
      %p139 = scmp.ne.s32.totalorder %s131, %s133
      %p140 = scmp.eq.s32.totalorder %s25, 3
      %p141 = por %p139, %p140
      %p142 = scmp.ne.s32.totalorder %s133, %s134
      %p143 = scmp.eq.s32.totalorder %s25, 0
      %p144 = por %p142, %p143
      %p145 = scmp.ne.s32.totalorder %s133, %s134
      %p146 = scmp.eq.s32.totalorder %s26, 3
      %p147 = por %p145, %p146
      %p149 = scmp.ne.s32.totalorder %s134, %s148
      %p150 = scmp.eq.s32.totalorder %s26, 0
      %p151 = por %p149, %p150
      %s153 = sadd.s32 %s152, 1
      %p156 = scmp.eq.s32.totalorder %s20, 3
      %p157 = scmp.ne.s32.totalorder %s152, %s154
      %p158 = scmp.eq.s32.totalorder %s20, 0
      %p159 = por %p157, %p158
      %p160 = scmp.ne.s32.totalorder %s152, %s154
      %p161 = scmp.eq.s32.totalorder %s25, 3
      %p162 = por %p160, %p161
      %p163 = scmp.ne.s32.totalorder %s154, %s155
      %p164 = scmp.eq.s32.totalorder %s25, 0
      %p165 = por %p163, %p164
      %p166 = scmp.ne.s32.totalorder %s154, %s155
      %p167 = scmp.eq.s32.totalorder %s26, 3
      %p168 = por %p166, %p167
      %p170 = scmp.ne.s32.totalorder %s155, %s169
      %p171 = scmp.eq.s32.totalorder %s26, 0
      %p172 = por %p170, %p171
      %s174 = sadd.s32 %s173, 1
      %p177 = scmp.eq.s32.totalorder %s20, 3
      %p178 = scmp.ne.s32.totalorder %s173, %s175
      %p179 = scmp.eq.s32.totalorder %s20, 0
      %p180 = por %p178, %p179
      %p181 = scmp.ne.s32.totalorder %s173, %s175
      %p182 = scmp.eq.s32.totalorder %s25, 3
      %p183 = por %p181, %p182
      %p184 = scmp.ne.s32.totalorder %s175, %s176
      %p185 = scmp.eq.s32.totalorder %s25, 0
      %p186 = por %p184, %p185
      %p187 = scmp.ne.s32.totalorder %s175, %s176
      %p188 = scmp.eq.s32.totalorder %s26, 3
      %p189 = por %p187, %p188
      %p191 = scmp.ne.s32.totalorder %s176, %s190
      %p192 = scmp.eq.s32.totalorder %s26, 0
      %p193 = por %p191, %p192
      %s194 = ssub.s32 %s27, %s39
      %s195 = ssub.s32 %s28, %s35
      %s196 = sor.u32 %s194, %s195
      %p197 = scmp.eq.s32.totalorder %s196, 0
      %s199 = sadd.s32 %s198, 1
      %s200 = scalar_select %p197, %s198, %s199
      %p203 = pneg %p197
      %p204 = scmp.eq.s32.totalorder %s20, 3
      %p205 = por %p203, %p204
      %p206 = scmp.ne.s32.totalorder %s198, %s201
      %p207 = scmp.eq.s32.totalorder %s20, 0
      %p208 = por %p206, %p207
      %p209 = scmp.ne.s32.totalorder %s198, %s201
      %p210 = scmp.eq.s32.totalorder %s25, 3
      %p211 = por %p209, %p210
      %p212 = scmp.ne.s32.totalorder %s201, %s202
      %p213 = scmp.eq.s32.totalorder %s25, 0
      %p214 = por %p212, %p213
      %p215 = scmp.ne.s32.totalorder %s201, %s202
      %p216 = scmp.eq.s32.totalorder %s26, 3
      %p217 = por %p215, %p216
      %p219 = scmp.ne.s32.totalorder %s202, %s218
      %p220 = scmp.eq.s32.totalorder %s26, 0
      %p221 = por %p219, %p220
      %p222 = scmp.le.s32.totalorder 1, %s20
      %p223 = scmp.lt.s32.totalorder %s20, 5
      %p224 = pnand %p222, %p223
      %p225 = pneg %p224
      // Predicated region
      $region9: #{tpu_custom_call.1} parent=5 // pred_check
        _
      $region10: #{tpu_custom_call.1} parent=5 // pred_check_branch
        %227 = sbr.rel (%p224) target = $region12
      $region11: #{tpu_custom_call.1} parent=5 // pred_region
        %s228 = ssub.s32 %s20, 1
        // Predicated region
        $region13: #{tpu_custom_call.1} parent=11 // pred_check
          %p229 = pneg %p81
        $region14: #{tpu_custom_call.1} parent=11 // pred_check_branch
          %231 = sbr.rel (%p229) target = $region16
        $region15: #{tpu_custom_call.1} parent=11 // pred_region
          %s233 = ssub.s32 1024, 1024
          %234 = vsyncadd [#allocation8], %s233
          %s235 = sshll.u32 [#allocation7], 4
          %s236 = int_to_ptr.vmem [resolvable:$true] %s235
          %241 = dma.hbm_to_vmem [thread:$0]  %s1, 1024, %s236, [#allocation8], 64, 64, 4
        $region16: #{tpu_custom_call.1} parent=11 // pred_fallthru
          _
        // Predicated region
        $region17: #{tpu_custom_call.1} parent=11 // pred_check
          %p242 = pneg %p102
        $region18: #{tpu_custom_call.1} parent=11 // pred_check_branch
          %244 = sbr.rel (%p242) target = $region20
        $region19: #{tpu_custom_call.1} parent=11 // pred_region
          _
        $region20: #{tpu_custom_call.1} parent=11 // pred_fallthru
          _
        // Predicated region
        $region21: #{tpu_custom_call.1} parent=11 // pred_check
          %p245 = pneg %p123
        $region22: #{tpu_custom_call.1} parent=11 // pred_check_branch
          %247 = sbr.rel (%p245) target = $region24
        $region23: #{tpu_custom_call.1} parent=11 // pred_region
          _
        $region24: #{tpu_custom_call.1} parent=11 // pred_fallthru
          _
        // Predicated region
        $region25: #{tpu_custom_call.1} parent=11 // pred_check
          %p248 = pneg %p144
        $region26: #{tpu_custom_call.1} parent=11 // pred_check_branch
          %250 = sbr.rel (%p248) target = $region28
        $region27: #{tpu_custom_call.1} parent=11 // pred_region
          %s252 = ssub.s32 9216, 9216
          %253 = vsyncadd [#allocation8], %s252
          %s254 = sshll.u32 [#allocation9], 4
          %s255 = int_to_ptr.vmem [resolvable:$true] %s254
          %260 = dma.hbm_to_vmem [thread:$0]  %s4, 9216, %s255, [#allocation8], 64, 64, 4
        $region28: #{tpu_custom_call.1} parent=11 // pred_fallthru
          _
        // Predicated region
        $region29: #{tpu_custom_call.1} parent=11 // pred_check
          %p261 = pneg %p165
        $region30: #{tpu_custom_call.1} parent=11 // pred_check_branch
          %263 = sbr.rel (%p261) target = $region32
        $region31: #{tpu_custom_call.1} parent=11 // pred_region
          _
        $region32: #{tpu_custom_call.1} parent=11 // pred_fallthru
          _
        // Predicated region
        $region33: #{tpu_custom_call.1} parent=11 // pred_check
          %p264 = pneg %p186
        $region34: #{tpu_custom_call.1} parent=11 // pred_check_branch
          %266 = sbr.rel (%p264) target = $region36
        $region35: #{tpu_custom_call.1} parent=11 // pred_region
          _
        $region36: #{tpu_custom_call.1} parent=11 // pred_fallthru
          _
      $region12: #{tpu_custom_call.1} parent=5 // pred_fallthru
        _
      %p267 = scmp.lt.s32.totalorder %s20, 4
      // Predicated region
      $region37: #{tpu_custom_call.1} parent=5 // pred_check
        %p268 = pneg %p267
      $region38: #{tpu_custom_call.1} parent=5 // pred_check_branch
        %270 = sbr.rel (%p268) target = $region40
      $region39: #{tpu_custom_call.1} parent=5 // pred_region
        // Predicated region
        $region41: #{tpu_custom_call.1} parent=39 // pred_check
          %p271 = pneg %p54
        $region42: #{tpu_custom_call.1} parent=39 // pred_check_branch
          %273 = sbr.rel (%p271) target = $region44
        $region43: #{tpu_custom_call.1} parent=39 // pred_region
          %s274 = sand.u32 %s44, 1
          %s275 = scalar_lea.sflag [#allocation5], %s274
          %s276 = sand.u32 %s44, 1
          %s277 = smul.addr %s276, 160
          %s278 = scalar_lea.vmem [#allocation4], %s277
          %s280 = ssub.s32 2560, 2560
          %281 = vsyncadd %s275, %s280
          %s282 = smul.addr %s28, 20
          %s283 = smul.addr %s27, 40
          %s284 = sadd.s32 %s282, %s283
          %s285 = smul.addr %s284, 128
          %s286 = scalar_lea.hbm %s0, %s285
          %s287 = sshll.u32 %s278, 4
          %s288 = int_to_ptr.vmem [resolvable:$true] %s287
          %293 = dma.hbm_to_vmem [thread:$0]  %s286, 2560, %s288, %s275, 128, 128, 8
        $region44: #{tpu_custom_call.1} parent=39 // pred_fallthru
          _
      $region40: #{tpu_custom_call.1} parent=5 // pred_fallthru
        _
      %p294 = scmp.le.s32.totalorder 1, %s20
      %p295 = scmp.lt.s32.totalorder %s20, 5
      %p296 = pnand %p294, %p295
      %p297 = pneg %p296
      // Predicated region
      $region45: #{tpu_custom_call.1} parent=5 // pred_check
        _
      $region46: #{tpu_custom_call.1} parent=5 // pred_check_branch
        %299 = sbr.rel (%p296) target = $region48
      $region47: #{tpu_custom_call.1} parent=5 // pred_region
        %s300 = ssub.s32 %s20, 1
        %s301 = sand.u32 %s47, 1
        %s302 = scalar_lea.sflag [#allocation5], %s301
        %s303 = sand.u32 %s47, 1
        %s304 = smul.addr %s303, 160
        %s305 = scalar_lea.vmem [#allocation4], %s304
        // Predicated region
        $region49: #{tpu_custom_call.1} parent=47 // pred_check
          %p306 = pneg %p60
        $region50: #{tpu_custom_call.1} parent=47 // pred_check_branch
          %308 = sbr.rel (%p306) target = $region52
        $region51: #{tpu_custom_call.1} parent=47 // pred_region
          %309 = dma.done %s302, 2560
        $region52: #{tpu_custom_call.1} parent=47 // pred_fallthru
          _
        // Predicated region
        $region53: #{tpu_custom_call.1} parent=47 // pred_check
          %p310 = pneg %p81
        $region54: #{tpu_custom_call.1} parent=47 // pred_check_branch
          %312 = sbr.rel (%p310) target = $region56
        $region55: #{tpu_custom_call.1} parent=47 // pred_region
          %313 = dma.done [#allocation8], 1024
        $region56: #{tpu_custom_call.1} parent=47 // pred_fallthru
          _
        // Predicated region
        $region57: #{tpu_custom_call.1} parent=47 // pred_check
          %p314 = pneg %p144
        $region58: #{tpu_custom_call.1} parent=47 // pred_check_branch
          %316 = sbr.rel (%p314) target = $region60
        $region59: #{tpu_custom_call.1} parent=47 // pred_region
          %317 = dma.done [#allocation8], 9216
        $region60: #{tpu_custom_call.1} parent=47 // pred_fallthru
          _
        %s318 = sand.u32 %s47, 1
        %s319 = scalar_lea.sflag [#allocation5], %s318
        %s320 = sand.u32 %s47, 1
        %s321 = smul.addr %s320, 160
        %s322 = scalar_lea.vmem [#allocation4], %s321
        %p323 = pneg %p60
        %p324 = pneg %p57
        %p325 = pneg %p81
        %p326 = pneg %p78
        %p327 = pneg %p102
        %p328 = pneg %p99
        %p329 = pneg %p123
        %p330 = pneg %p120
        %p331 = pneg %p144
        %p332 = pneg %p141
        %p333 = pneg %p165
        %p334 = pneg %p162
        %p335 = pneg %p186
        %p336 = pneg %p183
        %p337 = pneg %p214
        %p338 = pneg %p211
        %s339 = sand.u32 %s201, 1
        %s340 = scalar_lea.sflag [#allocation6], %s339
        %s341 = sand.u32 %s201, 1
        %s342 = smul.addr %s341, 128
        %s343 = scalar_lea.vmem [#allocation10], %s342
        %s344 = smul.u32 16, %s30
        %v346 = vld [vmem:[%s305] sm:$0xff]
        %v347 = vld [vmem:[%s305 + $0x8] sm:$0xff]
        %v348 = vld [vmem:[%s305 + $0x10] sm:$0xff]
        %v349 = vld [vmem:[%s305 + $0x18] sm:$0xff]
        %v350 = vld [vmem:[%s305 + $0x20] sm:$0xff]
        %v351 = vld [vmem:[%s305 + $0x28] sm:$0xff]
        %v352 = vld [vmem:[%s305 + $0x30] sm:$0xff]
        %v353 = vld [vmem:[%s305 + $0x38] sm:$0xff]
        %v354 = vld [vmem:[%s305 + $0x40] sm:$0xff]
        %v355 = vld [vmem:[%s305 + $0x48] sm:$0xff]
        %v356 = vld [vmem:[%s305 + $0x50] sm:$0xff]
        %v357 = vld [vmem:[%s305 + $0x58] sm:$0xff]
        %v358 = vld [vmem:[%s305 + $0x60] sm:$0xff]
        %v359 = vld [vmem:[%s305 + $0x68] sm:$0xff]
        %v360 = vld [vmem:[%s305 + $0x70] sm:$0xff]
        %v361 = vld [vmem:[%s305 + $0x78] sm:$0xff]
        %v362 = vld [vmem:[%s305 + $0x80] sm:$0xff]
        %v363 = vld [vmem:[%s305 + $0x88] sm:$0xff]
        %v364 = vld [vmem:[%s305 + $0x90] sm:$0xff]
        %v365 = vld [vmem:[%s305 + $0x98] sm:$0xff]
        %v366 = vpack.c.bf16 %v347, %v346
        %v367 = vpack.c.bf16 %v349, %v348
        %v368 = vpack.c.bf16 %v351, %v350
        %v369 = vpack.c.bf16 %v353, %v352
        %v370 = vpack.c.bf16 %v355, %v354
        %v371 = vpack.c.bf16 %v357, %v356
        %v372 = vpack.c.bf16 %v359, %v358
        %v373 = vpack.c.bf16 %v361, %v360
        %v374 = vpack.c.bf16 %v363, %v362
        %v375 = vpack.c.bf16 %v365, %v364
        %v376 = vld [vmem:[#allocation7] sm:$0xf]
        %v377 = vld [vmem:[#allocation7 + $0x4] sm:$0xf]
        %v378 = vld [vmem:[#allocation7 + $0x8] sm:$0xf]
        %v379 = vld [vmem:[#allocation7 + $0xc] sm:$0xf]
        %v380 = vld [vmem:[#allocation7 + $0x10] sm:$0xf]
        %v381 = vld [vmem:[#allocation7 + $0x14] sm:$0xf]
        %v382 = vld [vmem:[#allocation7 + $0x18] sm:$0xf]
        %v383 = vld [vmem:[#allocation7 + $0x1c] sm:$0xf]
        %v384 = vld [vmem:[#allocation7 + $0x20] sm:$0xf]
        %v385 = vld [vmem:[#allocation7 + $0x24] sm:$0xf]
        %v386 = vld [vmem:[#allocation7 + $0x28] sm:$0xf]
        %v387 = vld [vmem:[#allocation7 + $0x2c] sm:$0xf]
        %v388 = vld [vmem:[#allocation7 + $0x30] sm:$0xf]
        %v389 = vld [vmem:[#allocation7 + $0x34] sm:$0xf]
        %v390 = vld [vmem:[#allocation7 + $0x38] sm:$0xf]
        %v391 = vld [vmem:[#allocation7 + $0x3c] sm:$0xf]
        %v408 = vunpack.c.l.b16 %v376
        %v409 = vunpack.c.l.b16 %v377
        %v410 = vunpack.c.l.b16 %v378
        %v411 = vunpack.c.l.b16 %v379
        %v412 = vunpack.c.l.b16 %v380
        %v413 = vunpack.c.l.b16 %v381
        %v414 = vunpack.c.l.b16 %v382
        %v415 = vunpack.c.l.b16 %v383
        %v416 = vunpack.c.l.b16 %v384
        %v417 = vunpack.c.l.b16 %v385
        %v418 = vunpack.c.l.b16 %v386
        %v419 = vunpack.c.l.b16 %v387
        %v420 = vunpack.c.l.b16 %v388
        %v421 = vunpack.c.l.b16 %v389
        %v422 = vunpack.c.l.b16 %v390
        %v423 = vunpack.c.l.b16 %v391
        %v424 = vpack.c.b16 %v409, %v408
        %v425 = vpack.c.b16 %v411, %v410
        %v426 = vpack.c.b16 %v413, %v412
        %v427 = vpack.c.b16 %v415, %v414
        %v428 = vpack.c.b16 %v417, %v416
        %v429 = vpack.c.b16 %v419, %v418
        %v430 = vpack.c.b16 %v421, %v420
        %v431 = vpack.c.b16 %v423, %v422
        %440 = vmatprep.subr.bf16.mxu0 0
        %441 = vmatpush1.bf16.msra.mxu0 %v424
        %442 = vmatprep.subr.bf16.mxu0 0
        %443 = vmatpush1.bf16.msra.mxu0 %v425
        %444 = vmatprep.subr.bf16.mxu0 0
        %445 = vmatpush1.bf16.msra.mxu0 %v426
        %446 = vmatprep.subr.bf16.mxu0 0
        %447 = vmatpush1.bf16.msra.mxu0 %v427
        %448 = vmatprep.subr.bf16.mxu0 0
        %449 = vmatpush1.bf16.msra.mxu0 %v428
        %450 = vmatprep.subr.bf16.mxu0 0
        %451 = vmatpush1.bf16.msra.mxu0 %v429
        %452 = vmatprep.subr.bf16.mxu0 0
        %453 = vmatpush1.bf16.msra.mxu0 %v430
        %454 = vmatprep.subr.bf16.mxu0 0
        %455 = vmatpush1.bf16.msra.mxu0 %v431
        %456 = vmatprep.subr.bf16.mxu0 0
        %457 = vmatpush1.bf16.msra.mxu0 0
        %458 = vmatprep.subr.bf16.mxu0 0
        %459 = vmatpush1.bf16.msra.mxu0 0
        %460 = vmatprep.subr.bf16.mxu0 0
        %461 = vmatpush1.bf16.msra.mxu0 0
        %462 = vmatprep.subr.bf16.mxu0 0
        %463 = vmatpush1.bf16.msra.mxu0 0
        %464 = vmatprep.subr.bf16.mxu0 0
        %465 = vmatpush1.bf16.msra.mxu0 0
        %466 = vmatprep.subr.bf16.mxu0 0
        %467 = vmatpush1.bf16.msra.mxu0 0
        %468 = vmatprep.subr.bf16.mxu0 0
        %469 = vmatpush1.bf16.msra.mxu0 0
        %470 = vmatprep.subr.bf16.mxu0 0
        %471 = vmatpush1.bf16.msra.mxu0 0
        %472 = vmatprep.mubr.bf16.mxu0 0
        %473 = vmatmul.mubr.bf16.gmra.mrb[0].mxu0 %v366
        %v474 = vpop.f32.mrb[0].mxu0
        %v475 = vadd.f32 0.0, %v474
        %v476 = vpop.f32.mrb[0].mxu0
        %v477 = vpop.f32.mrb[0].mxu0
        %v478 = vadd.f32 0.0, %v477
        %v479 = vpop.f32.mrb[0].mxu0
        %480 = vmatprep.mubr.bf16.mxu0 0
        %481 = vmatmul.mubr.bf16.gmra.mrb[0].mxu0 %v367
        %v482 = vpop.f32.mrb[0].mxu0
        %v483 = vadd.f32 0.0, %v482
        %v484 = vpop.f32.mrb[0].mxu0
        %v485 = vpop.f32.mrb[0].mxu0
        %v486 = vadd.f32 0.0, %v485
        %v487 = vpop.f32.mrb[0].mxu0
        %488 = vmatprep.mubr.bf16.mxu0 0
        %489 = vmatmul.mubr.bf16.gmra.mrb[0].mxu0 %v368
        %v490 = vpop.f32.mrb[0].mxu0
        %v491 = vadd.f32 0.0, %v490
        %v492 = vpop.f32.mrb[0].mxu0
        %v493 = vpop.f32.mrb[0].mxu0
        %v494 = vadd.f32 0.0, %v493
        %v495 = vpop.f32.mrb[0].mxu0
        %496 = vmatprep.mubr.bf16.mxu0 0
        %497 = vmatmul.mubr.bf16.gmra.mrb[0].mxu0 %v369
        %v498 = vpop.f32.mrb[0].mxu0
        %v499 = vadd.f32 0.0, %v498
        %v500 = vpop.f32.mrb[0].mxu0
        %v501 = vpop.f32.mrb[0].mxu0
        %v502 = vadd.f32 0.0, %v501
        %v503 = vpop.f32.mrb[0].mxu0
        %504 = vmatprep.mubr.bf16.mxu0 0
        %505 = vmatmul.mubr.bf16.gmra.mrb[0].mxu0 %v370
        %v506 = vpop.f32.mrb[0].mxu0
        %v507 = vadd.f32 0.0, %v506
        %v508 = vpop.f32.mrb[0].mxu0
        %v509 = vpop.f32.mrb[0].mxu0
        %v510 = vadd.f32 0.0, %v509
        %v511 = vpop.f32.mrb[0].mxu0
        %512 = vmatprep.mubr.bf16.mxu0 0
        %513 = vmatmul.mubr.bf16.gmra.mrb[0].mxu0 %v371
        %v514 = vpop.f32.mrb[0].mxu0
        %v515 = vadd.f32 0.0, %v514
        %v516 = vpop.f32.mrb[0].mxu0
        %v517 = vpop.f32.mrb[0].mxu0
        %v518 = vadd.f32 0.0, %v517
        %v519 = vpop.f32.mrb[0].mxu0
        %520 = vmatprep.mubr.bf16.mxu0 0
        %521 = vmatmul.mubr.bf16.gmra.mrb[0].mxu0 %v372
        %v522 = vpop.f32.mrb[0].mxu0
        %v523 = vadd.f32 0.0, %v522
        %v524 = vpop.f32.mrb[0].mxu0
        %v525 = vpop.f32.mrb[0].mxu0
        %v526 = vadd.f32 0.0, %v525
        %v527 = vpop.f32.mrb[0].mxu0
        %528 = vmatprep.mubr.bf16.mxu0 0
        %529 = vmatmul.mubr.bf16.gmra.mrb[0].mxu0 %v373
        %v530 = vpop.f32.mrb[0].mxu0
        %v531 = vadd.f32 0.0, %v530
        %v532 = vpop.f32.mrb[0].mxu0
        %v533 = vpop.f32.mrb[0].mxu0
        %v534 = vadd.f32 0.0, %v533
        %v535 = vpop.f32.mrb[0].mxu0
        %536 = vmatprep.mubr.bf16.mxu0 0
        %537 = vmatmul.mubr.bf16.gmra.mrb[0].mxu0 %v374
        %v538 = vpop.f32.mrb[0].mxu0
        %v539 = vadd.f32 0.0, %v538
        %v540 = vpop.f32.mrb[0].mxu0
        %v541 = vpop.f32.mrb[0].mxu0
        %v542 = vadd.f32 0.0, %v541
        %v543 = vpop.f32.mrb[0].mxu0
        %544 = vmatprep.mubr.bf16.mxu0 0
        %545 = vmatmul.mubr.bf16.gmra.mrb[0].mxu0 %v375
        %v546 = vpop.f32.mrb[0].mxu0
        %v547 = vadd.f32 0.0, %v546
        %v548 = vpop.f32.mrb[0].mxu0
        %v549 = vpop.f32.mrb[0].mxu0
        %v550 = vadd.f32 0.0, %v549
        %v551 = vpop.f32.mrb[0].mxu0
        %552 = vdwg.mxu0
        %v553 = vld [vmem:[%s2] sm:$0x1]
        %v555 = vlaneseq
        %v556 = vshrl.u32 %v555, 7
        %v557 = vsub.s32 0, %v556
        %v558 = vrot.slane %v553, %v557
        %v560 = vmul.f32 %v475, %v558
        %v561 = vmul.f32 %v478, %v558
        %v562 = vmul.f32 %v483, %v558
        %v563 = vmul.f32 %v486, %v558
        %v564 = vmul.f32 %v491, %v558
        %v565 = vmul.f32 %v494, %v558
        %v566 = vmul.f32 %v499, %v558
        %v567 = vmul.f32 %v502, %v558
        %v568 = vmul.f32 %v507, %v558
        %v569 = vmul.f32 %v510, %v558
        %v570 = vmul.f32 %v515, %v558
        %v571 = vmul.f32 %v518, %v558
        %v572 = vmul.f32 %v523, %v558
        %v573 = vmul.f32 %v526, %v558
        %v574 = vmul.f32 %v531, %v558
        %v575 = vmul.f32 %v534, %v558
        %v576 = vmul.f32 %v539, %v558
        %v577 = vmul.f32 %v542, %v558
        %v578 = vmul.f32 %v547, %v558
        %v579 = vmul.f32 %v550, %v558
        %v580 = vld [vmem:[%s3] sm:$0x1]
        %v582 = vlaneseq
        %v583 = vshrl.u32 %v582, 7
        %v584 = vsub.s32 0, %v583
        %v585 = vrot.slane %v580, %v584
        %v587 = vadd.f32 %v560, %v585
        %v588 = vadd.f32 %v561, %v585
        %v589 = vadd.f32 %v562, %v585
        %v590 = vadd.f32 %v563, %v585
        %v591 = vadd.f32 %v564, %v585
        %v592 = vadd.f32 %v565, %v585
        %v593 = vadd.f32 %v566, %v585
        %v594 = vadd.f32 %v567, %v585
        %v595 = vadd.f32 %v568, %v585
        %v596 = vadd.f32 %v569, %v585
        %v597 = vadd.f32 %v570, %v585
        %v598 = vadd.f32 %v571, %v585
        %v599 = vadd.f32 %v572, %v585
        %v600 = vadd.f32 %v573, %v585
        %v601 = vadd.f32 %v574, %v585
        %v602 = vadd.f32 %v575, %v585
        %v603 = vadd.f32 %v576, %v585
        %v604 = vadd.f32 %v577, %v585
        %v605 = vadd.f32 %v578, %v585
        %v606 = vadd.f32 %v579, %v585
        %v607 = vxor.u32 %v587, 2147483648
        %v608 = vxor.u32 %v588, 2147483648
        %v609 = vxor.u32 %v589, 2147483648
        %v610 = vxor.u32 %v590, 2147483648
        %v611 = vxor.u32 %v591, 2147483648
        %v612 = vxor.u32 %v592, 2147483648
        %v613 = vxor.u32 %v593, 2147483648
        %v614 = vxor.u32 %v594, 2147483648
        %v615 = vxor.u32 %v595, 2147483648
        %v616 = vxor.u32 %v596, 2147483648
        %v617 = vxor.u32 %v597, 2147483648
        %v618 = vxor.u32 %v598, 2147483648
        %v619 = vxor.u32 %v599, 2147483648
        %v620 = vxor.u32 %v600, 2147483648
        %v621 = vxor.u32 %v601, 2147483648
        %v622 = vxor.u32 %v602, 2147483648
        %v623 = vxor.u32 %v603, 2147483648
        %v624 = vxor.u32 %v604, 2147483648
        %v625 = vxor.u32 %v605, 2147483648
        %v626 = vxor.u32 %v606, 2147483648
        %v627 = vmul.f32 %v607, 1.442695
        %v628 = vpow.pop %v627
        %v629 = vmul.f32 %v608, 1.442695
        %v630 = vpow.pop %v629
        %v631 = vmul.f32 %v609, 1.442695
        %v632 = vpow.pop %v631
        %v633 = vmul.f32 %v610, 1.442695
        %v634 = vpow.pop %v633
        %v635 = vmul.f32 %v611, 1.442695
        %v636 = vpow.pop %v635
        %v637 = vmul.f32 %v612, 1.442695
        %v638 = vpow.pop %v637
        %v639 = vmul.f32 %v613, 1.442695
        %v640 = vpow.pop %v639
        %v641 = vmul.f32 %v614, 1.442695
        %v642 = vpow.pop %v641
        %v643 = vmul.f32 %v615, 1.442695
        %v644 = vpow.pop %v643
        %v645 = vmul.f32 %v616, 1.442695
        %v646 = vpow.pop %v645
        %v647 = vmul.f32 %v617, 1.442695
        %v648 = vpow.pop %v647
        %v649 = vmul.f32 %v618, 1.442695
        %v650 = vpow.pop %v649
        %v651 = vmul.f32 %v619, 1.442695
        %v652 = vpow.pop %v651
        %v653 = vmul.f32 %v620, 1.442695
        %v654 = vpow.pop %v653
        %v655 = vmul.f32 %v621, 1.442695
        %v656 = vpow.pop %v655
        %v657 = vmul.f32 %v622, 1.442695
        %v658 = vpow.pop %v657
        %v659 = vmul.f32 %v623, 1.442695
        %v660 = vpow.pop %v659
        %v661 = vmul.f32 %v624, 1.442695
        %v662 = vpow.pop %v661
        %v663 = vmul.f32 %v625, 1.442695
        %v664 = vpow.pop %v663
        %v665 = vmul.f32 %v626, 1.442695
        %v666 = vpow.pop %v665
        %v667 = vadd.f32 %v628, 1.0
        %v668 = vadd.f32 %v630, 1.0
        %v669 = vadd.f32 %v632, 1.0
        %v670 = vadd.f32 %v634, 1.0
        %v671 = vadd.f32 %v636, 1.0
        %v672 = vadd.f32 %v638, 1.0
        %v673 = vadd.f32 %v640, 1.0
        %v674 = vadd.f32 %v642, 1.0
        %v675 = vadd.f32 %v644, 1.0
        %v676 = vadd.f32 %v646, 1.0
        %v677 = vadd.f32 %v648, 1.0
        %v678 = vadd.f32 %v650, 1.0
        %v679 = vadd.f32 %v652, 1.0
        %v680 = vadd.f32 %v654, 1.0
        %v681 = vadd.f32 %v656, 1.0
        %v682 = vadd.f32 %v658, 1.0
        %v683 = vadd.f32 %v660, 1.0
        %v684 = vadd.f32 %v662, 1.0
        %v685 = vadd.f32 %v664, 1.0
        %v686 = vadd.f32 %v666, 1.0
        %v687 = vrcp.pop %v667
        %v688 = vmul.f32 1.0, %v687
        %v689 = vrcp.pop %v668
        %v690 = vmul.f32 1.0, %v689
        %v691 = vrcp.pop %v669
        %v692 = vmul.f32 1.0, %v691
        %v693 = vrcp.pop %v670
        %v694 = vmul.f32 1.0, %v693
        %v695 = vrcp.pop %v671
        %v696 = vmul.f32 1.0, %v695
        %v697 = vrcp.pop %v672
        %v698 = vmul.f32 1.0, %v697
        %v699 = vrcp.pop %v673
        %v700 = vmul.f32 1.0, %v699
        %v701 = vrcp.pop %v674
        %v702 = vmul.f32 1.0, %v701
        %v703 = vrcp.pop %v675
        %v704 = vmul.f32 1.0, %v703
        %v705 = vrcp.pop %v676
        %v706 = vmul.f32 1.0, %v705
        %v707 = vrcp.pop %v677
        %v708 = vmul.f32 1.0, %v707
        %v709 = vrcp.pop %v678
        %v710 = vmul.f32 1.0, %v709
        %v711 = vrcp.pop %v679
        %v712 = vmul.f32 1.0, %v711
        %v713 = vrcp.pop %v680
        %v714 = vmul.f32 1.0, %v713
        %v715 = vrcp.pop %v681
        %v716 = vmul.f32 1.0, %v715
        %v717 = vrcp.pop %v682
        %v718 = vmul.f32 1.0, %v717
        %v719 = vrcp.pop %v683
        %v720 = vmul.f32 1.0, %v719
        %v721 = vrcp.pop %v684
        %v722 = vmul.f32 1.0, %v721
        %v723 = vrcp.pop %v685
        %v724 = vmul.f32 1.0, %v723
        %v725 = vrcp.pop %v686
        %v726 = vmul.f32 1.0, %v725
        %v727 = vmul.f32 %v587, %v688
        %v728 = vmul.f32 %v588, %v690
        %v729 = vmul.f32 %v589, %v692
        %v730 = vmul.f32 %v590, %v694
        %v731 = vmul.f32 %v591, %v696
        %v732 = vmul.f32 %v592, %v698
        %v733 = vmul.f32 %v593, %v700
        %v734 = vmul.f32 %v594, %v702
        %v735 = vmul.f32 %v595, %v704
        %v736 = vmul.f32 %v596, %v706
        %v737 = vmul.f32 %v597, %v708
        %v738 = vmul.f32 %v598, %v710
        %v739 = vmul.f32 %v599, %v712
        %v740 = vmul.f32 %v600, %v714
        %v741 = vmul.f32 %v601, %v716
        %v742 = vmul.f32 %v602, %v718
        %v743 = vmul.f32 %v603, %v720
        %v744 = vmul.f32 %v604, %v722
        %v745 = vmul.f32 %v605, %v724
        %v746 = vmul.f32 %v606, %v726
        %v747 = vlaneseq
        %v748 = vshrl.u32 %v747, 7
        %v749 = vadd.s32 %v748, 8
        %v750 = vadd.s32 %v748, 16
        %v751 = vadd.s32 %v748, 24
        %v752 = vadd.s32 %v748, 32
        %v753 = vadd.s32 %v748, 40
        %v754 = vadd.s32 %v748, 48
        %v755 = vadd.s32 %v748, 56
        %v756 = vadd.s32 %v748, 64
        %v757 = vadd.s32 %v748, 72
        %v758 = vadd.s32 %v748, 80
        %v759 = vadd.s32 %v748, 88
        %v760 = vadd.s32 %v748, 96
        %v761 = vadd.s32 %v748, 104
        %v762 = vadd.s32 %v748, 112
        %v763 = vadd.s32 %v748, 120
        %v764 = vadd.s32 %v748, 128
        %v765 = vadd.s32 %v748, 136
        %v766 = vadd.s32 %v748, 144
        %v767 = vadd.s32 %v748, 152
        %vm768 = vcmp.lt.s32.totalorder %v748, 16
        %vm769 = vcmp.lt.s32.totalorder %v749, 16
        %vm770 = vcmp.lt.s32.totalorder %v750, 16
        %vm771 = vcmp.lt.s32.totalorder %v751, 16
        %vm772 = vcmp.lt.s32.totalorder %v752, 16
        %vm773 = vcmp.lt.s32.totalorder %v753, 16
        %vm774 = vcmp.lt.s32.totalorder %v754, 16
        %vm775 = vcmp.lt.s32.totalorder %v755, 16
        %vm776 = vcmp.lt.s32.totalorder %v756, 16
        %vm777 = vcmp.lt.s32.totalorder %v757, 16
        %vm778 = vcmp.lt.s32.totalorder %v758, 16
        %vm779 = vcmp.lt.s32.totalorder %v759, 16
        %vm780 = vcmp.lt.s32.totalorder %v760, 16
        %vm781 = vcmp.lt.s32.totalorder %v761, 16
        %vm782 = vcmp.lt.s32.totalorder %v762, 16
        %vm783 = vcmp.lt.s32.totalorder %v763, 16
        %vm784 = vcmp.lt.s32.totalorder %v764, 16
        %vm785 = vcmp.lt.s32.totalorder %v765, 16
        %vm786 = vcmp.lt.s32.totalorder %v766, 16
        %vm787 = vcmp.lt.s32.totalorder %v767, 16
        %p788 = scmp.eq.s32.totalorder %s30, 0
        %s789 = scalar_select %p788, 1, 0
        %v790 = vstv %s789
        %vm791 = vcmp.eq.s32.totalorder %v790, 1
        %vm792 = vmand %vm768, %vm791
        %vm793 = vmand %vm769, %vm791
        %vm794 = vmand %vm770, %vm791
        %vm795 = vmand %vm771, %vm791
        %vm796 = vmand %vm772, %vm791
        %vm797 = vmand %vm773, %vm791
        %vm798 = vmand %vm774, %vm791
        %vm799 = vmand %vm775, %vm791
        %vm800 = vmand %vm776, %vm791
        %vm801 = vmand %vm777, %vm791
        %vm802 = vmand %vm778, %vm791
        %vm803 = vmand %vm779, %vm791
        %vm804 = vmand %vm780, %vm791
        %vm805 = vmand %vm781, %vm791
        %vm806 = vmand %vm782, %vm791
        %vm807 = vmand %vm783, %vm791
        %vm808 = vmand %vm784, %vm791
        %vm809 = vmand %vm785, %vm791
        %vm810 = vmand %vm786, %vm791
        %vm811 = vmand %vm787, %vm791
        %vm812 = vcmp.ge.s32.totalorder %v748, 144
        %vm813 = vcmp.ge.s32.totalorder %v749, 144
        %vm814 = vcmp.ge.s32.totalorder %v750, 144
        %vm815 = vcmp.ge.s32.totalorder %v751, 144
        %vm816 = vcmp.ge.s32.totalorder %v752, 144
        %vm817 = vcmp.ge.s32.totalorder %v753, 144
        %vm818 = vcmp.ge.s32.totalorder %v754, 144
        %vm819 = vcmp.ge.s32.totalorder %v755, 144
        %vm820 = vcmp.ge.s32.totalorder %v756, 144
        %vm821 = vcmp.ge.s32.totalorder %v757, 144
        %vm822 = vcmp.ge.s32.totalorder %v758, 144
        %vm823 = vcmp.ge.s32.totalorder %v759, 144
        %vm824 = vcmp.ge.s32.totalorder %v760, 144
        %vm825 = vcmp.ge.s32.totalorder %v761, 144
        %vm826 = vcmp.ge.s32.totalorder %v762, 144
        %vm827 = vcmp.ge.s32.totalorder %v763, 144
        %vm828 = vcmp.ge.s32.totalorder %v764, 144
        %vm829 = vcmp.ge.s32.totalorder %v765, 144
        %vm830 = vcmp.ge.s32.totalorder %v766, 144
        %vm831 = vcmp.ge.s32.totalorder %v767, 144
        %p832 = scmp.eq.s32.totalorder %s30, 1
        %s833 = scalar_select %p832, 1, 0
        %v834 = vstv %s833
        %vm835 = vcmp.eq.s32.totalorder %v834, 1
        %vm836 = vmand %vm812, %vm835
        %vm837 = vmand %vm813, %vm835
        %vm838 = vmand %vm814, %vm835
        %vm839 = vmand %vm815, %vm835
        %vm840 = vmand %vm816, %vm835
        %vm841 = vmand %vm817, %vm835
        %vm842 = vmand %vm818, %vm835
        %vm843 = vmand %vm819, %vm835
        %vm844 = vmand %vm820, %vm835
        %vm845 = vmand %vm821, %vm835
        %vm846 = vmand %vm822, %vm835
        %vm847 = vmand %vm823, %vm835
        %vm848 = vmand %vm824, %vm835
        %vm849 = vmand %vm825, %vm835
        %vm850 = vmand %vm826, %vm835
        %vm851 = vmand %vm827, %vm835
        %vm852 = vmand %vm828, %vm835
        %vm853 = vmand %vm829, %vm835
        %vm854 = vmand %vm830, %vm835
        %vm855 = vmand %vm831, %vm835
        %vm856 = vmor %vm792, %vm836
        %vm857 = vmor %vm793, %vm837
        %vm858 = vmor %vm794, %vm838
        %vm859 = vmor %vm795, %vm839
        %vm860 = vmor %vm796, %vm840
        %vm861 = vmor %vm797, %vm841
        %vm862 = vmor %vm798, %vm842
        %vm863 = vmor %vm799, %vm843
        %vm864 = vmor %vm800, %vm844
        %vm865 = vmor %vm801, %vm845
        %vm866 = vmor %vm802, %vm846
        %vm867 = vmor %vm803, %vm847
        %vm868 = vmor %vm804, %vm848
        %vm869 = vmor %vm805, %vm849
        %vm870 = vmor %vm806, %vm850
        %vm871 = vmor %vm807, %vm851
        %vm872 = vmor %vm808, %vm852
        %vm873 = vmor %vm809, %vm853
        %vm874 = vmor %vm810, %vm854
        %vm875 = vmor %vm811, %vm855
        %v876 = vsel %vm856, 1, 0
        %v877 = vsel %vm857, 1, 0
        %v878 = vsel %vm858, 1, 0
        %v879 = vsel %vm859, 1, 0
        %v880 = vsel %vm860, 1, 0
        %v881 = vsel %vm861, 1, 0
        %v882 = vsel %vm862, 1, 0
        %v883 = vsel %vm863, 1, 0
        %v884 = vsel %vm864, 1, 0
        %v885 = vsel %vm865, 1, 0
        %v886 = vsel %vm866, 1, 0
        %v887 = vsel %vm867, 1, 0
        %v888 = vsel %vm868, 1, 0
        %v889 = vsel %vm869, 1, 0
        %v890 = vsel %vm870, 1, 0
        %v891 = vsel %vm871, 1, 0
        %v892 = vsel %vm872, 1, 0
        %v893 = vsel %vm873, 1, 0
        %v894 = vsel %vm874, 1, 0
        %v895 = vsel %vm875, 1, 0
        %vm896 = vcmp.eq.s32.totalorder %v876, 1
        %vm897 = vcmp.eq.s32.totalorder %v877, 1
        %vm898 = vcmp.eq.s32.totalorder %v878, 1
        %vm899 = vcmp.eq.s32.totalorder %v879, 1
        %vm900 = vcmp.eq.s32.totalorder %v880, 1
        %vm901 = vcmp.eq.s32.totalorder %v881, 1
        %vm902 = vcmp.eq.s32.totalorder %v882, 1
        %vm903 = vcmp.eq.s32.totalorder %v883, 1
        %vm904 = vcmp.eq.s32.totalorder %v884, 1
        %vm905 = vcmp.eq.s32.totalorder %v885, 1
        %vm906 = vcmp.eq.s32.totalorder %v886, 1
        %vm907 = vcmp.eq.s32.totalorder %v887, 1
        %vm908 = vcmp.eq.s32.totalorder %v888, 1
        %vm909 = vcmp.eq.s32.totalorder %v889, 1
        %vm910 = vcmp.eq.s32.totalorder %v890, 1
        %vm911 = vcmp.eq.s32.totalorder %v891, 1
        %vm912 = vcmp.eq.s32.totalorder %v892, 1
        %vm913 = vcmp.eq.s32.totalorder %v893, 1
        %vm914 = vcmp.eq.s32.totalorder %v894, 1
        %vm915 = vcmp.eq.s32.totalorder %v895, 1
        %v916 = vsel %vm896, 0.0, %v727
        %v917 = vsel %vm897, 0.0, %v728
        %v918 = vsel %vm898, 0.0, %v729
        %v919 = vsel %vm899, 0.0, %v730
        %v920 = vsel %vm900, 0.0, %v731
        %v921 = vsel %vm901, 0.0, %v732
        %v922 = vsel %vm902, 0.0, %v733
        %v923 = vsel %vm903, 0.0, %v734
        %v924 = vsel %vm904, 0.0, %v735
        %v925 = vsel %vm905, 0.0, %v736
        %v926 = vsel %vm906, 0.0, %v737
        %v927 = vsel %vm907, 0.0, %v738
        %v928 = vsel %vm908, 0.0, %v739
        %v929 = vsel %vm909, 0.0, %v740
        %v930 = vsel %vm910, 0.0, %v741
        %v931 = vsel %vm911, 0.0, %v742
        %v932 = vsel %vm912, 0.0, %v743
        %v933 = vsel %vm913, 0.0, %v744
        %v934 = vsel %vm914, 0.0, %v745
        %v935 = vsel %vm915, 0.0, %v746
        %936 = vst [vmem:[#allocation2] sm:$0x1] 0.0
        %937 = vst [vmem:[#allocation2 + $0xa1] sm:$0x1] 0.0
        %938 = vst [vmem:[#allocation2 + $0x1] sm:$0xff] %v916
        %939 = vst [vmem:[#allocation2 + $0x9] sm:$0xff] %v917
        %940 = vst [vmem:[#allocation2 + $0x11] sm:$0xff] %v918
        %941 = vst [vmem:[#allocation2 + $0x19] sm:$0xff] %v919
        %942 = vst [vmem:[#allocation2 + $0x21] sm:$0xff] %v920
        %943 = vst [vmem:[#allocation2 + $0x29] sm:$0xff] %v921
        %944 = vst [vmem:[#allocation2 + $0x31] sm:$0xff] %v922
        %945 = vst [vmem:[#allocation2 + $0x39] sm:$0xff] %v923
        %946 = vst [vmem:[#allocation2 + $0x41] sm:$0xff] %v924
        %947 = vst [vmem:[#allocation2 + $0x49] sm:$0xff] %v925
        %948 = vst [vmem:[#allocation2 + $0x51] sm:$0xff] %v926
        %949 = vst [vmem:[#allocation2 + $0x59] sm:$0xff] %v927
        %950 = vst [vmem:[#allocation2 + $0x61] sm:$0xff] %v928
        %951 = vst [vmem:[#allocation2 + $0x69] sm:$0xff] %v929
        %952 = vst [vmem:[#allocation2 + $0x71] sm:$0xff] %v930
        %953 = vst [vmem:[#allocation2 + $0x79] sm:$0xff] %v931
        %954 = vst [vmem:[#allocation2 + $0x81] sm:$0xff] %v932
        %955 = vst [vmem:[#allocation2 + $0x89] sm:$0xff] %v933
        %956 = vst [vmem:[#allocation2 + $0x91] sm:$0xff] %v934
        %957 = vst [vmem:[#allocation2 + $0x99] sm:$0xff] %v935
        %vm958 = vcmp.lt.s32.totalorder %v748, 0
        %v959 = vsub.s32 0, %v748
        %v960 = vsel %vm958, %v959, %v748
        %v961 = vshrl.u32 %v960, 4
        %v962 = vand.u32 %v960, 15
        %v963 = vsub.s32 0, %v962
        %v964 = vsel %vm958, %v963, %v962
        %vm965 = vcmp.lt.s32.totalorder %v749, 0
        %v966 = vsub.s32 0, %v749
        %v967 = vsel %vm965, %v966, %v749
        %v968 = vshrl.u32 %v967, 4
        %v969 = vand.u32 %v967, 15
        %v970 = vsub.s32 0, %v969
        %v971 = vsel %vm965, %v970, %v969
        %vm972 = vcmp.lt.s32.totalorder %v750, 0
        %v973 = vsub.s32 0, %v750
        %v974 = vsel %vm972, %v973, %v750
        %v975 = vshrl.u32 %v974, 4
        %v976 = vand.u32 %v974, 15
        %v977 = vsub.s32 0, %v976
        %v978 = vsel %vm972, %v977, %v976
        %vm979 = vcmp.lt.s32.totalorder %v751, 0
        %v980 = vsub.s32 0, %v751
        %v981 = vsel %vm979, %v980, %v751
        %v982 = vshrl.u32 %v981, 4
        %v983 = vand.u32 %v981, 15
        %v984 = vsub.s32 0, %v983
        %v985 = vsel %vm979, %v984, %v983
        %vm986 = vcmp.lt.s32.totalorder %v752, 0
        %v987 = vsub.s32 0, %v752
        %v988 = vsel %vm986, %v987, %v752
        %v989 = vshrl.u32 %v988, 4
        %v990 = vand.u32 %v988, 15
        %v991 = vsub.s32 0, %v990
        %v992 = vsel %vm986, %v991, %v990
        %vm993 = vcmp.lt.s32.totalorder %v753, 0
        %v994 = vsub.s32 0, %v753
        %v995 = vsel %vm993, %v994, %v753
        %v996 = vshrl.u32 %v995, 4
        %v997 = vand.u32 %v995, 15
        %v998 = vsub.s32 0, %v997
        %v999 = vsel %vm993, %v998, %v997
        %vm1000 = vcmp.lt.s32.totalorder %v754, 0
        %v1001 = vsub.s32 0, %v754
        %v1002 = vsel %vm1000, %v1001, %v754
        %v1003 = vshrl.u32 %v1002, 4
        %v1004 = vand.u32 %v1002, 15
        %v1005 = vsub.s32 0, %v1004
        %v1006 = vsel %vm1000, %v1005, %v1004
        %vm1007 = vcmp.lt.s32.totalorder %v755, 0
        %v1008 = vsub.s32 0, %v755
        %v1009 = vsel %vm1007, %v1008, %v755
        %v1010 = vshrl.u32 %v1009, 4
        %v1011 = vand.u32 %v1009, 15
        %v1012 = vsub.s32 0, %v1011
        %v1013 = vsel %vm1007, %v1012, %v1011
        %vm1014 = vcmp.lt.s32.totalorder %v756, 0
        %v1015 = vsub.s32 0, %v756
        %v1016 = vsel %vm1014, %v1015, %v756
        %v1017 = vshrl.u32 %v1016, 4
        %v1018 = vand.u32 %v1016, 15
        %v1019 = vsub.s32 0, %v1018
        %v1020 = vsel %vm1014, %v1019, %v1018
        %vm1021 = vcmp.lt.s32.totalorder %v757, 0
        %v1022 = vsub.s32 0, %v757
        %v1023 = vsel %vm1021, %v1022, %v757
        %v1024 = vshrl.u32 %v1023, 4
        %v1025 = vand.u32 %v1023, 15
        %v1026 = vsub.s32 0, %v1025
        %v1027 = vsel %vm1021, %v1026, %v1025
        %vm1028 = vcmp.lt.s32.totalorder %v758, 0
        %v1029 = vsub.s32 0, %v758
        %v1030 = vsel %vm1028, %v1029, %v758
        %v1031 = vshrl.u32 %v1030, 4
        %v1032 = vand.u32 %v1030, 15
        %v1033 = vsub.s32 0, %v1032
        %v1034 = vsel %vm1028, %v1033, %v1032
        %vm1035 = vcmp.lt.s32.totalorder %v759, 0
        %v1036 = vsub.s32 0, %v759
        %v1037 = vsel %vm1035, %v1036, %v759
        %v1038 = vshrl.u32 %v1037, 4
        %v1039 = vand.u32 %v1037, 15
        %v1040 = vsub.s32 0, %v1039
        %v1041 = vsel %vm1035, %v1040, %v1039
        %vm1042 = vcmp.lt.s32.totalorder %v760, 0
        %v1043 = vsub.s32 0, %v760
        %v1044 = vsel %vm1042, %v1043, %v760
        %v1045 = vshrl.u32 %v1044, 4
        %v1046 = vand.u32 %v1044, 15
        %v1047 = vsub.s32 0, %v1046
        %v1048 = vsel %vm1042, %v1047, %v1046
        %vm1049 = vcmp.lt.s32.totalorder %v761, 0
        %v1050 = vsub.s32 0, %v761
        %v1051 = vsel %vm1049, %v1050, %v761
        %v1052 = vshrl.u32 %v1051, 4
        %v1053 = vand.u32 %v1051, 15
        %v1054 = vsub.s32 0, %v1053
        %v1055 = vsel %vm1049, %v1054, %v1053
        %vm1056 = vcmp.lt.s32.totalorder %v762, 0
        %v1057 = vsub.s32 0, %v762
        %v1058 = vsel %vm1056, %v1057, %v762
        %v1059 = vshrl.u32 %v1058, 4
        %v1060 = vand.u32 %v1058, 15
        %v1061 = vsub.s32 0, %v1060
        %v1062 = vsel %vm1056, %v1061, %v1060
        %vm1063 = vcmp.lt.s32.totalorder %v763, 0
        %v1064 = vsub.s32 0, %v763
        %v1065 = vsel %vm1063, %v1064, %v763
        %v1066 = vshrl.u32 %v1065, 4
        %v1067 = vand.u32 %v1065, 15
        %v1068 = vsub.s32 0, %v1067
        %v1069 = vsel %vm1063, %v1068, %v1067
        %vm1070 = vcmp.ne.s32.totalorder %v964, 0
        %vm1071 = vcmp.ne.s32.totalorder %v971, 0
        %vm1072 = vcmp.ne.s32.totalorder %v978, 0
        %vm1073 = vcmp.ne.s32.totalorder %v985, 0
        %vm1074 = vcmp.ne.s32.totalorder %v992, 0
        %vm1075 = vcmp.ne.s32.totalorder %v999, 0
        %vm1076 = vcmp.ne.s32.totalorder %v1006, 0
        %vm1077 = vcmp.ne.s32.totalorder %v1013, 0
        %vm1078 = vcmp.ne.s32.totalorder %v1020, 0
        %vm1079 = vcmp.ne.s32.totalorder %v1027, 0
        %vm1080 = vcmp.ne.s32.totalorder %v1034, 0
        %vm1081 = vcmp.ne.s32.totalorder %v1041, 0
        %vm1082 = vcmp.ne.s32.totalorder %v1048, 0
        %vm1083 = vcmp.ne.s32.totalorder %v1055, 0
        %vm1084 = vcmp.ne.s32.totalorder %v1062, 0
        %vm1085 = vcmp.ne.s32.totalorder %v1069, 0
        %vm1086 = vcmp.lt.s32.totalorder %v964, 0
        %vm1087 = vcmp.lt.s32.totalorder %v971, 0
        %vm1088 = vcmp.lt.s32.totalorder %v978, 0
        %vm1089 = vcmp.lt.s32.totalorder %v985, 0
        %vm1090 = vcmp.lt.s32.totalorder %v992, 0
        %vm1091 = vcmp.lt.s32.totalorder %v999, 0
        %vm1092 = vcmp.lt.s32.totalorder %v1006, 0
        %vm1093 = vcmp.lt.s32.totalorder %v1013, 0
        %vm1094 = vcmp.lt.s32.totalorder %v1020, 0
        %vm1095 = vcmp.lt.s32.totalorder %v1027, 0
        %vm1096 = vcmp.lt.s32.totalorder %v1034, 0
        %vm1097 = vcmp.lt.s32.totalorder %v1041, 0
        %vm1098 = vcmp.lt.s32.totalorder %v1048, 0
        %vm1099 = vcmp.lt.s32.totalorder %v1055, 0
        %vm1100 = vcmp.lt.s32.totalorder %v1062, 0
        %vm1101 = vcmp.lt.s32.totalorder %v1069, 0
        %vm1102 = vmand %vm1086, %vm1070
        %vm1103 = vmand %vm1087, %vm1071
        %vm1104 = vmand %vm1088, %vm1072
        %vm1105 = vmand %vm1089, %vm1073
        %vm1106 = vmand %vm1090, %vm1074
        %vm1107 = vmand %vm1091, %vm1075
        %vm1108 = vmand %vm1092, %vm1076
        %vm1109 = vmand %vm1093, %vm1077
        %vm1110 = vmand %vm1094, %vm1078
        %vm1111 = vmand %vm1095, %vm1079
        %vm1112 = vmand %vm1096, %vm1080
        %vm1113 = vmand %vm1097, %vm1081
        %vm1114 = vmand %vm1098, %vm1082
        %vm1115 = vmand %vm1099, %vm1083
        %vm1116 = vmand %vm1100, %vm1084
        %vm1117 = vmand %vm1101, %vm1085
        %v1118 = vadd.s32 %v964, 16
        %v1119 = vadd.s32 %v971, 16
        %v1120 = vadd.s32 %v978, 16
        %v1121 = vadd.s32 %v985, 16
        %v1122 = vadd.s32 %v992, 16
        %v1123 = vadd.s32 %v999, 16
        %v1124 = vadd.s32 %v1006, 16
        %v1125 = vadd.s32 %v1013, 16
        %v1126 = vadd.s32 %v1020, 16
        %v1127 = vadd.s32 %v1027, 16
        %v1128 = vadd.s32 %v1034, 16
        %v1129 = vadd.s32 %v1041, 16
        %v1130 = vadd.s32 %v1048, 16
        %v1131 = vadd.s32 %v1055, 16
        %v1132 = vadd.s32 %v1062, 16
        %v1133 = vadd.s32 %v1069, 16
        %v1134 = vsel %vm1102, %v1118, %v964
        %v1135 = vsel %vm1103, %v1119, %v971
        %v1136 = vsel %vm1104, %v1120, %v978
        %v1137 = vsel %vm1105, %v1121, %v985
        %v1138 = vsel %vm1106, %v1122, %v992
        %v1139 = vsel %vm1107, %v1123, %v999
        %v1140 = vsel %vm1108, %v1124, %v1006
        %v1141 = vsel %vm1109, %v1125, %v1013
        %v1142 = vsel %vm1110, %v1126, %v1020
        %v1143 = vsel %vm1111, %v1127, %v1027
        %v1144 = vsel %vm1112, %v1128, %v1034
        %v1145 = vsel %vm1113, %v1129, %v1041
        %v1146 = vsel %vm1114, %v1130, %v1048
        %v1147 = vsel %vm1115, %v1131, %v1055
        %v1148 = vsel %vm1116, %v1132, %v1062
        %v1149 = vsel %vm1117, %v1133, %v1069
        %vm1150 = vcmp.gt.s32.totalorder %v1134, 0
        %vm1151 = vcmp.gt.s32.totalorder %v1135, 0
        %vm1152 = vcmp.gt.s32.totalorder %v1136, 0
        %vm1153 = vcmp.gt.s32.totalorder %v1137, 0
        %vm1154 = vcmp.gt.s32.totalorder %v1138, 0
        %vm1155 = vcmp.gt.s32.totalorder %v1139, 0
        %vm1156 = vcmp.gt.s32.totalorder %v1140, 0
        %vm1157 = vcmp.gt.s32.totalorder %v1141, 0
        %vm1158 = vcmp.gt.s32.totalorder %v1142, 0
        %vm1159 = vcmp.gt.s32.totalorder %v1143, 0
        %vm1160 = vcmp.gt.s32.totalorder %v1144, 0
        %vm1161 = vcmp.gt.s32.totalorder %v1145, 0
        %vm1162 = vcmp.gt.s32.totalorder %v1146, 0
        %vm1163 = vcmp.gt.s32.totalorder %v1147, 0
        %vm1164 = vcmp.gt.s32.totalorder %v1148, 0
        %vm1165 = vcmp.gt.s32.totalorder %v1149, 0
        %vm1166 = vcmp.lt.s32.totalorder %v1134, 15
        %vm1167 = vcmp.lt.s32.totalorder %v1135, 15
        %vm1168 = vcmp.lt.s32.totalorder %v1136, 15
        %vm1169 = vcmp.lt.s32.totalorder %v1137, 15
        %vm1170 = vcmp.lt.s32.totalorder %v1138, 15
        %vm1171 = vcmp.lt.s32.totalorder %v1139, 15
        %vm1172 = vcmp.lt.s32.totalorder %v1140, 15
        %vm1173 = vcmp.lt.s32.totalorder %v1141, 15
        %vm1174 = vcmp.lt.s32.totalorder %v1142, 15
        %vm1175 = vcmp.lt.s32.totalorder %v1143, 15
        %vm1176 = vcmp.lt.s32.totalorder %v1144, 15
        %vm1177 = vcmp.lt.s32.totalorder %v1145, 15
        %vm1178 = vcmp.lt.s32.totalorder %v1146, 15
        %vm1179 = vcmp.lt.s32.totalorder %v1147, 15
        %vm1180 = vcmp.lt.s32.totalorder %v1148, 15
        %vm1181 = vcmp.lt.s32.totalorder %v1149, 15
        %v1182 = vld [vmem:[#allocation2] sm:$0xff]
        %v1183 = vld [vmem:[#allocation2 + $0x8] sm:$0xff]
        %v1184 = vld [vmem:[#allocation2 + $0x10] sm:$0xff]
        %v1185 = vld [vmem:[#allocation2 + $0x18] sm:$0xff]
        %v1186 = vld [vmem:[#allocation2 + $0x20] sm:$0xff]
        %v1187 = vld [vmem:[#allocation2 + $0x28] sm:$0xff]
        %v1188 = vld [vmem:[#allocation2 + $0x30] sm:$0xff]
        %v1189 = vld [vmem:[#allocation2 + $0x38] sm:$0xff]
        %v1190 = vld [vmem:[#allocation2 + $0x40] sm:$0xff]
        %v1191 = vld [vmem:[#allocation2 + $0x48] sm:$0xff]
        %v1192 = vld [vmem:[#allocation2 + $0x50] sm:$0xff]
        %v1193 = vld [vmem:[#allocation2 + $0x58] sm:$0xff]
        %v1194 = vld [vmem:[#allocation2 + $0x60] sm:$0xff]
        %v1195 = vld [vmem:[#allocation2 + $0x68] sm:$0xff]
        %v1196 = vld [vmem:[#allocation2 + $0x70] sm:$0xff]
        %v1197 = vld [vmem:[#allocation2 + $0x78] sm:$0xff]
        %v1198 = vsel %vm1150, 1, 0
        %v1199 = vsel %vm1151, 1, 0
        %v1200 = vsel %vm1152, 1, 0
        %v1201 = vsel %vm1153, 1, 0
        %v1202 = vsel %vm1154, 1, 0
        %v1203 = vsel %vm1155, 1, 0
        %v1204 = vsel %vm1156, 1, 0
        %v1205 = vsel %vm1157, 1, 0
        %v1206 = vsel %vm1158, 1, 0
        %v1207 = vsel %vm1159, 1, 0
        %v1208 = vsel %vm1160, 1, 0
        %v1209 = vsel %vm1161, 1, 0
        %v1210 = vsel %vm1162, 1, 0
        %v1211 = vsel %vm1163, 1, 0
        %v1212 = vsel %vm1164, 1, 0
        %v1213 = vsel %vm1165, 1, 0
        %vm1214 = vcmp.eq.s32.totalorder %v1198, 1
        %vm1215 = vcmp.eq.s32.totalorder %v1199, 1
        %vm1216 = vcmp.eq.s32.totalorder %v1200, 1
        %vm1217 = vcmp.eq.s32.totalorder %v1201, 1
        %vm1218 = vcmp.eq.s32.totalorder %v1202, 1
        %vm1219 = vcmp.eq.s32.totalorder %v1203, 1
        %vm1220 = vcmp.eq.s32.totalorder %v1204, 1
        %vm1221 = vcmp.eq.s32.totalorder %v1205, 1
        %vm1222 = vcmp.eq.s32.totalorder %v1206, 1
        %vm1223 = vcmp.eq.s32.totalorder %v1207, 1
        %vm1224 = vcmp.eq.s32.totalorder %v1208, 1
        %vm1225 = vcmp.eq.s32.totalorder %v1209, 1
        %vm1226 = vcmp.eq.s32.totalorder %v1210, 1
        %vm1227 = vcmp.eq.s32.totalorder %v1211, 1
        %vm1228 = vcmp.eq.s32.totalorder %v1212, 1
        %vm1229 = vcmp.eq.s32.totalorder %v1213, 1
        %v1230 = vsel %vm1214, %v1182, 0.0
        %v1231 = vsel %vm1215, %v1183, 0.0
        %v1232 = vsel %vm1216, %v1184, 0.0
        %v1233 = vsel %vm1217, %v1185, 0.0
        %v1234 = vsel %vm1218, %v1186, 0.0
        %v1235 = vsel %vm1219, %v1187, 0.0
        %v1236 = vsel %vm1220, %v1188, 0.0
        %v1237 = vsel %vm1221, %v1189, 0.0
        %v1238 = vsel %vm1222, %v1190, 0.0
        %v1239 = vsel %vm1223, %v1191, 0.0
        %v1240 = vsel %vm1224, %v1192, 0.0
        %v1241 = vsel %vm1225, %v1193, 0.0
        %v1242 = vsel %vm1226, %v1194, 0.0
        %v1243 = vsel %vm1227, %v1195, 0.0
        %v1244 = vsel %vm1228, %v1196, 0.0
        %v1245 = vsel %vm1229, %v1197, 0.0
        %v1246 = vpack.c.bf16 %v1231, %v1230
        %v1247 = vpack.c.bf16 %v1233, %v1232
        %v1248 = vpack.c.bf16 %v1235, %v1234
        %v1249 = vpack.c.bf16 %v1237, %v1236
        %v1250 = vpack.c.bf16 %v1239, %v1238
        %v1251 = vpack.c.bf16 %v1241, %v1240
        %v1252 = vpack.c.bf16 %v1243, %v1242
        %v1253 = vpack.c.bf16 %v1245, %v1244
        %1254 = vst [vmem:[#allocation3] sm:$0xff] %v1246
        %1255 = vst [vmem:[#allocation3 + $0x48] sm:$0xff] %v1247
        %1256 = vst [vmem:[#allocation3 + $0x90] sm:$0xff] %v1248
        %1257 = vst [vmem:[#allocation3 + $0xd8] sm:$0xff] %v1249
        %1258 = vst [vmem:[#allocation3 + $0x120] sm:$0xff] %v1250
        %1259 = vst [vmem:[#allocation3 + $0x168] sm:$0xff] %v1251
        %1260 = vst [vmem:[#allocation3 + $0x1b0] sm:$0xff] %v1252
        %1261 = vst [vmem:[#allocation3 + $0x1f8] sm:$0xff] %v1253
        %v1262 = vld [vmem:[#allocation2 + $0x1] sm:$0xff]
        %v1263 = vld [vmem:[#allocation2 + $0x9] sm:$0xff]
        %v1264 = vld [vmem:[#allocation2 + $0x11] sm:$0xff]
        %v1265 = vld [vmem:[#allocation2 + $0x19] sm:$0xff]
        %v1266 = vld [vmem:[#allocation2 + $0x21] sm:$0xff]
        %v1267 = vld [vmem:[#allocation2 + $0x29] sm:$0xff]
        %v1268 = vld [vmem:[#allocation2 + $0x31] sm:$0xff]
        %v1269 = vld [vmem:[#allocation2 + $0x39] sm:$0xff]
        %v1270 = vld [vmem:[#allocation2 + $0x41] sm:$0xff]
        %v1271 = vld [vmem:[#allocation2 + $0x49] sm:$0xff]
        %v1272 = vld [vmem:[#allocation2 + $0x51] sm:$0xff]
        %v1273 = vld [vmem:[#allocation2 + $0x59] sm:$0xff]
        %v1274 = vld [vmem:[#allocation2 + $0x61] sm:$0xff]
        %v1275 = vld [vmem:[#allocation2 + $0x69] sm:$0xff]
        %v1276 = vld [vmem:[#allocation2 + $0x71] sm:$0xff]
        %v1277 = vld [vmem:[#allocation2 + $0x79] sm:$0xff]
        %v1278 = vpack.c.bf16 %v1263, %v1262
        %v1279 = vpack.c.bf16 %v1265, %v1264
        %v1280 = vpack.c.bf16 %v1267, %v1266
        %v1281 = vpack.c.bf16 %v1269, %v1268
        %v1282 = vpack.c.bf16 %v1271, %v1270
        %v1283 = vpack.c.bf16 %v1273, %v1272
        %v1284 = vpack.c.bf16 %v1275, %v1274
        %v1285 = vpack.c.bf16 %v1277, %v1276
        %1286 = vst [vmem:[#allocation3 + $0x8] sm:$0xff] %v1278
        %1287 = vst [vmem:[#allocation3 + $0x50] sm:$0xff] %v1279
        %1288 = vst [vmem:[#allocation3 + $0x98] sm:$0xff] %v1280
        %1289 = vst [vmem:[#allocation3 + $0xe0] sm:$0xff] %v1281
        %1290 = vst [vmem:[#allocation3 + $0x128] sm:$0xff] %v1282
        %1291 = vst [vmem:[#allocation3 + $0x170] sm:$0xff] %v1283
        %1292 = vst [vmem:[#allocation3 + $0x1b8] sm:$0xff] %v1284
        %1293 = vst [vmem:[#allocation3 + $0x200] sm:$0xff] %v1285
        %v1294 = vld [vmem:[#allocation2 + $0x2] sm:$0xff]
        %v1295 = vld [vmem:[#allocation2 + $0xa] sm:$0xff]
        %v1296 = vld [vmem:[#allocation2 + $0x12] sm:$0xff]
        %v1297 = vld [vmem:[#allocation2 + $0x1a] sm:$0xff]
        %v1298 = vld [vmem:[#allocation2 + $0x22] sm:$0xff]
        %v1299 = vld [vmem:[#allocation2 + $0x2a] sm:$0xff]
        %v1300 = vld [vmem:[#allocation2 + $0x32] sm:$0xff]
        %v1301 = vld [vmem:[#allocation2 + $0x3a] sm:$0xff]
        %v1302 = vld [vmem:[#allocation2 + $0x42] sm:$0xff]
        %v1303 = vld [vmem:[#allocation2 + $0x4a] sm:$0xff]
        %v1304 = vld [vmem:[#allocation2 + $0x52] sm:$0xff]
        %v1305 = vld [vmem:[#allocation2 + $0x5a] sm:$0xff]
        %v1306 = vld [vmem:[#allocation2 + $0x62] sm:$0xff]
        %v1307 = vld [vmem:[#allocation2 + $0x6a] sm:$0xff]
        %v1308 = vld [vmem:[#allocation2 + $0x72] sm:$0xff]
        %v1309 = vld [vmem:[#allocation2 + $0x7a] sm:$0xff]
        %v1310 = vsel %vm1166, 1, 0
        %v1311 = vsel %vm1167, 1, 0
        %v1312 = vsel %vm1168, 1, 0
        %v1313 = vsel %vm1169, 1, 0
        %v1314 = vsel %vm1170, 1, 0
        %v1315 = vsel %vm1171, 1, 0
        %v1316 = vsel %vm1172, 1, 0
        %v1317 = vsel %vm1173, 1, 0
        %v1318 = vsel %vm1174, 1, 0
        %v1319 = vsel %vm1175, 1, 0
        %v1320 = vsel %vm1176, 1, 0
        %v1321 = vsel %vm1177, 1, 0
        %v1322 = vsel %vm1178, 1, 0
        %v1323 = vsel %vm1179, 1, 0
        %v1324 = vsel %vm1180, 1, 0
        %v1325 = vsel %vm1181, 1, 0
        %vm1326 = vcmp.eq.s32.totalorder %v1310, 1
        %vm1327 = vcmp.eq.s32.totalorder %v1311, 1
        %vm1328 = vcmp.eq.s32.totalorder %v1312, 1
        %vm1329 = vcmp.eq.s32.totalorder %v1313, 1
        %vm1330 = vcmp.eq.s32.totalorder %v1314, 1
        %vm1331 = vcmp.eq.s32.totalorder %v1315, 1
        %vm1332 = vcmp.eq.s32.totalorder %v1316, 1
        %vm1333 = vcmp.eq.s32.totalorder %v1317, 1
        %vm1334 = vcmp.eq.s32.totalorder %v1318, 1
        %vm1335 = vcmp.eq.s32.totalorder %v1319, 1
        %vm1336 = vcmp.eq.s32.totalorder %v1320, 1
        %vm1337 = vcmp.eq.s32.totalorder %v1321, 1
        %vm1338 = vcmp.eq.s32.totalorder %v1322, 1
        %vm1339 = vcmp.eq.s32.totalorder %v1323, 1
        %vm1340 = vcmp.eq.s32.totalorder %v1324, 1
        %vm1341 = vcmp.eq.s32.totalorder %v1325, 1
        %v1342 = vsel %vm1326, %v1294, 0.0
        %v1343 = vsel %vm1327, %v1295, 0.0
        %v1344 = vsel %vm1328, %v1296, 0.0
        %v1345 = vsel %vm1329, %v1297, 0.0
        %v1346 = vsel %vm1330, %v1298, 0.0
        %v1347 = vsel %vm1331, %v1299, 0.0
        %v1348 = vsel %vm1332, %v1300, 0.0
        %v1349 = vsel %vm1333, %v1301, 0.0
        %v1350 = vsel %vm1334, %v1302, 0.0
        %v1351 = vsel %vm1335, %v1303, 0.0
        %v1352 = vsel %vm1336, %v1304, 0.0
        %v1353 = vsel %vm1337, %v1305, 0.0
        %v1354 = vsel %vm1338, %v1306, 0.0
        %v1355 = vsel %vm1339, %v1307, 0.0
        %v1356 = vsel %vm1340, %v1308, 0.0
        %v1357 = vsel %vm1341, %v1309, 0.0
        %v1358 = vpack.c.bf16 %v1343, %v1342
        %v1359 = vpack.c.bf16 %v1345, %v1344
        %v1360 = vpack.c.bf16 %v1347, %v1346
        %v1361 = vpack.c.bf16 %v1349, %v1348
        %v1362 = vpack.c.bf16 %v1351, %v1350
        %v1363 = vpack.c.bf16 %v1353, %v1352
        %v1364 = vpack.c.bf16 %v1355, %v1354
        %v1365 = vpack.c.bf16 %v1357, %v1356
        %1366 = vst [vmem:[#allocation3 + $0x10] sm:$0xff] %v1358
        %1367 = vst [vmem:[#allocation3 + $0x58] sm:$0xff] %v1359
        %1368 = vst [vmem:[#allocation3 + $0xa0] sm:$0xff] %v1360
        %1369 = vst [vmem:[#allocation3 + $0xe8] sm:$0xff] %v1361
        %1370 = vst [vmem:[#allocation3 + $0x130] sm:$0xff] %v1362
        %1371 = vst [vmem:[#allocation3 + $0x178] sm:$0xff] %v1363
        %1372 = vst [vmem:[#allocation3 + $0x1c0] sm:$0xff] %v1364
        %1373 = vst [vmem:[#allocation3 + $0x208] sm:$0xff] %v1365
        %v1374 = vld [vmem:[#allocation2 + $0x10] sm:$0xff]
        %v1375 = vld [vmem:[#allocation2 + $0x18] sm:$0xff]
        %v1376 = vld [vmem:[#allocation2 + $0x20] sm:$0xff]
        %v1377 = vld [vmem:[#allocation2 + $0x28] sm:$0xff]
        %v1378 = vld [vmem:[#allocation2 + $0x30] sm:$0xff]
        %v1379 = vld [vmem:[#allocation2 + $0x38] sm:$0xff]
        %v1380 = vld [vmem:[#allocation2 + $0x40] sm:$0xff]
        %v1381 = vld [vmem:[#allocation2 + $0x48] sm:$0xff]
        %v1382 = vld [vmem:[#allocation2 + $0x50] sm:$0xff]
        %v1383 = vld [vmem:[#allocation2 + $0x58] sm:$0xff]
        %v1384 = vld [vmem:[#allocation2 + $0x60] sm:$0xff]
        %v1385 = vld [vmem:[#allocation2 + $0x68] sm:$0xff]
        %v1386 = vld [vmem:[#allocation2 + $0x70] sm:$0xff]
        %v1387 = vld [vmem:[#allocation2 + $0x78] sm:$0xff]
        %v1388 = vld [vmem:[#allocation2 + $0x80] sm:$0xff]
        %v1389 = vld [vmem:[#allocation2 + $0x88] sm:$0xff]
        %v1390 = vsel %vm1214, %v1374, 0.0
        %v1391 = vsel %vm1215, %v1375, 0.0
        %v1392 = vsel %vm1216, %v1376, 0.0
        %v1393 = vsel %vm1217, %v1377, 0.0
        %v1394 = vsel %vm1218, %v1378, 0.0
        %v1395 = vsel %vm1219, %v1379, 0.0
        %v1396 = vsel %vm1220, %v1380, 0.0
        %v1397 = vsel %vm1221, %v1381, 0.0
        %v1398 = vsel %vm1222, %v1382, 0.0
        %v1399 = vsel %vm1223, %v1383, 0.0
        %v1400 = vsel %vm1224, %v1384, 0.0
        %v1401 = vsel %vm1225, %v1385, 0.0
        %v1402 = vsel %vm1226, %v1386, 0.0
        %v1403 = vsel %vm1227, %v1387, 0.0
        %v1404 = vsel %vm1228, %v1388, 0.0
        %v1405 = vsel %vm1229, %v1389, 0.0
        %v1406 = vpack.c.bf16 %v1391, %v1390
        %v1407 = vpack.c.bf16 %v1393, %v1392
        %v1408 = vpack.c.bf16 %v1395, %v1394
        %v1409 = vpack.c.bf16 %v1397, %v1396
        %v1410 = vpack.c.bf16 %v1399, %v1398
        %v1411 = vpack.c.bf16 %v1401, %v1400
        %v1412 = vpack.c.bf16 %v1403, %v1402
        %v1413 = vpack.c.bf16 %v1405, %v1404
        %1414 = vst [vmem:[#allocation3 + $0x18] sm:$0xff] %v1406
        %1415 = vst [vmem:[#allocation3 + $0x60] sm:$0xff] %v1407
        %1416 = vst [vmem:[#allocation3 + $0xa8] sm:$0xff] %v1408
        %1417 = vst [vmem:[#allocation3 + $0xf0] sm:$0xff] %v1409
        %1418 = vst [vmem:[#allocation3 + $0x138] sm:$0xff] %v1410
        %1419 = vst [vmem:[#allocation3 + $0x180] sm:$0xff] %v1411
        %1420 = vst [vmem:[#allocation3 + $0x1c8] sm:$0xff] %v1412
        %1421 = vst [vmem:[#allocation3 + $0x210] sm:$0xff] %v1413
        %v1422 = vld [vmem:[#allocation2 + $0x11] sm:$0xff]
        %v1423 = vld [vmem:[#allocation2 + $0x19] sm:$0xff]
        %v1424 = vld [vmem:[#allocation2 + $0x21] sm:$0xff]
        %v1425 = vld [vmem:[#allocation2 + $0x29] sm:$0xff]
        %v1426 = vld [vmem:[#allocation2 + $0x31] sm:$0xff]
        %v1427 = vld [vmem:[#allocation2 + $0x39] sm:$0xff]
        %v1428 = vld [vmem:[#allocation2 + $0x41] sm:$0xff]
        %v1429 = vld [vmem:[#allocation2 + $0x49] sm:$0xff]
        %v1430 = vld [vmem:[#allocation2 + $0x51] sm:$0xff]
        %v1431 = vld [vmem:[#allocation2 + $0x59] sm:$0xff]
        %v1432 = vld [vmem:[#allocation2 + $0x61] sm:$0xff]
        %v1433 = vld [vmem:[#allocation2 + $0x69] sm:$0xff]
        %v1434 = vld [vmem:[#allocation2 + $0x71] sm:$0xff]
        %v1435 = vld [vmem:[#allocation2 + $0x79] sm:$0xff]
        %v1436 = vld [vmem:[#allocation2 + $0x81] sm:$0xff]
        %v1437 = vld [vmem:[#allocation2 + $0x89] sm:$0xff]
        %v1438 = vpack.c.bf16 %v1423, %v1422
        %v1439 = vpack.c.bf16 %v1425, %v1424
        %v1440 = vpack.c.bf16 %v1427, %v1426
        %v1441 = vpack.c.bf16 %v1429, %v1428
        %v1442 = vpack.c.bf16 %v1431, %v1430
        %v1443 = vpack.c.bf16 %v1433, %v1432
        %v1444 = vpack.c.bf16 %v1435, %v1434
        %v1445 = vpack.c.bf16 %v1437, %v1436
        %1446 = vst [vmem:[#allocation3 + $0x20] sm:$0xff] %v1438
        %1447 = vst [vmem:[#allocation3 + $0x68] sm:$0xff] %v1439
        %1448 = vst [vmem:[#allocation3 + $0xb0] sm:$0xff] %v1440
        %1449 = vst [vmem:[#allocation3 + $0xf8] sm:$0xff] %v1441
        %1450 = vst [vmem:[#allocation3 + $0x140] sm:$0xff] %v1442
        %1451 = vst [vmem:[#allocation3 + $0x188] sm:$0xff] %v1443
        %1452 = vst [vmem:[#allocation3 + $0x1d0] sm:$0xff] %v1444
        %1453 = vst [vmem:[#allocation3 + $0x218] sm:$0xff] %v1445
        %v1454 = vld [vmem:[#allocation2 + $0x12] sm:$0xff]
        %v1455 = vld [vmem:[#allocation2 + $0x1a] sm:$0xff]
        %v1456 = vld [vmem:[#allocation2 + $0x22] sm:$0xff]
        %v1457 = vld [vmem:[#allocation2 + $0x2a] sm:$0xff]
        %v1458 = vld [vmem:[#allocation2 + $0x32] sm:$0xff]
        %v1459 = vld [vmem:[#allocation2 + $0x3a] sm:$0xff]
        %v1460 = vld [vmem:[#allocation2 + $0x42] sm:$0xff]
        %v1461 = vld [vmem:[#allocation2 + $0x4a] sm:$0xff]
        %v1462 = vld [vmem:[#allocation2 + $0x52] sm:$0xff]
        %v1463 = vld [vmem:[#allocation2 + $0x5a] sm:$0xff]
        %v1464 = vld [vmem:[#allocation2 + $0x62] sm:$0xff]
        %v1465 = vld [vmem:[#allocation2 + $0x6a] sm:$0xff]
        %v1466 = vld [vmem:[#allocation2 + $0x72] sm:$0xff]
        %v1467 = vld [vmem:[#allocation2 + $0x7a] sm:$0xff]
        %v1468 = vld [vmem:[#allocation2 + $0x82] sm:$0xff]
        %v1469 = vld [vmem:[#allocation2 + $0x8a] sm:$0xff]
        %v1470 = vsel %vm1326, %v1454, 0.0
        %v1471 = vsel %vm1327, %v1455, 0.0
        %v1472 = vsel %vm1328, %v1456, 0.0
        %v1473 = vsel %vm1329, %v1457, 0.0
        %v1474 = vsel %vm1330, %v1458, 0.0
        %v1475 = vsel %vm1331, %v1459, 0.0
        %v1476 = vsel %vm1332, %v1460, 0.0
        %v1477 = vsel %vm1333, %v1461, 0.0
        %v1478 = vsel %vm1334, %v1462, 0.0
        %v1479 = vsel %vm1335, %v1463, 0.0
        %v1480 = vsel %vm1336, %v1464, 0.0
        %v1481 = vsel %vm1337, %v1465, 0.0
        %v1482 = vsel %vm1338, %v1466, 0.0
        %v1483 = vsel %vm1339, %v1467, 0.0
        %v1484 = vsel %vm1340, %v1468, 0.0
        %v1485 = vsel %vm1341, %v1469, 0.0
        %v1486 = vpack.c.bf16 %v1471, %v1470
        %v1487 = vpack.c.bf16 %v1473, %v1472
        %v1488 = vpack.c.bf16 %v1475, %v1474
        %v1489 = vpack.c.bf16 %v1477, %v1476
        %v1490 = vpack.c.bf16 %v1479, %v1478
        %v1491 = vpack.c.bf16 %v1481, %v1480
        %v1492 = vpack.c.bf16 %v1483, %v1482
        %v1493 = vpack.c.bf16 %v1485, %v1484
        %1494 = vst [vmem:[#allocation3 + $0x28] sm:$0xff] %v1486
        %1495 = vst [vmem:[#allocation3 + $0x70] sm:$0xff] %v1487
        %1496 = vst [vmem:[#allocation3 + $0xb8] sm:$0xff] %v1488
        %1497 = vst [vmem:[#allocation3 + $0x100] sm:$0xff] %v1489
        %1498 = vst [vmem:[#allocation3 + $0x148] sm:$0xff] %v1490
        %1499 = vst [vmem:[#allocation3 + $0x190] sm:$0xff] %v1491
        %1500 = vst [vmem:[#allocation3 + $0x1d8] sm:$0xff] %v1492
        %1501 = vst [vmem:[#allocation3 + $0x220] sm:$0xff] %v1493
        %v1502 = vld [vmem:[#allocation2 + $0x20] sm:$0xff]
        %v1503 = vld [vmem:[#allocation2 + $0x28] sm:$0xff]
        %v1504 = vld [vmem:[#allocation2 + $0x30] sm:$0xff]
        %v1505 = vld [vmem:[#allocation2 + $0x38] sm:$0xff]
        %v1506 = vld [vmem:[#allocation2 + $0x40] sm:$0xff]
        %v1507 = vld [vmem:[#allocation2 + $0x48] sm:$0xff]
        %v1508 = vld [vmem:[#allocation2 + $0x50] sm:$0xff]
        %v1509 = vld [vmem:[#allocation2 + $0x58] sm:$0xff]
        %v1510 = vld [vmem:[#allocation2 + $0x60] sm:$0xff]
        %v1511 = vld [vmem:[#allocation2 + $0x68] sm:$0xff]
        %v1512 = vld [vmem:[#allocation2 + $0x70] sm:$0xff]
        %v1513 = vld [vmem:[#allocation2 + $0x78] sm:$0xff]
        %v1514 = vld [vmem:[#allocation2 + $0x80] sm:$0xff]
        %v1515 = vld [vmem:[#allocation2 + $0x88] sm:$0xff]
        %v1516 = vld [vmem:[#allocation2 + $0x90] sm:$0xff]
        %v1517 = vld [vmem:[#allocation2 + $0x98] sm:$0xff]
        %v1518 = vsel %vm1214, %v1502, 0.0
        %v1519 = vsel %vm1215, %v1503, 0.0
        %v1520 = vsel %vm1216, %v1504, 0.0
        %v1521 = vsel %vm1217, %v1505, 0.0
        %v1522 = vsel %vm1218, %v1506, 0.0
        %v1523 = vsel %vm1219, %v1507, 0.0
        %v1524 = vsel %vm1220, %v1508, 0.0
        %v1525 = vsel %vm1221, %v1509, 0.0
        %v1526 = vsel %vm1222, %v1510, 0.0
        %v1527 = vsel %vm1223, %v1511, 0.0
        %v1528 = vsel %vm1224, %v1512, 0.0
        %v1529 = vsel %vm1225, %v1513, 0.0
        %v1530 = vsel %vm1226, %v1514, 0.0
        %v1531 = vsel %vm1227, %v1515, 0.0
        %v1532 = vsel %vm1228, %v1516, 0.0
        %v1533 = vsel %vm1229, %v1517, 0.0
        %v1534 = vpack.c.bf16 %v1519, %v1518
        %v1535 = vpack.c.bf16 %v1521, %v1520
        %v1536 = vpack.c.bf16 %v1523, %v1522
        %v1537 = vpack.c.bf16 %v1525, %v1524
        %v1538 = vpack.c.bf16 %v1527, %v1526
        %v1539 = vpack.c.bf16 %v1529, %v1528
        %v1540 = vpack.c.bf16 %v1531, %v1530
        %v1541 = vpack.c.bf16 %v1533, %v1532
        %1542 = vst [vmem:[#allocation3 + $0x30] sm:$0xff] %v1534
        %1543 = vst [vmem:[#allocation3 + $0x78] sm:$0xff] %v1535
        %1544 = vst [vmem:[#allocation3 + $0xc0] sm:$0xff] %v1536
        %1545 = vst [vmem:[#allocation3 + $0x108] sm:$0xff] %v1537
        %1546 = vst [vmem:[#allocation3 + $0x150] sm:$0xff] %v1538
        %1547 = vst [vmem:[#allocation3 + $0x198] sm:$0xff] %v1539
        %1548 = vst [vmem:[#allocation3 + $0x1e0] sm:$0xff] %v1540
        %1549 = vst [vmem:[#allocation3 + $0x228] sm:$0xff] %v1541
        %v1550 = vld [vmem:[#allocation2 + $0x21] sm:$0xff]
        %v1551 = vld [vmem:[#allocation2 + $0x29] sm:$0xff]
        %v1552 = vld [vmem:[#allocation2 + $0x31] sm:$0xff]
        %v1553 = vld [vmem:[#allocation2 + $0x39] sm:$0xff]
        %v1554 = vld [vmem:[#allocation2 + $0x41] sm:$0xff]
        %v1555 = vld [vmem:[#allocation2 + $0x49] sm:$0xff]
        %v1556 = vld [vmem:[#allocation2 + $0x51] sm:$0xff]
        %v1557 = vld [vmem:[#allocation2 + $0x59] sm:$0xff]
        %v1558 = vld [vmem:[#allocation2 + $0x61] sm:$0xff]
        %v1559 = vld [vmem:[#allocation2 + $0x69] sm:$0xff]
        %v1560 = vld [vmem:[#allocation2 + $0x71] sm:$0xff]
        %v1561 = vld [vmem:[#allocation2 + $0x79] sm:$0xff]
        %v1562 = vld [vmem:[#allocation2 + $0x81] sm:$0xff]
        %v1563 = vld [vmem:[#allocation2 + $0x89] sm:$0xff]
        %v1564 = vld [vmem:[#allocation2 + $0x91] sm:$0xff]
        %v1565 = vld [vmem:[#allocation2 + $0x99] sm:$0xff]
        %v1566 = vpack.c.bf16 %v1551, %v1550
        %v1567 = vpack.c.bf16 %v1553, %v1552
        %v1568 = vpack.c.bf16 %v1555, %v1554
        %v1569 = vpack.c.bf16 %v1557, %v1556
        %v1570 = vpack.c.bf16 %v1559, %v1558
        %v1571 = vpack.c.bf16 %v1561, %v1560
        %v1572 = vpack.c.bf16 %v1563, %v1562
        %v1573 = vpack.c.bf16 %v1565, %v1564
        %1574 = vst [vmem:[#allocation3 + $0x38] sm:$0xff] %v1566
        %1575 = vst [vmem:[#allocation3 + $0x80] sm:$0xff] %v1567
        %1576 = vst [vmem:[#allocation3 + $0xc8] sm:$0xff] %v1568
        %1577 = vst [vmem:[#allocation3 + $0x110] sm:$0xff] %v1569
        %1578 = vst [vmem:[#allocation3 + $0x158] sm:$0xff] %v1570
        %1579 = vst [vmem:[#allocation3 + $0x1a0] sm:$0xff] %v1571
        %1580 = vst [vmem:[#allocation3 + $0x1e8] sm:$0xff] %v1572
        %1581 = vst [vmem:[#allocation3 + $0x230] sm:$0xff] %v1573
        %v1582 = vld [vmem:[#allocation2 + $0x22] sm:$0xff]
        %v1583 = vld [vmem:[#allocation2 + $0x2a] sm:$0xff]
        %v1584 = vld [vmem:[#allocation2 + $0x32] sm:$0xff]
        %v1585 = vld [vmem:[#allocation2 + $0x3a] sm:$0xff]
        %v1586 = vld [vmem:[#allocation2 + $0x42] sm:$0xff]
        %v1587 = vld [vmem:[#allocation2 + $0x4a] sm:$0xff]
        %v1588 = vld [vmem:[#allocation2 + $0x52] sm:$0xff]
        %v1589 = vld [vmem:[#allocation2 + $0x5a] sm:$0xff]
        %v1590 = vld [vmem:[#allocation2 + $0x62] sm:$0xff]
        %v1591 = vld [vmem:[#allocation2 + $0x6a] sm:$0xff]
        %v1592 = vld [vmem:[#allocation2 + $0x72] sm:$0xff]
        %v1593 = vld [vmem:[#allocation2 + $0x7a] sm:$0xff]
        %v1594 = vld [vmem:[#allocation2 + $0x82] sm:$0xff]
        %v1595 = vld [vmem:[#allocation2 + $0x8a] sm:$0xff]
        %v1596 = vld [vmem:[#allocation2 + $0x92] sm:$0xff]
        %v1597 = vld [vmem:[#allocation2 + $0x9a] sm:$0xff]
        %v1598 = vsel %vm1326, %v1582, 0.0
        %v1599 = vsel %vm1327, %v1583, 0.0
        %v1600 = vsel %vm1328, %v1584, 0.0
        %v1601 = vsel %vm1329, %v1585, 0.0
        %v1602 = vsel %vm1330, %v1586, 0.0
        %v1603 = vsel %vm1331, %v1587, 0.0
        %v1604 = vsel %vm1332, %v1588, 0.0
        %v1605 = vsel %vm1333, %v1589, 0.0
        %v1606 = vsel %vm1334, %v1590, 0.0
        %v1607 = vsel %vm1335, %v1591, 0.0
        %v1608 = vsel %vm1336, %v1592, 0.0
        %v1609 = vsel %vm1337, %v1593, 0.0
        %v1610 = vsel %vm1338, %v1594, 0.0
        %v1611 = vsel %vm1339, %v1595, 0.0
        %v1612 = vsel %vm1340, %v1596, 0.0
        %v1613 = vsel %vm1341, %v1597, 0.0
        %v1614 = vpack.c.bf16 %v1599, %v1598
        %v1615 = vpack.c.bf16 %v1601, %v1600
        %v1616 = vpack.c.bf16 %v1603, %v1602
        %v1617 = vpack.c.bf16 %v1605, %v1604
        %v1618 = vpack.c.bf16 %v1607, %v1606
        %v1619 = vpack.c.bf16 %v1609, %v1608
        %v1620 = vpack.c.bf16 %v1611, %v1610
        %v1621 = vpack.c.bf16 %v1613, %v1612
        %1622 = vst [vmem:[#allocation3 + $0x40] sm:$0xff] %v1614
        %1623 = vst [vmem:[#allocation3 + $0x88] sm:$0xff] %v1615
        %1624 = vst [vmem:[#allocation3 + $0xd0] sm:$0xff] %v1616
        %1625 = vst [vmem:[#allocation3 + $0x118] sm:$0xff] %v1617
        %1626 = vst [vmem:[#allocation3 + $0x160] sm:$0xff] %v1618
        %1627 = vst [vmem:[#allocation3 + $0x1a8] sm:$0xff] %v1619
        %1628 = vst [vmem:[#allocation3 + $0x1f0] sm:$0xff] %v1620
        %1629 = vst [vmem:[#allocation3 + $0x238] sm:$0xff] %v1621
        %v1630 = vld [vmem:[#allocation3] sm:$0xff]
        %v1631 = vld [vmem:[#allocation3 + $0x8] sm:$0xff]
        %v1632 = vld [vmem:[#allocation3 + $0x10] sm:$0xff]
        %v1633 = vld [vmem:[#allocation3 + $0x18] sm:$0xff]
        %v1634 = vld [vmem:[#allocation3 + $0x20] sm:$0xff]
        %v1635 = vld [vmem:[#allocation3 + $0x28] sm:$0xff]
        %v1636 = vld [vmem:[#allocation3 + $0x30] sm:$0xff]
        %v1637 = vld [vmem:[#allocation3 + $0x38] sm:$0xff]
        %v1638 = vld [vmem:[#allocation3 + $0x40] sm:$0xff]
        %v1639 = vld [vmem:[#allocation3 + $0x48] sm:$0xff]
        %v1640 = vld [vmem:[#allocation3 + $0x50] sm:$0xff]
        %v1641 = vld [vmem:[#allocation3 + $0x58] sm:$0xff]
        %v1642 = vld [vmem:[#allocation3 + $0x60] sm:$0xff]
        %v1643 = vld [vmem:[#allocation3 + $0x68] sm:$0xff]
        %v1644 = vld [vmem:[#allocation3 + $0x70] sm:$0xff]
        %v1645 = vld [vmem:[#allocation3 + $0x78] sm:$0xff]
        %v1646 = vld [vmem:[#allocation3 + $0x80] sm:$0xff]
        %v1647 = vld [vmem:[#allocation3 + $0x88] sm:$0xff]
        %v1648 = vld [vmem:[#allocation3 + $0x90] sm:$0xff]
        %v1649 = vld [vmem:[#allocation3 + $0x98] sm:$0xff]
        %v1650 = vld [vmem:[#allocation3 + $0xa0] sm:$0xff]
        %v1651 = vld [vmem:[#allocation3 + $0xa8] sm:$0xff]
        %v1652 = vld [vmem:[#allocation3 + $0xb0] sm:$0xff]
        %v1653 = vld [vmem:[#allocation3 + $0xb8] sm:$0xff]
        %v1654 = vld [vmem:[#allocation3 + $0xc0] sm:$0xff]
        %v1655 = vld [vmem:[#allocation3 + $0xc8] sm:$0xff]
        %v1656 = vld [vmem:[#allocation3 + $0xd0] sm:$0xff]
        %v1657 = vld [vmem:[#allocation3 + $0xd8] sm:$0xff]
        %v1658 = vld [vmem:[#allocation3 + $0xe0] sm:$0xff]
        %v1659 = vld [vmem:[#allocation3 + $0xe8] sm:$0xff]
        %v1660 = vld [vmem:[#allocation3 + $0xf0] sm:$0xff]
        %v1661 = vld [vmem:[#allocation3 + $0xf8] sm:$0xff]
        %v1662 = vld [vmem:[#allocation3 + $0x100] sm:$0xff]
        %v1663 = vld [vmem:[#allocation3 + $0x108] sm:$0xff]
        %v1664 = vld [vmem:[#allocation3 + $0x110] sm:$0xff]
        %v1665 = vld [vmem:[#allocation3 + $0x118] sm:$0xff]
        %v1666 = vld [vmem:[#allocation3 + $0x120] sm:$0xff]
        %v1667 = vld [vmem:[#allocation3 + $0x128] sm:$0xff]
        %v1668 = vld [vmem:[#allocation3 + $0x130] sm:$0xff]
        %v1669 = vld [vmem:[#allocation3 + $0x138] sm:$0xff]
        %v1670 = vld [vmem:[#allocation3 + $0x140] sm:$0xff]
        %v1671 = vld [vmem:[#allocation3 + $0x148] sm:$0xff]
        %v1672 = vld [vmem:[#allocation3 + $0x150] sm:$0xff]
        %v1673 = vld [vmem:[#allocation3 + $0x158] sm:$0xff]
        %v1674 = vld [vmem:[#allocation3 + $0x160] sm:$0xff]
        %v1675 = vld [vmem:[#allocation3 + $0x168] sm:$0xff]
        %v1676 = vld [vmem:[#allocation3 + $0x170] sm:$0xff]
        %v1677 = vld [vmem:[#allocation3 + $0x178] sm:$0xff]
        %v1678 = vld [vmem:[#allocation3 + $0x180] sm:$0xff]
        %v1679 = vld [vmem:[#allocation3 + $0x188] sm:$0xff]
        %v1680 = vld [vmem:[#allocation3 + $0x190] sm:$0xff]
        %v1681 = vld [vmem:[#allocation3 + $0x198] sm:$0xff]
        %v1682 = vld [vmem:[#allocation3 + $0x1a0] sm:$0xff]
        %v1683 = vld [vmem:[#allocation3 + $0x1a8] sm:$0xff]
        %v1684 = vld [vmem:[#allocation3 + $0x1b0] sm:$0xff]
        %v1685 = vld [vmem:[#allocation3 + $0x1b8] sm:$0xff]
        %v1686 = vld [vmem:[#allocation3 + $0x1c0] sm:$0xff]
        %v1687 = vld [vmem:[#allocation3 + $0x1c8] sm:$0xff]
        %v1688 = vld [vmem:[#allocation3 + $0x1d0] sm:$0xff]
        %v1689 = vld [vmem:[#allocation3 + $0x1d8] sm:$0xff]
        %v1690 = vld [vmem:[#allocation3 + $0x1e0] sm:$0xff]
        %v1691 = vld [vmem:[#allocation3 + $0x1e8] sm:$0xff]
        %v1692 = vld [vmem:[#allocation3 + $0x1f0] sm:$0xff]
        %v1693 = vld [vmem:[#allocation3 + $0x1f8] sm:$0xff]
        %v1694 = vld [vmem:[#allocation3 + $0x200] sm:$0xff]
        %v1695 = vld [vmem:[#allocation3 + $0x208] sm:$0xff]
        %v1696 = vld [vmem:[#allocation3 + $0x210] sm:$0xff]
        %v1697 = vld [vmem:[#allocation3 + $0x218] sm:$0xff]
        %v1698 = vld [vmem:[#allocation3 + $0x220] sm:$0xff]
        %v1699 = vld [vmem:[#allocation3 + $0x228] sm:$0xff]
        %v1700 = vld [vmem:[#allocation3 + $0x230] sm:$0xff]
        %v1701 = vld [vmem:[#allocation3 + $0x238] sm:$0xff]
        %v1702 = vld [vmem:[#allocation9] sm:$0xf]
        %v1703 = vld [vmem:[#allocation9 + $0x4] sm:$0xf]
        %v1704 = vld [vmem:[#allocation9 + $0x8] sm:$0xf]
        %v1705 = vld [vmem:[#allocation9 + $0xc] sm:$0xf]
        %v1706 = vld [vmem:[#allocation9 + $0x10] sm:$0xf]
        %v1707 = vld [vmem:[#allocation9 + $0x14] sm:$0xf]
        %v1708 = vld [vmem:[#allocation9 + $0x18] sm:$0xf]
        %v1709 = vld [vmem:[#allocation9 + $0x1c] sm:$0xf]
        %v1710 = vld [vmem:[#allocation9 + $0x20] sm:$0xf]
        %v1711 = vld [vmem:[#allocation9 + $0x24] sm:$0xf]
        %v1712 = vld [vmem:[#allocation9 + $0x28] sm:$0xf]
        %v1713 = vld [vmem:[#allocation9 + $0x2c] sm:$0xf]
        %v1714 = vld [vmem:[#allocation9 + $0x30] sm:$0xf]
        %v1715 = vld [vmem:[#allocation9 + $0x34] sm:$0xf]
        %v1716 = vld [vmem:[#allocation9 + $0x38] sm:$0xf]
        %v1717 = vld [vmem:[#allocation9 + $0x3c] sm:$0xf]
        %v1718 = vld [vmem:[#allocation9 + $0x40] sm:$0xf]
        %v1719 = vld [vmem:[#allocation9 + $0x44] sm:$0xf]
        %v1720 = vld [vmem:[#allocation9 + $0x48] sm:$0xf]
        %v1721 = vld [vmem:[#allocation9 + $0x4c] sm:$0xf]
        %v1722 = vld [vmem:[#allocation9 + $0x50] sm:$0xf]
        %v1723 = vld [vmem:[#allocation9 + $0x54] sm:$0xf]
        %v1724 = vld [vmem:[#allocation9 + $0x58] sm:$0xf]
        %v1725 = vld [vmem:[#allocation9 + $0x5c] sm:$0xf]
        %v1726 = vld [vmem:[#allocation9 + $0x60] sm:$0xf]
        %v1727 = vld [vmem:[#allocation9 + $0x64] sm:$0xf]
        %v1728 = vld [vmem:[#allocation9 + $0x68] sm:$0xf]
        %v1729 = vld [vmem:[#allocation9 + $0x6c] sm:$0xf]
        %v1730 = vld [vmem:[#allocation9 + $0x70] sm:$0xf]
        %v1731 = vld [vmem:[#allocation9 + $0x74] sm:$0xf]
        %v1732 = vld [vmem:[#allocation9 + $0x78] sm:$0xf]
        %v1733 = vld [vmem:[#allocation9 + $0x7c] sm:$0xf]
        %v1734 = vld [vmem:[#allocation9 + $0x80] sm:$0xf]
        %v1735 = vld [vmem:[#allocation9 + $0x84] sm:$0xf]
        %v1736 = vld [vmem:[#allocation9 + $0x88] sm:$0xf]
        %v1737 = vld [vmem:[#allocation9 + $0x8c] sm:$0xf]
        %v1738 = vld [vmem:[#allocation9 + $0x90] sm:$0xf]
        %v1739 = vld [vmem:[#allocation9 + $0x94] sm:$0xf]
        %v1740 = vld [vmem:[#allocation9 + $0x98] sm:$0xf]
        %v1741 = vld [vmem:[#allocation9 + $0x9c] sm:$0xf]
        %v1742 = vld [vmem:[#allocation9 + $0xa0] sm:$0xf]
        %v1743 = vld [vmem:[#allocation9 + $0xa4] sm:$0xf]
        %v1744 = vld [vmem:[#allocation9 + $0xa8] sm:$0xf]
        %v1745 = vld [vmem:[#allocation9 + $0xac] sm:$0xf]
        %v1746 = vld [vmem:[#allocation9 + $0xb0] sm:$0xf]
        %v1747 = vld [vmem:[#allocation9 + $0xb4] sm:$0xf]
        %v1748 = vld [vmem:[#allocation9 + $0xb8] sm:$0xf]
        %v1749 = vld [vmem:[#allocation9 + $0xbc] sm:$0xf]
        %v1750 = vld [vmem:[#allocation9 + $0xc0] sm:$0xf]
        %v1751 = vld [vmem:[#allocation9 + $0xc4] sm:$0xf]
        %v1752 = vld [vmem:[#allocation9 + $0xc8] sm:$0xf]
        %v1753 = vld [vmem:[#allocation9 + $0xcc] sm:$0xf]
        %v1754 = vld [vmem:[#allocation9 + $0xd0] sm:$0xf]
        %v1755 = vld [vmem:[#allocation9 + $0xd4] sm:$0xf]
        %v1756 = vld [vmem:[#allocation9 + $0xd8] sm:$0xf]
        %v1757 = vld [vmem:[#allocation9 + $0xdc] sm:$0xf]
        %v1758 = vld [vmem:[#allocation9 + $0xe0] sm:$0xf]
        %v1759 = vld [vmem:[#allocation9 + $0xe4] sm:$0xf]
        %v1760 = vld [vmem:[#allocation9 + $0xe8] sm:$0xf]
        %v1761 = vld [vmem:[#allocation9 + $0xec] sm:$0xf]
        %v1762 = vld [vmem:[#allocation9 + $0xf0] sm:$0xf]
        %v1763 = vld [vmem:[#allocation9 + $0xf4] sm:$0xf]
        %v1764 = vld [vmem:[#allocation9 + $0xf8] sm:$0xf]
        %v1765 = vld [vmem:[#allocation9 + $0xfc] sm:$0xf]
        %v1766 = vld [vmem:[#allocation9 + $0x100] sm:$0xf]
        %v1767 = vld [vmem:[#allocation9 + $0x104] sm:$0xf]
        %v1768 = vld [vmem:[#allocation9 + $0x108] sm:$0xf]
        %v1769 = vld [vmem:[#allocation9 + $0x10c] sm:$0xf]
        %v1770 = vld [vmem:[#allocation9 + $0x110] sm:$0xf]
        %v1771 = vld [vmem:[#allocation9 + $0x114] sm:$0xf]
        %v1772 = vld [vmem:[#allocation9 + $0x118] sm:$0xf]
        %v1773 = vld [vmem:[#allocation9 + $0x11c] sm:$0xf]
        %v1774 = vld [vmem:[#allocation9 + $0x120] sm:$0xf]
        %v1775 = vld [vmem:[#allocation9 + $0x124] sm:$0xf]
        %v1776 = vld [vmem:[#allocation9 + $0x128] sm:$0xf]
        %v1777 = vld [vmem:[#allocation9 + $0x12c] sm:$0xf]
        %v1778 = vld [vmem:[#allocation9 + $0x130] sm:$0xf]
        %v1779 = vld [vmem:[#allocation9 + $0x134] sm:$0xf]
        %v1780 = vld [vmem:[#allocation9 + $0x138] sm:$0xf]
        %v1781 = vld [vmem:[#allocation9 + $0x13c] sm:$0xf]
        %v1782 = vld [vmem:[#allocation9 + $0x140] sm:$0xf]
        %v1783 = vld [vmem:[#allocation9 + $0x144] sm:$0xf]
        %v1784 = vld [vmem:[#allocation9 + $0x148] sm:$0xf]
        %v1785 = vld [vmem:[#allocation9 + $0x14c] sm:$0xf]
        %v1786 = vld [vmem:[#allocation9 + $0x150] sm:$0xf]
        %v1787 = vld [vmem:[#allocation9 + $0x154] sm:$0xf]
        %v1788 = vld [vmem:[#allocation9 + $0x158] sm:$0xf]
        %v1789 = vld [vmem:[#allocation9 + $0x15c] sm:$0xf]
        %v1790 = vld [vmem:[#allocation9 + $0x160] sm:$0xf]
        %v1791 = vld [vmem:[#allocation9 + $0x164] sm:$0xf]
        %v1792 = vld [vmem:[#allocation9 + $0x168] sm:$0xf]
        %v1793 = vld [vmem:[#allocation9 + $0x16c] sm:$0xf]
        %v1794 = vld [vmem:[#allocation9 + $0x170] sm:$0xf]
        %v1795 = vld [vmem:[#allocation9 + $0x174] sm:$0xf]
        %v1796 = vld [vmem:[#allocation9 + $0x178] sm:$0xf]
        %v1797 = vld [vmem:[#allocation9 + $0x17c] sm:$0xf]
        %v1798 = vld [vmem:[#allocation9 + $0x180] sm:$0xf]
        %v1799 = vld [vmem:[#allocation9 + $0x184] sm:$0xf]
        %v1800 = vld [vmem:[#allocation9 + $0x188] sm:$0xf]
        %v1801 = vld [vmem:[#allocation9 + $0x18c] sm:$0xf]
        %v1802 = vld [vmem:[#allocation9 + $0x190] sm:$0xf]
        %v1803 = vld [vmem:[#allocation9 + $0x194] sm:$0xf]
        %v1804 = vld [vmem:[#allocation9 + $0x198] sm:$0xf]
        %v1805 = vld [vmem:[#allocation9 + $0x19c] sm:$0xf]
        %v1806 = vld [vmem:[#allocation9 + $0x1a0] sm:$0xf]
        %v1807 = vld [vmem:[#allocation9 + $0x1a4] sm:$0xf]
        %v1808 = vld [vmem:[#allocation9 + $0x1a8] sm:$0xf]
        %v1809 = vld [vmem:[#allocation9 + $0x1ac] sm:$0xf]
        %v1810 = vld [vmem:[#allocation9 + $0x1b0] sm:$0xf]
        %v1811 = vld [vmem:[#allocation9 + $0x1b4] sm:$0xf]
        %v1812 = vld [vmem:[#allocation9 + $0x1b8] sm:$0xf]
        %v1813 = vld [vmem:[#allocation9 + $0x1bc] sm:$0xf]
        %v1814 = vld [vmem:[#allocation9 + $0x1c0] sm:$0xf]
        %v1815 = vld [vmem:[#allocation9 + $0x1c4] sm:$0xf]
        %v1816 = vld [vmem:[#allocation9 + $0x1c8] sm:$0xf]
        %v1817 = vld [vmem:[#allocation9 + $0x1cc] sm:$0xf]
        %v1818 = vld [vmem:[#allocation9 + $0x1d0] sm:$0xf]
        %v1819 = vld [vmem:[#allocation9 + $0x1d4] sm:$0xf]
        %v1820 = vld [vmem:[#allocation9 + $0x1d8] sm:$0xf]
        %v1821 = vld [vmem:[#allocation9 + $0x1dc] sm:$0xf]
        %v1822 = vld [vmem:[#allocation9 + $0x1e0] sm:$0xf]
        %v1823 = vld [vmem:[#allocation9 + $0x1e4] sm:$0xf]
        %v1824 = vld [vmem:[#allocation9 + $0x1e8] sm:$0xf]
        %v1825 = vld [vmem:[#allocation9 + $0x1ec] sm:$0xf]
        %v1826 = vld [vmem:[#allocation9 + $0x1f0] sm:$0xf]
        %v1827 = vld [vmem:[#allocation9 + $0x1f4] sm:$0xf]
        %v1828 = vld [vmem:[#allocation9 + $0x1f8] sm:$0xf]
        %v1829 = vld [vmem:[#allocation9 + $0x1fc] sm:$0xf]
        %v1830 = vld [vmem:[#allocation9 + $0x200] sm:$0xf]
        %v1831 = vld [vmem:[#allocation9 + $0x204] sm:$0xf]
        %v1832 = vld [vmem:[#allocation9 + $0x208] sm:$0xf]
        %v1833 = vld [vmem:[#allocation9 + $0x20c] sm:$0xf]
        %v1834 = vld [vmem:[#allocation9 + $0x210] sm:$0xf]
        %v1835 = vld [vmem:[#allocation9 + $0x214] sm:$0xf]
        %v1836 = vld [vmem:[#allocation9 + $0x218] sm:$0xf]
        %v1837 = vld [vmem:[#allocation9 + $0x21c] sm:$0xf]
        %v1838 = vld [vmem:[#allocation9 + $0x220] sm:$0xf]
        %v1839 = vld [vmem:[#allocation9 + $0x224] sm:$0xf]
        %v1840 = vld [vmem:[#allocation9 + $0x228] sm:$0xf]
        %v1841 = vld [vmem:[#allocation9 + $0x22c] sm:$0xf]
        %v1842 = vld [vmem:[#allocation9 + $0x230] sm:$0xf]
        %v1843 = vld [vmem:[#allocation9 + $0x234] sm:$0xf]
        %v1844 = vld [vmem:[#allocation9 + $0x238] sm:$0xf]
        %v1845 = vld [vmem:[#allocation9 + $0x23c] sm:$0xf]
        %v1990 = vunpack.c.l.b16 %v1702
        %v1991 = vunpack.c.l.b16 %v1703
        %v1992 = vunpack.c.l.b16 %v1704
        %v1993 = vunpack.c.l.b16 %v1705
        %v1994 = vunpack.c.l.b16 %v1706
        %v1995 = vunpack.c.l.b16 %v1707
        %v1996 = vunpack.c.l.b16 %v1708
        %v1997 = vunpack.c.l.b16 %v1709
        %v1998 = vunpack.c.l.b16 %v1710
        %v1999 = vunpack.c.l.b16 %v1711
        %v2000 = vunpack.c.l.b16 %v1712
        %v2001 = vunpack.c.l.b16 %v1713
        %v2002 = vunpack.c.l.b16 %v1714
        %v2003 = vunpack.c.l.b16 %v1715
        %v2004 = vunpack.c.l.b16 %v1716
        %v2005 = vunpack.c.l.b16 %v1717
        %v2006 = vunpack.c.l.b16 %v1718
        %v2007 = vunpack.c.l.b16 %v1719
        %v2008 = vunpack.c.l.b16 %v1720
        %v2009 = vunpack.c.l.b16 %v1721
        %v2010 = vunpack.c.l.b16 %v1722
        %v2011 = vunpack.c.l.b16 %v1723
        %v2012 = vunpack.c.l.b16 %v1724
        %v2013 = vunpack.c.l.b16 %v1725
        %v2014 = vunpack.c.l.b16 %v1726
        %v2015 = vunpack.c.l.b16 %v1727
        %v2016 = vunpack.c.l.b16 %v1728
        %v2017 = vunpack.c.l.b16 %v1729
        %v2018 = vunpack.c.l.b16 %v1730
        %v2019 = vunpack.c.l.b16 %v1731
        %v2020 = vunpack.c.l.b16 %v1732
        %v2021 = vunpack.c.l.b16 %v1733
        %v2022 = vunpack.c.l.b16 %v1734
        %v2023 = vunpack.c.l.b16 %v1735
        %v2024 = vunpack.c.l.b16 %v1736
        %v2025 = vunpack.c.l.b16 %v1737
        %v2026 = vunpack.c.l.b16 %v1738
        %v2027 = vunpack.c.l.b16 %v1739
        %v2028 = vunpack.c.l.b16 %v1740
        %v2029 = vunpack.c.l.b16 %v1741
        %v2030 = vunpack.c.l.b16 %v1742
        %v2031 = vunpack.c.l.b16 %v1743
        %v2032 = vunpack.c.l.b16 %v1744
        %v2033 = vunpack.c.l.b16 %v1745
        %v2034 = vunpack.c.l.b16 %v1746
        %v2035 = vunpack.c.l.b16 %v1747
        %v2036 = vunpack.c.l.b16 %v1748
        %v2037 = vunpack.c.l.b16 %v1749
        %v2038 = vunpack.c.l.b16 %v1750
        %v2039 = vunpack.c.l.b16 %v1751
        %v2040 = vunpack.c.l.b16 %v1752
        %v2041 = vunpack.c.l.b16 %v1753
        %v2042 = vunpack.c.l.b16 %v1754
        %v2043 = vunpack.c.l.b16 %v1755
        %v2044 = vunpack.c.l.b16 %v1756
        %v2045 = vunpack.c.l.b16 %v1757
        %v2046 = vunpack.c.l.b16 %v1758
        %v2047 = vunpack.c.l.b16 %v1759
        %v2048 = vunpack.c.l.b16 %v1760
        %v2049 = vunpack.c.l.b16 %v1761
        %v2050 = vunpack.c.l.b16 %v1762
        %v2051 = vunpack.c.l.b16 %v1763
        %v2052 = vunpack.c.l.b16 %v1764
        %v2053 = vunpack.c.l.b16 %v1765
        %v2054 = vunpack.c.l.b16 %v1766
        %v2055 = vunpack.c.l.b16 %v1767
        %v2056 = vunpack.c.l.b16 %v1768
        %v2057 = vunpack.c.l.b16 %v1769
        %v2058 = vunpack.c.l.b16 %v1770
        %v2059 = vunpack.c.l.b16 %v1771
        %v2060 = vunpack.c.l.b16 %v1772
        %v2061 = vunpack.c.l.b16 %v1773
        %v2062 = vunpack.c.l.b16 %v1774
        %v2063 = vunpack.c.l.b16 %v1775
        %v2064 = vunpack.c.l.b16 %v1776
        %v2065 = vunpack.c.l.b16 %v1777
        %v2066 = vunpack.c.l.b16 %v1778
        %v2067 = vunpack.c.l.b16 %v1779
        %v2068 = vunpack.c.l.b16 %v1780
        %v2069 = vunpack.c.l.b16 %v1781
        %v2070 = vunpack.c.l.b16 %v1782
        %v2071 = vunpack.c.l.b16 %v1783
        %v2072 = vunpack.c.l.b16 %v1784
        %v2073 = vunpack.c.l.b16 %v1785
        %v2074 = vunpack.c.l.b16 %v1786
        %v2075 = vunpack.c.l.b16 %v1787
        %v2076 = vunpack.c.l.b16 %v1788
        %v2077 = vunpack.c.l.b16 %v1789
        %v2078 = vunpack.c.l.b16 %v1790
        %v2079 = vunpack.c.l.b16 %v1791
        %v2080 = vunpack.c.l.b16 %v1792
        %v2081 = vunpack.c.l.b16 %v1793
        %v2082 = vunpack.c.l.b16 %v1794
        %v2083 = vunpack.c.l.b16 %v1795
        %v2084 = vunpack.c.l.b16 %v1796
        %v2085 = vunpack.c.l.b16 %v1797
        %v2086 = vunpack.c.l.b16 %v1798
        %v2087 = vunpack.c.l.b16 %v1799
        %v2088 = vunpack.c.l.b16 %v1800
        %v2089 = vunpack.c.l.b16 %v1801
        %v2090 = vunpack.c.l.b16 %v1802
        %v2091 = vunpack.c.l.b16 %v1803
        %v2092 = vunpack.c.l.b16 %v1804
        %v2093 = vunpack.c.l.b16 %v1805
        %v2094 = vunpack.c.l.b16 %v1806
        %v2095 = vunpack.c.l.b16 %v1807
        %v2096 = vunpack.c.l.b16 %v1808
        %v2097 = vunpack.c.l.b16 %v1809
        %v2098 = vunpack.c.l.b16 %v1810
        %v2099 = vunpack.c.l.b16 %v1811
        %v2100 = vunpack.c.l.b16 %v1812
        %v2101 = vunpack.c.l.b16 %v1813
        %v2102 = vunpack.c.l.b16 %v1814
        %v2103 = vunpack.c.l.b16 %v1815
        %v2104 = vunpack.c.l.b16 %v1816
        %v2105 = vunpack.c.l.b16 %v1817
        %v2106 = vunpack.c.l.b16 %v1818
        %v2107 = vunpack.c.l.b16 %v1819
        %v2108 = vunpack.c.l.b16 %v1820
        %v2109 = vunpack.c.l.b16 %v1821
        %v2110 = vunpack.c.l.b16 %v1822
        %v2111 = vunpack.c.l.b16 %v1823
        %v2112 = vunpack.c.l.b16 %v1824
        %v2113 = vunpack.c.l.b16 %v1825
        %v2114 = vunpack.c.l.b16 %v1826
        %v2115 = vunpack.c.l.b16 %v1827
        %v2116 = vunpack.c.l.b16 %v1828
        %v2117 = vunpack.c.l.b16 %v1829
        %v2118 = vunpack.c.l.b16 %v1830
        %v2119 = vunpack.c.l.b16 %v1831
        %v2120 = vunpack.c.l.b16 %v1832
        %v2121 = vunpack.c.l.b16 %v1833
        %v2122 = vunpack.c.l.b16 %v1834
        %v2123 = vunpack.c.l.b16 %v1835
        %v2124 = vunpack.c.l.b16 %v1836
        %v2125 = vunpack.c.l.b16 %v1837
        %v2126 = vunpack.c.l.b16 %v1838
        %v2127 = vunpack.c.l.b16 %v1839
        %v2128 = vunpack.c.l.b16 %v1840
        %v2129 = vunpack.c.l.b16 %v1841
        %v2130 = vunpack.c.l.b16 %v1842
        %v2131 = vunpack.c.l.b16 %v1843
        %v2132 = vunpack.c.l.b16 %v1844
        %v2133 = vunpack.c.l.b16 %v1845
        %v2134 = vpack.c.b16 %v1991, %v1990
        %v2135 = vpack.c.b16 %v1993, %v1992
        %v2136 = vpack.c.b16 %v1995, %v1994
        %v2137 = vpack.c.b16 %v1997, %v1996
        %v2138 = vpack.c.b16 %v1999, %v1998
        %v2139 = vpack.c.b16 %v2001, %v2000
        %v2140 = vpack.c.b16 %v2003, %v2002
        %v2141 = vpack.c.b16 %v2005, %v2004
        %v2142 = vpack.c.b16 %v2007, %v2006
        %v2143 = vpack.c.b16 %v2009, %v2008
        %v2144 = vpack.c.b16 %v2011, %v2010
        %v2145 = vpack.c.b16 %v2013, %v2012
        %v2146 = vpack.c.b16 %v2015, %v2014
        %v2147 = vpack.c.b16 %v2017, %v2016
        %v2148 = vpack.c.b16 %v2019, %v2018
        %v2149 = vpack.c.b16 %v2021, %v2020
        %v2150 = vpack.c.b16 %v2023, %v2022
        %v2151 = vpack.c.b16 %v2025, %v2024
        %v2152 = vpack.c.b16 %v2027, %v2026
        %v2153 = vpack.c.b16 %v2029, %v2028
        %v2154 = vpack.c.b16 %v2031, %v2030
        %v2155 = vpack.c.b16 %v2033, %v2032
        %v2156 = vpack.c.b16 %v2035, %v2034
        %v2157 = vpack.c.b16 %v2037, %v2036
        %v2158 = vpack.c.b16 %v2039, %v2038
        %v2159 = vpack.c.b16 %v2041, %v2040
        %v2160 = vpack.c.b16 %v2043, %v2042
        %v2161 = vpack.c.b16 %v2045, %v2044
        %v2162 = vpack.c.b16 %v2047, %v2046
        %v2163 = vpack.c.b16 %v2049, %v2048
        %v2164 = vpack.c.b16 %v2051, %v2050
        %v2165 = vpack.c.b16 %v2053, %v2052
        %v2166 = vpack.c.b16 %v2055, %v2054
        %v2167 = vpack.c.b16 %v2057, %v2056
        %v2168 = vpack.c.b16 %v2059, %v2058
        %v2169 = vpack.c.b16 %v2061, %v2060
        %v2170 = vpack.c.b16 %v2063, %v2062
        %v2171 = vpack.c.b16 %v2065, %v2064
        %v2172 = vpack.c.b16 %v2067, %v2066
        %v2173 = vpack.c.b16 %v2069, %v2068
        %v2174 = vpack.c.b16 %v2071, %v2070
        %v2175 = vpack.c.b16 %v2073, %v2072
        %v2176 = vpack.c.b16 %v2075, %v2074
        %v2177 = vpack.c.b16 %v2077, %v2076
        %v2178 = vpack.c.b16 %v2079, %v2078
        %v2179 = vpack.c.b16 %v2081, %v2080
        %v2180 = vpack.c.b16 %v2083, %v2082
        %v2181 = vpack.c.b16 %v2085, %v2084
        %v2182 = vpack.c.b16 %v2087, %v2086
        %v2183 = vpack.c.b16 %v2089, %v2088
        %v2184 = vpack.c.b16 %v2091, %v2090
        %v2185 = vpack.c.b16 %v2093, %v2092
        %v2186 = vpack.c.b16 %v2095, %v2094
        %v2187 = vpack.c.b16 %v2097, %v2096
        %v2188 = vpack.c.b16 %v2099, %v2098
        %v2189 = vpack.c.b16 %v2101, %v2100
        %v2190 = vpack.c.b16 %v2103, %v2102
        %v2191 = vpack.c.b16 %v2105, %v2104
        %v2192 = vpack.c.b16 %v2107, %v2106
        %v2193 = vpack.c.b16 %v2109, %v2108
        %v2194 = vpack.c.b16 %v2111, %v2110
        %v2195 = vpack.c.b16 %v2113, %v2112
        %v2196 = vpack.c.b16 %v2115, %v2114
        %v2197 = vpack.c.b16 %v2117, %v2116
        %v2198 = vpack.c.b16 %v2119, %v2118
        %v2199 = vpack.c.b16 %v2121, %v2120
        %v2200 = vpack.c.b16 %v2123, %v2122
        %v2201 = vpack.c.b16 %v2125, %v2124
        %v2202 = vpack.c.b16 %v2127, %v2126
        %v2203 = vpack.c.b16 %v2129, %v2128
        %v2204 = vpack.c.b16 %v2131, %v2130
        %v2205 = vpack.c.b16 %v2133, %v2132
        %2278 = vmatprep.subr.bf16.mxu0 0
        %2279 = vmatpush1.bf16.msra.mxu0 %v2134
        %2280 = vmatprep.subr.bf16.mxu0 0
        %2281 = vmatpush1.bf16.msra.mxu0 %v2135
        %2282 = vmatprep.subr.bf16.mxu0 0
        %2283 = vmatpush1.bf16.msra.mxu0 %v2136
        %2284 = vmatprep.subr.bf16.mxu0 0
        %2285 = vmatpush1.bf16.msra.mxu0 %v2137
        %2286 = vmatprep.subr.bf16.mxu0 0
        %2287 = vmatpush1.bf16.msra.mxu0 %v2138
        %2288 = vmatprep.subr.bf16.mxu0 0
        %2289 = vmatpush1.bf16.msra.mxu0 %v2139
        %2290 = vmatprep.subr.bf16.mxu0 0
        %2291 = vmatpush1.bf16.msra.mxu0 %v2140
        %2292 = vmatprep.subr.bf16.mxu0 0
        %2293 = vmatpush1.bf16.msra.mxu0 %v2141
        %2294 = vmatprep.subr.bf16.mxu0 0
        %2295 = vmatpush1.bf16.msra.mxu0 %v2142
        %2296 = vmatprep.subr.bf16.mxu0 0
        %2297 = vmatpush1.bf16.msra.mxu0 %v2143
        %2298 = vmatprep.subr.bf16.mxu0 0
        %2299 = vmatpush1.bf16.msra.mxu0 %v2144
        %2300 = vmatprep.subr.bf16.mxu0 0
        %2301 = vmatpush1.bf16.msra.mxu0 %v2145
        %2302 = vmatprep.subr.bf16.mxu0 0
        %2303 = vmatpush1.bf16.msra.mxu0 %v2146
        %2304 = vmatprep.subr.bf16.mxu0 0
        %2305 = vmatpush1.bf16.msra.mxu0 %v2147
        %2306 = vmatprep.subr.bf16.mxu0 0
        %2307 = vmatpush1.bf16.msra.mxu0 %v2148
        %2308 = vmatprep.subr.bf16.mxu0 0
        %2309 = vmatpush1.bf16.msra.mxu0 %v2149
        %2310 = vmatprep.mubr.bf16.mxu0 %v1631
        %2311 = vmatmul.mubr.bf16.gmra.mrb[0].mxu0 %v1630
        %v2312 = vpop.f32.mrb[0].mxu0
        %v2313 = vadd.f32 0.0, %v2312
        %v2314 = vpop.f32.mrb[0].mxu0
        %v2315 = vpop.f32.mrb[0].mxu0
        %v2316 = vadd.f32 0.0, %v2315
        %v2317 = vpop.f32.mrb[0].mxu0
        %2318 = vmatprep.mubr.bf16.mxu0 %v1640
        %2319 = vmatmul.mubr.bf16.gmra.mrb[0].mxu0 %v1639
        %v2320 = vpop.f32.mrb[0].mxu0
        %v2321 = vadd.f32 0.0, %v2320
        %v2322 = vpop.f32.mrb[0].mxu0
        %v2323 = vpop.f32.mrb[0].mxu0
        %v2324 = vadd.f32 0.0, %v2323
        %v2325 = vpop.f32.mrb[0].mxu0
        %2326 = vmatprep.mubr.bf16.mxu0 %v1649
        %2327 = vmatmul.mubr.bf16.gmra.mrb[0].mxu0 %v1648
        %v2328 = vpop.f32.mrb[0].mxu0
        %v2329 = vadd.f32 0.0, %v2328
        %v2330 = vpop.f32.mrb[0].mxu0
        %v2331 = vpop.f32.mrb[0].mxu0
        %v2332 = vadd.f32 0.0, %v2331
        %v2333 = vpop.f32.mrb[0].mxu0
        %2334 = vmatprep.mubr.bf16.mxu0 %v1658
        %2335 = vmatmul.mubr.bf16.gmra.mrb[0].mxu0 %v1657
        %v2336 = vpop.f32.mrb[0].mxu0
        %v2337 = vadd.f32 0.0, %v2336
        %v2338 = vpop.f32.mrb[0].mxu0
        %v2339 = vpop.f32.mrb[0].mxu0
        %v2340 = vadd.f32 0.0, %v2339
        %v2341 = vpop.f32.mrb[0].mxu0
        %2342 = vmatprep.mubr.bf16.mxu0 %v1667
        %2343 = vmatmul.mubr.bf16.gmra.mrb[0].mxu0 %v1666
        %v2344 = vpop.f32.mrb[0].mxu0
        %v2345 = vadd.f32 0.0, %v2344
        %v2346 = vpop.f32.mrb[0].mxu0
        %v2347 = vpop.f32.mrb[0].mxu0
        %v2348 = vadd.f32 0.0, %v2347
        %v2349 = vpop.f32.mrb[0].mxu0
        %2350 = vmatprep.mubr.bf16.mxu0 %v1676
        %2351 = vmatmul.mubr.bf16.gmra.mrb[0].mxu0 %v1675
        %v2352 = vpop.f32.mrb[0].mxu0
        %v2353 = vadd.f32 0.0, %v2352
        %v2354 = vpop.f32.mrb[0].mxu0
        %v2355 = vpop.f32.mrb[0].mxu0
        %v2356 = vadd.f32 0.0, %v2355
        %v2357 = vpop.f32.mrb[0].mxu0
        %2358 = vmatprep.mubr.bf16.mxu0 %v1685
        %2359 = vmatmul.mubr.bf16.gmra.mrb[0].mxu0 %v1684
        %v2360 = vpop.f32.mrb[0].mxu0
        %v2361 = vadd.f32 0.0, %v2360
        %v2362 = vpop.f32.mrb[0].mxu0
        %v2363 = vpop.f32.mrb[0].mxu0
        %v2364 = vadd.f32 0.0, %v2363
        %v2365 = vpop.f32.mrb[0].mxu0
        %2366 = vmatprep.mubr.bf16.mxu0 %v1694
        %2367 = vmatmul.mubr.bf16.gmra.mrb[0].mxu0 %v1693
        %v2368 = vpop.f32.mrb[0].mxu0
        %v2369 = vadd.f32 0.0, %v2368
        %v2370 = vpop.f32.mrb[0].mxu0
        %v2371 = vpop.f32.mrb[0].mxu0
        %v2372 = vadd.f32 0.0, %v2371
        %v2373 = vpop.f32.mrb[0].mxu0
        %2374 = vdwg.mxu0
        %2375 = vmatprep.subr.bf16.mxu0 0
        %2376 = vmatpush1.bf16.msra.mxu0 %v2150
        %2377 = vmatprep.subr.bf16.mxu0 0
        %2378 = vmatpush1.bf16.msra.mxu0 %v2151
        %2379 = vmatprep.subr.bf16.mxu0 0
        %2380 = vmatpush1.bf16.msra.mxu0 %v2152
        %2381 = vmatprep.subr.bf16.mxu0 0
        %2382 = vmatpush1.bf16.msra.mxu0 %v2153
        %2383 = vmatprep.subr.bf16.mxu0 0
        %2384 = vmatpush1.bf16.msra.mxu0 %v2154
        %2385 = vmatprep.subr.bf16.mxu0 0
        %2386 = vmatpush1.bf16.msra.mxu0 %v2155
        %2387 = vmatprep.subr.bf16.mxu0 0
        %2388 = vmatpush1.bf16.msra.mxu0 %v2156
        %2389 = vmatprep.subr.bf16.mxu0 0
        %2390 = vmatpush1.bf16.msra.mxu0 %v2157
        %2391 = vmatprep.subr.bf16.mxu0 0
        %2392 = vmatpush1.bf16.msra.mxu0 %v2158
        %2393 = vmatprep.subr.bf16.mxu0 0
        %2394 = vmatpush1.bf16.msra.mxu0 %v2159
        %2395 = vmatprep.subr.bf16.mxu0 0
        %2396 = vmatpush1.bf16.msra.mxu0 %v2160
        %2397 = vmatprep.subr.bf16.mxu0 0
        %2398 = vmatpush1.bf16.msra.mxu0 %v2161
        %2399 = vmatprep.subr.bf16.mxu0 0
        %2400 = vmatpush1.bf16.msra.mxu0 %v2162
        %2401 = vmatprep.subr.bf16.mxu0 0
        %2402 = vmatpush1.bf16.msra.mxu0 %v2163
        %2403 = vmatprep.subr.bf16.mxu0 0
        %2404 = vmatpush1.bf16.msra.mxu0 %v2164
        %2405 = vmatprep.subr.bf16.mxu0 0
        %2406 = vmatpush1.bf16.msra.mxu0 %v2165
        %2407 = vmatprep.mubr.bf16.mxu0 %v1633
        %2408 = vmatmul.mubr.bf16.gmra.mrb[0].mxu0 %v1632
        %v2409 = vpop.f32.mrb[0].mxu0
        %v2410 = vadd.f32 %v2313, %v2409
        %v2411 = vpop.f32.mrb[0].mxu0
        %v2412 = vpop.f32.mrb[0].mxu0
        %v2413 = vadd.f32 %v2316, %v2412
        %v2414 = vpop.f32.mrb[0].mxu0
        %2415 = vmatprep.mubr.bf16.mxu0 %v1642
        %2416 = vmatmul.mubr.bf16.gmra.mrb[0].mxu0 %v1641
        %v2417 = vpop.f32.mrb[0].mxu0
        %v2418 = vadd.f32 %v2321, %v2417
        %v2419 = vpop.f32.mrb[0].mxu0
        %v2420 = vpop.f32.mrb[0].mxu0
        %v2421 = vadd.f32 %v2324, %v2420
        %v2422 = vpop.f32.mrb[0].mxu0
        %2423 = vmatprep.mubr.bf16.mxu0 %v1651
        %2424 = vmatmul.mubr.bf16.gmra.mrb[0].mxu0 %v1650
        %v2425 = vpop.f32.mrb[0].mxu0
        %v2426 = vadd.f32 %v2329, %v2425
        %v2427 = vpop.f32.mrb[0].mxu0
        %v2428 = vpop.f32.mrb[0].mxu0
        %v2429 = vadd.f32 %v2332, %v2428
        %v2430 = vpop.f32.mrb[0].mxu0
        %2431 = vmatprep.mubr.bf16.mxu0 %v1660
        %2432 = vmatmul.mubr.bf16.gmra.mrb[0].mxu0 %v1659
        %v2433 = vpop.f32.mrb[0].mxu0
        %v2434 = vadd.f32 %v2337, %v2433
        %v2435 = vpop.f32.mrb[0].mxu0
        %v2436 = vpop.f32.mrb[0].mxu0
        %v2437 = vadd.f32 %v2340, %v2436
        %v2438 = vpop.f32.mrb[0].mxu0
        %2439 = vmatprep.mubr.bf16.mxu0 %v1669
        %2440 = vmatmul.mubr.bf16.gmra.mrb[0].mxu0 %v1668
        %v2441 = vpop.f32.mrb[0].mxu0
        %v2442 = vadd.f32 %v2345, %v2441
        %v2443 = vpop.f32.mrb[0].mxu0
        %v2444 = vpop.f32.mrb[0].mxu0
        %v2445 = vadd.f32 %v2348, %v2444
        %v2446 = vpop.f32.mrb[0].mxu0
        %2447 = vmatprep.mubr.bf16.mxu0 %v1678
        %2448 = vmatmul.mubr.bf16.gmra.mrb[0].mxu0 %v1677
        %v2449 = vpop.f32.mrb[0].mxu0
        %v2450 = vadd.f32 %v2353, %v2449
        %v2451 = vpop.f32.mrb[0].mxu0
        %v2452 = vpop.f32.mrb[0].mxu0
        %v2453 = vadd.f32 %v2356, %v2452
        %v2454 = vpop.f32.mrb[0].mxu0
        %2455 = vmatprep.mubr.bf16.mxu0 %v1687
        %2456 = vmatmul.mubr.bf16.gmra.mrb[0].mxu0 %v1686
        %v2457 = vpop.f32.mrb[0].mxu0
        %v2458 = vadd.f32 %v2361, %v2457
        %v2459 = vpop.f32.mrb[0].mxu0
        %v2460 = vpop.f32.mrb[0].mxu0
        %v2461 = vadd.f32 %v2364, %v2460
        %v2462 = vpop.f32.mrb[0].mxu0
        %2463 = vmatprep.mubr.bf16.mxu0 %v1696
        %2464 = vmatmul.mubr.bf16.gmra.mrb[0].mxu0 %v1695
        %v2465 = vpop.f32.mrb[0].mxu0
        %v2466 = vadd.f32 %v2369, %v2465
        %v2467 = vpop.f32.mrb[0].mxu0
        %v2468 = vpop.f32.mrb[0].mxu0
        %v2469 = vadd.f32 %v2372, %v2468
        %v2470 = vpop.f32.mrb[0].mxu0
        %2471 = vdwg.mxu0
        %2472 = vmatprep.subr.bf16.mxu0 0
        %2473 = vmatpush1.bf16.msra.mxu0 %v2166
        %2474 = vmatprep.subr.bf16.mxu0 0
        %2475 = vmatpush1.bf16.msra.mxu0 %v2167
        %2476 = vmatprep.subr.bf16.mxu0 0
        %2477 = vmatpush1.bf16.msra.mxu0 %v2168
        %2478 = vmatprep.subr.bf16.mxu0 0
        %2479 = vmatpush1.bf16.msra.mxu0 %v2169
        %2480 = vmatprep.subr.bf16.mxu0 0
        %2481 = vmatpush1.bf16.msra.mxu0 %v2170
        %2482 = vmatprep.subr.bf16.mxu0 0
        %2483 = vmatpush1.bf16.msra.mxu0 %v2171
        %2484 = vmatprep.subr.bf16.mxu0 0
        %2485 = vmatpush1.bf16.msra.mxu0 %v2172
        %2486 = vmatprep.subr.bf16.mxu0 0
        %2487 = vmatpush1.bf16.msra.mxu0 %v2173
        %2488 = vmatprep.subr.bf16.mxu0 0
        %2489 = vmatpush1.bf16.msra.mxu0 %v2174
        %2490 = vmatprep.subr.bf16.mxu0 0
        %2491 = vmatpush1.bf16.msra.mxu0 %v2175
        %2492 = vmatprep.subr.bf16.mxu0 0
        %2493 = vmatpush1.bf16.msra.mxu0 %v2176
        %2494 = vmatprep.subr.bf16.mxu0 0
        %2495 = vmatpush1.bf16.msra.mxu0 %v2177
        %2496 = vmatprep.subr.bf16.mxu0 0
        %2497 = vmatpush1.bf16.msra.mxu0 %v2178
        %2498 = vmatprep.subr.bf16.mxu0 0
        %2499 = vmatpush1.bf16.msra.mxu0 %v2179
        %2500 = vmatprep.subr.bf16.mxu0 0
        %2501 = vmatpush1.bf16.msra.mxu0 %v2180
        %2502 = vmatprep.subr.bf16.mxu0 0
        %2503 = vmatpush1.bf16.msra.mxu0 %v2181
        %2504 = vmatprep.mubr.bf16.mxu0 %v1635
        %2505 = vmatmul.mubr.bf16.gmra.mrb[0].mxu0 %v1634
        %v2506 = vpop.f32.mrb[0].mxu0
        %v2507 = vadd.f32 %v2410, %v2506
        %v2508 = vpop.f32.mrb[0].mxu0
        %v2509 = vpop.f32.mrb[0].mxu0
        %v2510 = vadd.f32 %v2413, %v2509
        %v2511 = vpop.f32.mrb[0].mxu0
        %2512 = vmatprep.mubr.bf16.mxu0 %v1644
        %2513 = vmatmul.mubr.bf16.gmra.mrb[0].mxu0 %v1643
        %v2514 = vpop.f32.mrb[0].mxu0
        %v2515 = vadd.f32 %v2418, %v2514
        %v2516 = vpop.f32.mrb[0].mxu0
        %v2517 = vpop.f32.mrb[0].mxu0
        %v2518 = vadd.f32 %v2421, %v2517
        %v2519 = vpop.f32.mrb[0].mxu0
        %2520 = vmatprep.mubr.bf16.mxu0 %v1653
        %2521 = vmatmul.mubr.bf16.gmra.mrb[0].mxu0 %v1652
        %v2522 = vpop.f32.mrb[0].mxu0
        %v2523 = vadd.f32 %v2426, %v2522
        %v2524 = vpop.f32.mrb[0].mxu0
        %v2525 = vpop.f32.mrb[0].mxu0
        %v2526 = vadd.f32 %v2429, %v2525
        %v2527 = vpop.f32.mrb[0].mxu0
        %2528 = vmatprep.mubr.bf16.mxu0 %v1662
        %2529 = vmatmul.mubr.bf16.gmra.mrb[0].mxu0 %v1661
        %v2530 = vpop.f32.mrb[0].mxu0
        %v2531 = vadd.f32 %v2434, %v2530
        %v2532 = vpop.f32.mrb[0].mxu0
        %v2533 = vpop.f32.mrb[0].mxu0
        %v2534 = vadd.f32 %v2437, %v2533
        %v2535 = vpop.f32.mrb[0].mxu0
        %2536 = vmatprep.mubr.bf16.mxu0 %v1671
        %2537 = vmatmul.mubr.bf16.gmra.mrb[0].mxu0 %v1670
        %v2538 = vpop.f32.mrb[0].mxu0
        %v2539 = vadd.f32 %v2442, %v2538
        %v2540 = vpop.f32.mrb[0].mxu0
        %v2541 = vpop.f32.mrb[0].mxu0
        %v2542 = vadd.f32 %v2445, %v2541
        %v2543 = vpop.f32.mrb[0].mxu0
        %2544 = vmatprep.mubr.bf16.mxu0 %v1680
        %2545 = vmatmul.mubr.bf16.gmra.mrb[0].mxu0 %v1679
        %v2546 = vpop.f32.mrb[0].mxu0
        %v2547 = vadd.f32 %v2450, %v2546
        %v2548 = vpop.f32.mrb[0].mxu0
        %v2549 = vpop.f32.mrb[0].mxu0
        %v2550 = vadd.f32 %v2453, %v2549
        %v2551 = vpop.f32.mrb[0].mxu0
        %2552 = vmatprep.mubr.bf16.mxu0 %v1689
        %2553 = vmatmul.mubr.bf16.gmra.mrb[0].mxu0 %v1688
        %v2554 = vpop.f32.mrb[0].mxu0
        %v2555 = vadd.f32 %v2458, %v2554
        %v2556 = vpop.f32.mrb[0].mxu0
        %v2557 = vpop.f32.mrb[0].mxu0
        %v2558 = vadd.f32 %v2461, %v2557
        %v2559 = vpop.f32.mrb[0].mxu0
        %2560 = vmatprep.mubr.bf16.mxu0 %v1698
        %2561 = vmatmul.mubr.bf16.gmra.mrb[0].mxu0 %v1697
        %v2562 = vpop.f32.mrb[0].mxu0
        %v2563 = vadd.f32 %v2466, %v2562
        %v2564 = vpop.f32.mrb[0].mxu0
        %v2565 = vpop.f32.mrb[0].mxu0
        %v2566 = vadd.f32 %v2469, %v2565
        %v2567 = vpop.f32.mrb[0].mxu0
        %2568 = vdwg.mxu0
        %2569 = vmatprep.subr.bf16.mxu0 0
        %2570 = vmatpush1.bf16.msra.mxu0 %v2182
        %2571 = vmatprep.subr.bf16.mxu0 0
        %2572 = vmatpush1.bf16.msra.mxu0 %v2183
        %2573 = vmatprep.subr.bf16.mxu0 0
        %2574 = vmatpush1.bf16.msra.mxu0 %v2184
        %2575 = vmatprep.subr.bf16.mxu0 0
        %2576 = vmatpush1.bf16.msra.mxu0 %v2185
        %2577 = vmatprep.subr.bf16.mxu0 0
        %2578 = vmatpush1.bf16.msra.mxu0 %v2186
        %2579 = vmatprep.subr.bf16.mxu0 0
        %2580 = vmatpush1.bf16.msra.mxu0 %v2187
        %2581 = vmatprep.subr.bf16.mxu0 0
        %2582 = vmatpush1.bf16.msra.mxu0 %v2188
        %2583 = vmatprep.subr.bf16.mxu0 0
        %2584 = vmatpush1.bf16.msra.mxu0 %v2189
        %2585 = vmatprep.subr.bf16.mxu0 0
        %2586 = vmatpush1.bf16.msra.mxu0 %v2190
        %2587 = vmatprep.subr.bf16.mxu0 0
        %2588 = vmatpush1.bf16.msra.mxu0 %v2191
        %2589 = vmatprep.subr.bf16.mxu0 0
        %2590 = vmatpush1.bf16.msra.mxu0 %v2192
        %2591 = vmatprep.subr.bf16.mxu0 0
        %2592 = vmatpush1.bf16.msra.mxu0 %v2193
        %2593 = vmatprep.subr.bf16.mxu0 0
        %2594 = vmatpush1.bf16.msra.mxu0 %v2194
        %2595 = vmatprep.subr.bf16.mxu0 0
        %2596 = vmatpush1.bf16.msra.mxu0 %v2195
        %2597 = vmatprep.subr.bf16.mxu0 0
        %2598 = vmatpush1.bf16.msra.mxu0 %v2196
        %2599 = vmatprep.subr.bf16.mxu0 0
        %2600 = vmatpush1.bf16.msra.mxu0 %v2197
        %2601 = vmatprep.mubr.bf16.mxu0 %v1637
        %2602 = vmatmul.mubr.bf16.gmra.mrb[0].mxu0 %v1636
        %v2603 = vpop.f32.mrb[0].mxu0
        %v2604 = vadd.f32 %v2507, %v2603
        %v2605 = vpop.f32.mrb[0].mxu0
        %v2606 = vpop.f32.mrb[0].mxu0
        %v2607 = vadd.f32 %v2510, %v2606
        %v2608 = vpop.f32.mrb[0].mxu0
        %2609 = vmatprep.mubr.bf16.mxu0 %v1646
        %2610 = vmatmul.mubr.bf16.gmra.mrb[0].mxu0 %v1645
        %v2611 = vpop.f32.mrb[0].mxu0
        %v2612 = vadd.f32 %v2515, %v2611
        %v2613 = vpop.f32.mrb[0].mxu0
        %v2614 = vpop.f32.mrb[0].mxu0
        %v2615 = vadd.f32 %v2518, %v2614
        %v2616 = vpop.f32.mrb[0].mxu0
        %2617 = vmatprep.mubr.bf16.mxu0 %v1655
        %2618 = vmatmul.mubr.bf16.gmra.mrb[0].mxu0 %v1654
        %v2619 = vpop.f32.mrb[0].mxu0
        %v2620 = vadd.f32 %v2523, %v2619
        %v2621 = vpop.f32.mrb[0].mxu0
        %v2622 = vpop.f32.mrb[0].mxu0
        %v2623 = vadd.f32 %v2526, %v2622
        %v2624 = vpop.f32.mrb[0].mxu0
        %2625 = vmatprep.mubr.bf16.mxu0 %v1664
        %2626 = vmatmul.mubr.bf16.gmra.mrb[0].mxu0 %v1663
        %v2627 = vpop.f32.mrb[0].mxu0
        %v2628 = vadd.f32 %v2531, %v2627
        %v2629 = vpop.f32.mrb[0].mxu0
        %v2630 = vpop.f32.mrb[0].mxu0
        %v2631 = vadd.f32 %v2534, %v2630
        %v2632 = vpop.f32.mrb[0].mxu0
        %2633 = vmatprep.mubr.bf16.mxu0 %v1673
        %2634 = vmatmul.mubr.bf16.gmra.mrb[0].mxu0 %v1672
        %v2635 = vpop.f32.mrb[0].mxu0
        %v2636 = vadd.f32 %v2539, %v2635
        %v2637 = vpop.f32.mrb[0].mxu0
        %v2638 = vpop.f32.mrb[0].mxu0
        %v2639 = vadd.f32 %v2542, %v2638
        %v2640 = vpop.f32.mrb[0].mxu0
        %2641 = vmatprep.mubr.bf16.mxu0 %v1682
        %2642 = vmatmul.mubr.bf16.gmra.mrb[0].mxu0 %v1681
        %v2643 = vpop.f32.mrb[0].mxu0
        %v2644 = vadd.f32 %v2547, %v2643
        %v2645 = vpop.f32.mrb[0].mxu0
        %v2646 = vpop.f32.mrb[0].mxu0
        %v2647 = vadd.f32 %v2550, %v2646
        %v2648 = vpop.f32.mrb[0].mxu0
        %2649 = vmatprep.mubr.bf16.mxu0 %v1691
        %2650 = vmatmul.mubr.bf16.gmra.mrb[0].mxu0 %v1690
        %v2651 = vpop.f32.mrb[0].mxu0
        %v2652 = vadd.f32 %v2555, %v2651
        %v2653 = vpop.f32.mrb[0].mxu0
        %v2654 = vpop.f32.mrb[0].mxu0
        %v2655 = vadd.f32 %v2558, %v2654
        %v2656 = vpop.f32.mrb[0].mxu0
        %2657 = vmatprep.mubr.bf16.mxu0 %v1700
        %2658 = vmatmul.mubr.bf16.gmra.mrb[0].mxu0 %v1699
        %v2659 = vpop.f32.mrb[0].mxu0
        %v2660 = vadd.f32 %v2563, %v2659
        %v2661 = vpop.f32.mrb[0].mxu0
        %v2662 = vpop.f32.mrb[0].mxu0
        %v2663 = vadd.f32 %v2566, %v2662
        %v2664 = vpop.f32.mrb[0].mxu0
        %2665 = vdwg.mxu0
        %2666 = vmatprep.subr.bf16.mxu0 0
        %2667 = vmatpush1.bf16.msra.mxu0 %v2198
        %2668 = vmatprep.subr.bf16.mxu0 0
        %2669 = vmatpush1.bf16.msra.mxu0 %v2199
        %2670 = vmatprep.subr.bf16.mxu0 0
        %2671 = vmatpush1.bf16.msra.mxu0 %v2200
        %2672 = vmatprep.subr.bf16.mxu0 0
        %2673 = vmatpush1.bf16.msra.mxu0 %v2201
        %2674 = vmatprep.subr.bf16.mxu0 0
        %2675 = vmatpush1.bf16.msra.mxu0 %v2202
        %2676 = vmatprep.subr.bf16.mxu0 0
        %2677 = vmatpush1.bf16.msra.mxu0 %v2203
        %2678 = vmatprep.subr.bf16.mxu0 0
        %2679 = vmatpush1.bf16.msra.mxu0 %v2204
        %2680 = vmatprep.subr.bf16.mxu0 0
        %2681 = vmatpush1.bf16.msra.mxu0 %v2205
        %2682 = vmatprep.subr.bf16.mxu0 0
        %2683 = vmatpush1.bf16.msra.mxu0 0
        %2684 = vmatprep.subr.bf16.mxu0 0
        %2685 = vmatpush1.bf16.msra.mxu0 0
        %2686 = vmatprep.subr.bf16.mxu0 0
        %2687 = vmatpush1.bf16.msra.mxu0 0
        %2688 = vmatprep.subr.bf16.mxu0 0
        %2689 = vmatpush1.bf16.msra.mxu0 0
        %2690 = vmatprep.subr.bf16.mxu0 0
        %2691 = vmatpush1.bf16.msra.mxu0 0
        %2692 = vmatprep.subr.bf16.mxu0 0
        %2693 = vmatpush1.bf16.msra.mxu0 0
        %2694 = vmatprep.subr.bf16.mxu0 0
        %2695 = vmatpush1.bf16.msra.mxu0 0
        %2696 = vmatprep.subr.bf16.mxu0 0
        %2697 = vmatpush1.bf16.msra.mxu0 0
        %2698 = vmatprep.mubr.bf16.mxu0 0
        %2699 = vmatmul.mubr.bf16.gmra.mrb[0].mxu0 %v1638
        %v2700 = vpop.f32.mrb[0].mxu0
        %v2701 = vadd.f32 %v2604, %v2700
        %v2702 = vpop.f32.mrb[0].mxu0
        %v2703 = vpop.f32.mrb[0].mxu0
        %v2704 = vadd.f32 %v2607, %v2703
        %v2705 = vpop.f32.mrb[0].mxu0
        %2706 = vmatprep.mubr.bf16.mxu0 0
        %2707 = vmatmul.mubr.bf16.gmra.mrb[0].mxu0 %v1647
        %v2708 = vpop.f32.mrb[0].mxu0
        %v2709 = vadd.f32 %v2612, %v2708
        %v2710 = vpop.f32.mrb[0].mxu0
        %v2711 = vpop.f32.mrb[0].mxu0
        %v2712 = vadd.f32 %v2615, %v2711
        %v2713 = vpop.f32.mrb[0].mxu0
        %2714 = vmatprep.mubr.bf16.mxu0 0
        %2715 = vmatmul.mubr.bf16.gmra.mrb[0].mxu0 %v1656
        %v2716 = vpop.f32.mrb[0].mxu0
        %v2717 = vadd.f32 %v2620, %v2716
        %v2718 = vpop.f32.mrb[0].mxu0
        %v2719 = vpop.f32.mrb[0].mxu0
        %v2720 = vadd.f32 %v2623, %v2719
        %v2721 = vpop.f32.mrb[0].mxu0
        %2722 = vmatprep.mubr.bf16.mxu0 0
        %2723 = vmatmul.mubr.bf16.gmra.mrb[0].mxu0 %v1665
        %v2724 = vpop.f32.mrb[0].mxu0
        %v2725 = vadd.f32 %v2628, %v2724
        %v2726 = vpop.f32.mrb[0].mxu0
        %v2727 = vpop.f32.mrb[0].mxu0
        %v2728 = vadd.f32 %v2631, %v2727
        %v2729 = vpop.f32.mrb[0].mxu0
        %2730 = vmatprep.mubr.bf16.mxu0 0
        %2731 = vmatmul.mubr.bf16.gmra.mrb[0].mxu0 %v1674
        %v2732 = vpop.f32.mrb[0].mxu0
        %v2733 = vadd.f32 %v2636, %v2732
        %v2734 = vpop.f32.mrb[0].mxu0
        %v2735 = vpop.f32.mrb[0].mxu0
        %v2736 = vadd.f32 %v2639, %v2735
        %v2737 = vpop.f32.mrb[0].mxu0
        %2738 = vmatprep.mubr.bf16.mxu0 0
        %2739 = vmatmul.mubr.bf16.gmra.mrb[0].mxu0 %v1683
        %v2740 = vpop.f32.mrb[0].mxu0
        %v2741 = vadd.f32 %v2644, %v2740
        %v2742 = vpop.f32.mrb[0].mxu0
        %v2743 = vpop.f32.mrb[0].mxu0
        %v2744 = vadd.f32 %v2647, %v2743
        %v2745 = vpop.f32.mrb[0].mxu0
        %2746 = vmatprep.mubr.bf16.mxu0 0
        %2747 = vmatmul.mubr.bf16.gmra.mrb[0].mxu0 %v1692
        %v2748 = vpop.f32.mrb[0].mxu0
        %v2749 = vadd.f32 %v2652, %v2748
        %v2750 = vpop.f32.mrb[0].mxu0
        %v2751 = vpop.f32.mrb[0].mxu0
        %v2752 = vadd.f32 %v2655, %v2751
        %v2753 = vpop.f32.mrb[0].mxu0
        %2754 = vmatprep.mubr.bf16.mxu0 0
        %2755 = vmatmul.mubr.bf16.gmra.mrb[0].mxu0 %v1701
        %v2756 = vpop.f32.mrb[0].mxu0
        %v2757 = vadd.f32 %v2660, %v2756
        %v2758 = vpop.f32.mrb[0].mxu0
        %v2759 = vpop.f32.mrb[0].mxu0
        %v2760 = vadd.f32 %v2663, %v2759
        %v2761 = vpop.f32.mrb[0].mxu0
        %2762 = vdwg.mxu0
        %v2763 = vld [vmem:[%s5] sm:$0x1]
        %v2765 = vlaneseq
        %v2766 = vshrl.u32 %v2765, 7
        %v2767 = vsub.s32 0, %v2766
        %v2768 = vrot.slane %v2763, %v2767
        %v2770 = vmul.f32 %v2701, %v2768
        %v2771 = vmul.f32 %v2704, %v2768
        %v2772 = vmul.f32 %v2709, %v2768
        %v2773 = vmul.f32 %v2712, %v2768
        %v2774 = vmul.f32 %v2717, %v2768
        %v2775 = vmul.f32 %v2720, %v2768
        %v2776 = vmul.f32 %v2725, %v2768
        %v2777 = vmul.f32 %v2728, %v2768
        %v2778 = vmul.f32 %v2733, %v2768
        %v2779 = vmul.f32 %v2736, %v2768
        %v2780 = vmul.f32 %v2741, %v2768
        %v2781 = vmul.f32 %v2744, %v2768
        %v2782 = vmul.f32 %v2749, %v2768
        %v2783 = vmul.f32 %v2752, %v2768
        %v2784 = vmul.f32 %v2757, %v2768
        %v2785 = vmul.f32 %v2760, %v2768
        %v2786 = vld [vmem:[%s6] sm:$0x1]
        %v2788 = vlaneseq
        %v2789 = vshrl.u32 %v2788, 7
        %v2790 = vsub.s32 0, %v2789
        %v2791 = vrot.slane %v2786, %v2790
        %v2793 = vadd.f32 %v2770, %v2791
        %v2794 = vadd.f32 %v2771, %v2791
        %v2795 = vadd.f32 %v2772, %v2791
        %v2796 = vadd.f32 %v2773, %v2791
        %v2797 = vadd.f32 %v2774, %v2791
        %v2798 = vadd.f32 %v2775, %v2791
        %v2799 = vadd.f32 %v2776, %v2791
        %v2800 = vadd.f32 %v2777, %v2791
        %v2801 = vadd.f32 %v2778, %v2791
        %v2802 = vadd.f32 %v2779, %v2791
        %v2803 = vadd.f32 %v2780, %v2791
        %v2804 = vadd.f32 %v2781, %v2791
        %v2805 = vadd.f32 %v2782, %v2791
        %v2806 = vadd.f32 %v2783, %v2791
        %v2807 = vadd.f32 %v2784, %v2791
        %v2808 = vadd.f32 %v2785, %v2791
        %v2809 = vxor.u32 %v2793, 2147483648
        %v2810 = vxor.u32 %v2794, 2147483648
        %v2811 = vxor.u32 %v2795, 2147483648
        %v2812 = vxor.u32 %v2796, 2147483648
        %v2813 = vxor.u32 %v2797, 2147483648
        %v2814 = vxor.u32 %v2798, 2147483648
        %v2815 = vxor.u32 %v2799, 2147483648
        %v2816 = vxor.u32 %v2800, 2147483648
        %v2817 = vxor.u32 %v2801, 2147483648
        %v2818 = vxor.u32 %v2802, 2147483648
        %v2819 = vxor.u32 %v2803, 2147483648
        %v2820 = vxor.u32 %v2804, 2147483648
        %v2821 = vxor.u32 %v2805, 2147483648
        %v2822 = vxor.u32 %v2806, 2147483648
        %v2823 = vxor.u32 %v2807, 2147483648
        %v2824 = vxor.u32 %v2808, 2147483648
        %v2825 = vmul.f32 %v2809, 1.442695
        %v2826 = vpow.pop %v2825
        %v2827 = vmul.f32 %v2810, 1.442695
        %v2828 = vpow.pop %v2827
        %v2829 = vmul.f32 %v2811, 1.442695
        %v2830 = vpow.pop %v2829
        %v2831 = vmul.f32 %v2812, 1.442695
        %v2832 = vpow.pop %v2831
        %v2833 = vmul.f32 %v2813, 1.442695
        %v2834 = vpow.pop %v2833
        %v2835 = vmul.f32 %v2814, 1.442695
        %v2836 = vpow.pop %v2835
        %v2837 = vmul.f32 %v2815, 1.442695
        %v2838 = vpow.pop %v2837
        %v2839 = vmul.f32 %v2816, 1.442695
        %v2840 = vpow.pop %v2839
        %v2841 = vmul.f32 %v2817, 1.442695
        %v2842 = vpow.pop %v2841
        %v2843 = vmul.f32 %v2818, 1.442695
        %v2844 = vpow.pop %v2843
        %v2845 = vmul.f32 %v2819, 1.442695
        %v2846 = vpow.pop %v2845
        %v2847 = vmul.f32 %v2820, 1.442695
        %v2848 = vpow.pop %v2847
        %v2849 = vmul.f32 %v2821, 1.442695
        %v2850 = vpow.pop %v2849
        %v2851 = vmul.f32 %v2822, 1.442695
        %v2852 = vpow.pop %v2851
        %v2853 = vmul.f32 %v2823, 1.442695
        %v2854 = vpow.pop %v2853
        %v2855 = vmul.f32 %v2824, 1.442695
        %v2856 = vpow.pop %v2855
        %v2857 = vadd.f32 %v2826, 1.0
        %v2858 = vadd.f32 %v2828, 1.0
        %v2859 = vadd.f32 %v2830, 1.0
        %v2860 = vadd.f32 %v2832, 1.0
        %v2861 = vadd.f32 %v2834, 1.0
        %v2862 = vadd.f32 %v2836, 1.0
        %v2863 = vadd.f32 %v2838, 1.0
        %v2864 = vadd.f32 %v2840, 1.0
        %v2865 = vadd.f32 %v2842, 1.0
        %v2866 = vadd.f32 %v2844, 1.0
        %v2867 = vadd.f32 %v2846, 1.0
        %v2868 = vadd.f32 %v2848, 1.0
        %v2869 = vadd.f32 %v2850, 1.0
        %v2870 = vadd.f32 %v2852, 1.0
        %v2871 = vadd.f32 %v2854, 1.0
        %v2872 = vadd.f32 %v2856, 1.0
        %v2873 = vrcp.pop %v2857
        %v2874 = vmul.f32 1.0, %v2873
        %v2875 = vrcp.pop %v2858
        %v2876 = vmul.f32 1.0, %v2875
        %v2877 = vrcp.pop %v2859
        %v2878 = vmul.f32 1.0, %v2877
        %v2879 = vrcp.pop %v2860
        %v2880 = vmul.f32 1.0, %v2879
        %v2881 = vrcp.pop %v2861
        %v2882 = vmul.f32 1.0, %v2881
        %v2883 = vrcp.pop %v2862
        %v2884 = vmul.f32 1.0, %v2883
        %v2885 = vrcp.pop %v2863
        %v2886 = vmul.f32 1.0, %v2885
        %v2887 = vrcp.pop %v2864
        %v2888 = vmul.f32 1.0, %v2887
        %v2889 = vrcp.pop %v2865
        %v2890 = vmul.f32 1.0, %v2889
        %v2891 = vrcp.pop %v2866
        %v2892 = vmul.f32 1.0, %v2891
        %v2893 = vrcp.pop %v2867
        %v2894 = vmul.f32 1.0, %v2893
        %v2895 = vrcp.pop %v2868
        %v2896 = vmul.f32 1.0, %v2895
        %v2897 = vrcp.pop %v2869
        %v2898 = vmul.f32 1.0, %v2897
        %v2899 = vrcp.pop %v2870
        %v2900 = vmul.f32 1.0, %v2899
        %v2901 = vrcp.pop %v2871
        %v2902 = vmul.f32 1.0, %v2901
        %v2903 = vrcp.pop %v2872
        %v2904 = vmul.f32 1.0, %v2903
        %v2905 = vmul.f32 %v2793, %v2874
        %v2906 = vmul.f32 %v2794, %v2876
        %v2907 = vmul.f32 %v2795, %v2878
        %v2908 = vmul.f32 %v2796, %v2880
        %v2909 = vmul.f32 %v2797, %v2882
        %v2910 = vmul.f32 %v2798, %v2884
        %v2911 = vmul.f32 %v2799, %v2886
        %v2912 = vmul.f32 %v2800, %v2888
        %v2913 = vmul.f32 %v2801, %v2890
        %v2914 = vmul.f32 %v2802, %v2892
        %v2915 = vmul.f32 %v2803, %v2894
        %v2916 = vmul.f32 %v2804, %v2896
        %v2917 = vmul.f32 %v2805, %v2898
        %v2918 = vmul.f32 %v2806, %v2900
        %v2919 = vmul.f32 %v2807, %v2902
        %v2920 = vmul.f32 %v2808, %v2904
        %v2921 = vld [vmem:[%s305 + $0x10] sm:$0xff]
        %v2922 = vld [vmem:[%s305 + $0x18] sm:$0xff]
        %v2923 = vld [vmem:[%s305 + $0x20] sm:$0xff]
        %v2924 = vld [vmem:[%s305 + $0x28] sm:$0xff]
        %v2925 = vld [vmem:[%s305 + $0x30] sm:$0xff]
        %v2926 = vld [vmem:[%s305 + $0x38] sm:$0xff]
        %v2927 = vld [vmem:[%s305 + $0x40] sm:$0xff]
        %v2928 = vld [vmem:[%s305 + $0x48] sm:$0xff]
        %v2929 = vld [vmem:[%s305 + $0x50] sm:$0xff]
        %v2930 = vld [vmem:[%s305 + $0x58] sm:$0xff]
        %v2931 = vld [vmem:[%s305 + $0x60] sm:$0xff]
        %v2932 = vld [vmem:[%s305 + $0x68] sm:$0xff]
        %v2933 = vld [vmem:[%s305 + $0x70] sm:$0xff]
        %v2934 = vld [vmem:[%s305 + $0x78] sm:$0xff]
        %v2935 = vld [vmem:[%s305 + $0x80] sm:$0xff]
        %v2936 = vld [vmem:[%s305 + $0x88] sm:$0xff]
        %v2937 = vadd.f32 %v2905, %v2921
        %v2938 = vadd.f32 %v2906, %v2922
        %v2939 = vadd.f32 %v2907, %v2923
        %v2940 = vadd.f32 %v2908, %v2924
        %v2941 = vadd.f32 %v2909, %v2925
        %v2942 = vadd.f32 %v2910, %v2926
        %v2943 = vadd.f32 %v2911, %v2927
        %v2944 = vadd.f32 %v2912, %v2928
        %v2945 = vadd.f32 %v2913, %v2929
        %v2946 = vadd.f32 %v2914, %v2930
        %v2947 = vadd.f32 %v2915, %v2931
        %v2948 = vadd.f32 %v2916, %v2932
        %v2949 = vadd.f32 %v2917, %v2933
        %v2950 = vadd.f32 %v2918, %v2934
        %v2951 = vadd.f32 %v2919, %v2935
        %v2952 = vadd.f32 %v2920, %v2936
        %2953 = vst [vmem:[%s343] sm:$0xff] %v2937
        %2954 = vst [vmem:[%s343 + $0x8] sm:$0xff] %v2938
        %2955 = vst [vmem:[%s343 + $0x10] sm:$0xff] %v2939
        %2956 = vst [vmem:[%s343 + $0x18] sm:$0xff] %v2940
        %2957 = vst [vmem:[%s343 + $0x20] sm:$0xff] %v2941
        %2958 = vst [vmem:[%s343 + $0x28] sm:$0xff] %v2942
        %2959 = vst [vmem:[%s343 + $0x30] sm:$0xff] %v2943
        %2960 = vst [vmem:[%s343 + $0x38] sm:$0xff] %v2944
        %2961 = vst [vmem:[%s343 + $0x40] sm:$0xff] %v2945
        %2962 = vst [vmem:[%s343 + $0x48] sm:$0xff] %v2946
        %2963 = vst [vmem:[%s343 + $0x50] sm:$0xff] %v2947
        %2964 = vst [vmem:[%s343 + $0x58] sm:$0xff] %v2948
        %2965 = vst [vmem:[%s343 + $0x60] sm:$0xff] %v2949
        %2966 = vst [vmem:[%s343 + $0x68] sm:$0xff] %v2950
        %2967 = vst [vmem:[%s343 + $0x70] sm:$0xff] %v2951
        %2968 = vst [vmem:[%s343 + $0x78] sm:$0xff] %v2952
        %s2969 = sand.u32 %s201, 1
        %s2970 = scalar_lea.sflag [#allocation6], %s2969
        %s2971 = sand.u32 %s201, 1
        %s2972 = smul.addr %s2971, 128
        %s2973 = scalar_lea.vmem [#allocation10], %s2972
        // Predicated region
        $region61: #{tpu_custom_call.1} parent=47 // pred_check
          %p2974 = pneg %p211
        $region62: #{tpu_custom_call.1} parent=47 // pred_check_branch
          %2976 = sbr.rel (%p2974) target = $region64
        $region63: #{tpu_custom_call.1} parent=47 // pred_region
          %s2977 = smul.u32 16, %s30
          %s2979 = ssub.s32 2048, 2048
          %2980 = vsyncadd %s2970, %s2979
          %s2981 = smul.addr %s29, 32
          %s2982 = sadd.s32 %s2977, %s2981
          %s2983 = smul.addr %s2982, 128
          %s2984 = scalar_lea.hbm %s7, %s2983
          %s2985 = sshll.u32 %s2973, 4
          %s2986 = int_to_ptr.vmem [resolvable:$true] %s2985
          %2991 = dma.vmem_to_hbm [thread:$0]  %s2986, 2048, %s2984, %s2970, 128, 128, 8
        $region64: #{tpu_custom_call.1} parent=47 // pred_fallthru
          _
      $region48: #{tpu_custom_call.1} parent=5 // pred_fallthru
        _
      %p2992 = scmp.le.s32.totalorder 2, %s20
      // Predicated region
      $region65: #{tpu_custom_call.1} parent=5 // pred_check
        %p2993 = pneg %p2992
      $region66: #{tpu_custom_call.1} parent=5 // pred_check_branch
        %2995 = sbr.rel (%p2993) target = $region68
      $region67: #{tpu_custom_call.1} parent=5 // pred_region
        %s2996 = ssub.s32 %s20, 2
        // Predicated region
        $region69: #{tpu_custom_call.1} parent=67 // pred_check
          %p2997 = pneg %p217
        $region70: #{tpu_custom_call.1} parent=67 // pred_check_branch
          %2999 = sbr.rel (%p2997) target = $region72
        $region71: #{tpu_custom_call.1} parent=67 // pred_region
          %s3000 = sand.u32 %s202, 1
          %s3001 = scalar_lea.sflag [#allocation6], %s3000
          %s3002 = sand.u32 %s202, 1
          %s3003 = smul.addr %s3002, 128
          %s3004 = scalar_lea.vmem [#allocation10], %s3003
          %3005 = dma.done %s3001, 2048
        $region72: #{tpu_custom_call.1} parent=67 // pred_fallthru
          _
      $region68: #{tpu_custom_call.1} parent=5 // pred_fallthru
        _
    $region6: #{tpu_custom_call.1} parent=1 // loop_footer
      %s24 = sadd.s32 1, %s20
    $region7: #{tpu_custom_call.1} parent=1 // loop_footer_branch
      %19 = sbr.rel target = $region3
    $region8: #{tpu_custom_call.1} parent=1 // loop_exit
      _
    %3006 = vsyncpa [#allocation5], 1
    %s3007 = scalar_lea.sflag [#allocation5], 1
    %3008 = vsyncpa %s3007, 1
    %3009 = vsyncpa [#allocation8], 1
    %3010 = vsyncpa [#allocation6], 1
    %s3011 = scalar_lea.sflag [#allocation6], 1
    %3012 = vsyncpa %s3011, 1

</llo_original>
